<compile_context>
chip_gen: v5e
topology: v5e:2x2
jax: 0.10.0
libtpu: 0.0.40
codegen_flags: <defaults>
</compile_context>

<pallas_src>
import functools

import jax
import jax.numpy as jnp
from jax.experimental import pallas as pl
from jax.experimental.pallas import tpu as pltpu


# ----------------------------- in-kernel helpers -----------------------------

def _layernorm(x, gamma, beta, eps=1e-5):
    """PyTorch nn.LayerNorm over the last dim (biased variance, eps=1e-5)."""
    mu = jnp.mean(x, axis=-1, keepdims=True)
    xc = x - mu
    var = jnp.mean(xc * xc, axis=-1, keepdims=True)
    return xc * jax.lax.rsqrt(var + eps) * gamma + beta


def _erf(x):
    # Abramowitz & Stegun 7.1.26 rational approximation (max abs err ~1.5e-7).
    # Uses only exp / mul / add / select which are guaranteed to lower in Mosaic.
    # TODO(synk): switch to a native EUP-backed erf/tanh path if lowering allows.
    a1, a2, a3, a4, a5 = 0.254829592, -0.284496736, 1.421413741, -1.453152027, 1.061405429
    p = 0.3275911
    s = jnp.where(x >= 0.0, 1.0, -1.0)
    ax = jnp.abs(x)
    t = 1.0 / (1.0 + p * ax)
    poly = ((((a5 * t + a4) * t + a3) * t + a2) * t + a1) * t
    return s * (1.0 - poly * jnp.exp(-ax * ax))


def _gelu_exact(x):
    # Matches torch.nn.GELU() (erf-based) to ~1e-7.
    return 0.5 * x * (1.0 + _erf(x * 0.7071067811865476))


def _bdot(a, b, dn):
    # Head-batched MXU matmul, bf16 in / f32 accumulate.
    return jax.lax.dot_general(a, b, dn, preferred_element_type=jnp.float32)


_DN_QKV = (((2,), (1,)), ((0,), (0,)))   # (H,N,D)  x (H,D,hd) -> (H,N,hd)
_DN_QKT = (((2,), (2,)), ((0,), (0,)))   # (H,N,hd) x (H,M,hd) -> (H,N,M)
_DN_PV = (((2,), (1,)), ((0,), (0,)))    # (H,N,M)  x (H,M,hd) -> (H,N,hd)
_DN_PROJ = (((2,), (1,)), ((0,), (0,)))  # (H,N,hd) x (H,hd,D) -> (H,N,D)


# ------------------------ fused multi-layer encoder kernel -------------------

def _encoder_kernel(x_ref,
                    g1_ref, b1_ref, wq_ref, wk_ref, wv_ref, wp_ref, bp_ref,
                    g2_ref, b2_ref, w1_ref, bm1_ref, w2_ref, bm2_ref,
                    o_ref, *, depth, num_heads):
    N = x_ref.shape[1]
    D = x_ref.shape[2]
    x = x_ref[0].astype(jnp.float32)                                   # (N, D)

    for l in range(depth):                                             # static unroll
        # ---- global self-attention branch: x = x + proj(MHSA(LN1(x))) ----
        h = _layernorm(x, g1_ref[l], b1_ref[l])
        hb = jnp.broadcast_to(h.astype(jnp.bfloat16)[None], (num_heads, N, D))
        # 1/sqrt(hd) is pre-folded into wq (wrapper); matmuls are head-batched.
        q = _bdot(hb, wq_ref[l], _DN_QKV).astype(jnp.bfloat16)         # (H,N,hd)
        k = _bdot(hb, wk_ref[l], _DN_QKV).astype(jnp.bfloat16)         # (H,N,hd)
        v = _bdot(hb, wv_ref[l], _DN_QKV).astype(jnp.bfloat16)         # (H,N,hd)

        s = _bdot(q, k, _DN_QKT)                                       # (H,N,N) f32
        s = s - jnp.max(s, axis=-1, keepdims=True)
        p = jnp.exp(s)
        p = p * pl.reciprocal(jnp.sum(p, axis=-1, keepdims=True), approx=True)

        o = _bdot(p.astype(jnp.bfloat16), v, _DN_PV)                   # (H,N,hd)
        heads = _bdot(o.astype(jnp.bfloat16), wp_ref[l], _DN_PROJ)     # (H,N,D)
        attn = jnp.sum(heads, axis=0) + bp_ref[l]                      # == proj(concat(heads))
        x = x + attn

        # ---- MLP branch: x = x + fc2(GELU(fc1(LN2(x)))) ----
        h2 = _layernorm(x, g2_ref[l], b2_ref[l])
        m = jnp.dot(h2.astype(jnp.bfloat16), w1_ref[l],
                    preferred_element_type=jnp.float32) + bm1_ref[l]
        m = _gelu_exact(m)
        y = jnp.dot(m.astype(jnp.bfloat16), w2_ref[l],
                    preferred_element_type=jnp.float32) + bm2_ref[l]
        x = x + y

    o_ref[0] = x.astype(o_ref.dtype)


_PARAM_ORDER = ("g1", "b1", "w_q", "w_k", "w_v", "w_proj", "b_proj",
                "g2", "b2", "w_fc1", "b_fc1", "w_fc2", "b_fc2")


def _const_spec(arr):
    # Full-array block with a constant block index across the grid -> the
    # pipeline fetches it once and reuses the buffer for every grid step.
    zeros = (0,) * arr.ndim
    return pl.BlockSpec(arr.shape, lambda b, z=zeros: z)


def transformer_encoder_fwd(x, packed, num_heads):
    B, N, D = x.shape
    depth = packed["g1"].shape[0]
    kernel = functools.partial(_encoder_kernel, depth=depth, num_heads=num_heads)

    param_arrays = [packed[name] for name in _PARAM_ORDER]
    in_specs = [pl.BlockSpec((1, N, D), lambda b: (b, 0, 0))]
    in_specs += [_const_spec(a) for a in param_arrays]

    return pl.pallas_call(
        kernel,
        out_shape=jax.ShapeDtypeStruct((B, N, D), x.dtype),
        grid=(B,),
        in_specs=in_specs,
        out_specs=pl.BlockSpec((1, N, D), lambda b: (b, 0, 0)),
        compiler_params=pltpu.CompilerParams(
            dimension_semantics=("parallel",)),      # megacore-shard the batch (v7x)
    )(x, *param_arrays)


# ------------------------------- knn_point ------------------------------------
# Kept for full forward parity, but idx is only consumed by 'deform'/'graph'
# blocks.  With block_style 'attn' the idx is dead, so by default it is skipped
# (avoids materializing the (B,N,N) distance matrix + top_k for nothing).

def _sqdist_kernel(pos_ref, d_ref):
    p = pos_ref[0].astype(jnp.float32)                    # (N, 3)
    N = p.shape[0]
    sq = jnp.sum(p * p, axis=-1, keepdims=True)           # (N, 1)
    ones = jnp.ones((N, 1), jnp.float32)
    # dist[i,j] = sq_i + sq_j - 2 * <p_i, p_j>, built with a single A @ B^T
    # (no in-kernel transpose / reshape relayouts).
    a = jnp.concatenate([p * (-2.0), sq, ones], axis=-1)  # (N, 5)
    b = jnp.concatenate([p, ones, sq], axis=-1)           # (N, 5)
    d_ref[0] = jax.lax.dot_general(a, b, (((1,), (1,)), ((), ())),
                                   preferred_element_type=jnp.float32)


def knn_point(k, pos):
    """torch: topk(square_distance(pos, pos), k, largest=False).indices"""
    B, N, C = pos.shape
    sqd = pl.pallas_call(
        _sqdist_kernel,
        out_shape=jax.ShapeDtypeStruct((B, N, N), jnp.float32),
        grid=(B,),
        in_specs=[pl.BlockSpec((1, N, C), lambda b: (b, 0, 0))],
        out_specs=pl.BlockSpec((1, N, N), lambda b: (b, 0, 0)),
        compiler_params=pltpu.CompilerParams(dimension_semantics=("parallel",)),
    )(pos)
    _, idx = jax.lax.top_k(-sqd, k)
    return idx


# ------------------------------ parameters ------------------------------------

def init_params(key, depth, dim, num_heads, mlp_ratio=4.0):
    """Per-layer params in torch-equivalent layout (x @ W convention)."""
    hidden = int(dim * mlp_ratio)
    layers = []
    for i in range(depth):
        ks = jax.random.split(jax.random.fold_in(key, i), 4)
        layers.append(dict(
            g1=jnp.ones((dim,), jnp.float32),
            b1=jnp.zeros((dim,), jnp.float32),
            w_qkv=0.02 * jax.random.normal(ks[0], (dim, 3 * dim), jnp.float32),
            w_proj=0.02 * jax.random.normal(ks[1], (dim, dim), jnp.float32),
            b_proj=jnp.zeros((dim,), jnp.float32),
            g2=jnp.ones((dim,), jnp.float32),
            b2=jnp.zeros((dim,), jnp.float32),
            w_fc1=0.02 * jax.random.normal(ks[2], (dim, hidden), jnp.float32),
            b_fc1=jnp.zeros((hidden,), jnp.float32),
            w_fc2=0.02 * jax.random.normal(ks[3], (hidden, dim), jnp.float32),
            b_fc2=jnp.zeros((dim,), jnp.float32),
        ))
    return layers


def pack_params(layers, num_heads):
    """Stack layers, split heads, fold the q scale, cast matmul weights to bf16."""
    L = len(layers)
    dim = layers[0]["w_proj"].shape[0]
    hd = dim // num_heads
    scale = float(hd) ** -0.5

    def stack(name):
        return jnp.stack([p[name] for p in layers], axis=0)

    w_qkv = stack("w_qkv")                                     # (L, D, 3D)

    def split_heads(w):                                         # (L, D, D) -> (L, H, D, hd)
        return w.reshape(L, dim, num_heads, hd).transpose(0, 2, 1, 3)

    w_q = split_heads(w_qkv[:, :, 0 * dim:1 * dim]) * scale     # scale folded into q
    w_k = split_heads(w_qkv[:, :, 1 * dim:2 * dim])
    w_v = split_heads(w_qkv[:, :, 2 * dim:3 * dim])
    w_proj = stack("w_proj").reshape(L, num_heads, hd, dim)     # (L, H, hd, D)

    bf = lambda a: a.astype(jnp.bfloat16)
    return dict(
        g1=stack("g1"), b1=stack("b1"),
        w_q=bf(w_q), w_k=bf(w_k), w_v=bf(w_v),
        w_proj=bf(w_proj), b_proj=stack("b_proj"),
        g2=stack("g2"), b2=stack("b2"),
        w_fc1=bf(stack("w_fc1")), b_fc1=stack("b_fc1"),
        w_fc2=bf(stack("w_fc2")), b_fc2=stack("b_fc2"),
    )


# --------------------------------- encoder ------------------------------------

def transformer_encoder(x, pos, packed, num_heads, k, return_knn_idx=False):
    """Matches TransformerEncoder.forward (returns x).  idx is internal and
    unused by 'attn' blocks, so it is computed only on explicit request."""
    idx = knn_point(k, pos) if return_knn_idx else None
    x = transformer_encoder_fwd(x, packed, num_heads)
    return (x, idx) if return_knn_idx else x


# ----------------------------------- main -------------------------------------

if __name__ == "__main__":
    # Small shapes consistent with the module; embed_dim is a multiple of 128
    # so activations / stores are lane-dense.
    B, N, D = 2, 16, 128          # batch, tokens, embed_dim
    num_heads, depth, k_nn = 4, 2, 8

    key = jax.random.PRNGKey(0)
    kx, kp, kw = jax.random.split(key, 3)
    x = jax.random.normal(kx, (B, N, D), jnp.float32)
    pos = jax.random.normal(kp, (B, N, 3), jnp.float32)

    layers = init_params(kw, depth, D, num_heads, mlp_ratio=4.0)
    packed = pack_params(layers, num_heads)

    out = transformer_encoder(x, pos, packed, num_heads, k_nn)
    jax.block_until_ready(out)
    assert out.shape == (B, N, D)
    assert bool(jnp.all(jnp.isfinite(out)))
    print("KERNEL_OK")
</pallas_src>

<mosaic_0001>
module attributes {stable_mosaic.version = 11 : i64} {
  func.func @_encoder_kernel(%arg0: i32, %arg1: memref<1x16x128xf32, #tpu.memory_space<vmem>>, %arg2: memref<2x128xf32, #tpu.memory_space<vmem>>, %arg3: memref<2x128xf32, #tpu.memory_space<vmem>>, %arg4: memref<2x4x128x32xbf16, #tpu.memory_space<vmem>>, %arg5: memref<2x4x128x32xbf16, #tpu.memory_space<vmem>>, %arg6: memref<2x4x128x32xbf16, #tpu.memory_space<vmem>>, %arg7: memref<2x4x32x128xbf16, #tpu.memory_space<vmem>>, %arg8: memref<2x128xf32, #tpu.memory_space<vmem>>, %arg9: memref<2x128xf32, #tpu.memory_space<vmem>>, %arg10: memref<2x128xf32, #tpu.memory_space<vmem>>, %arg11: memref<2x128x512xbf16, #tpu.memory_space<vmem>>, %arg12: memref<2x512xf32, #tpu.memory_space<vmem>>, %arg13: memref<2x512x128xbf16, #tpu.memory_space<vmem>>, %arg14: memref<2x128xf32, #tpu.memory_space<vmem>>, %arg15: memref<1x16x128xf32, #tpu.memory_space<vmem>>) attributes {dimension_semantics = [#tpu.dimension_semantics<parallel>], iteration_bounds = array<i64: 2>, scalar_prefetch = 0 : i64, scratch_operands = 0 : i64, tpu.core_type = #tpu.core_type<tc>, window_params = [{transform_indices = @transform_0, window_bounds = array<i64: 1, 16, 128>}, {pipeline_mode = #tpu.pipeline_mode<synchronous>, transform_indices = @transform_1, window_bounds = array<i64: 2, 128>}, {pipeline_mode = #tpu.pipeline_mode<synchronous>, transform_indices = @transform_2, window_bounds = array<i64: 2, 128>}, {pipeline_mode = #tpu.pipeline_mode<synchronous>, transform_indices = @transform_3, window_bounds = array<i64: 2, 4, 128, 32>}, {pipeline_mode = #tpu.pipeline_mode<synchronous>, transform_indices = @transform_4, window_bounds = array<i64: 2, 4, 128, 32>}, {pipeline_mode = #tpu.pipeline_mode<synchronous>, transform_indices = @transform_5, window_bounds = array<i64: 2, 4, 128, 32>}, {pipeline_mode = #tpu.pipeline_mode<synchronous>, transform_indices = @transform_6, window_bounds = array<i64: 2, 4, 32, 128>}, {pipeline_mode = #tpu.pipeline_mode<synchronous>, transform_indices = @transform_7, window_bounds = array<i64: 2, 128>}, {pipeline_mode = #tpu.pipeline_mode<synchronous>, transform_indices = @transform_8, window_bounds = array<i64: 2, 128>}, {pipeline_mode = #tpu.pipeline_mode<synchronous>, transform_indices = @transform_9, window_bounds = array<i64: 2, 128>}, {pipeline_mode = #tpu.pipeline_mode<synchronous>, transform_indices = @transform_10, window_bounds = array<i64: 2, 128, 512>}, {pipeline_mode = #tpu.pipeline_mode<synchronous>, transform_indices = @transform_11, window_bounds = array<i64: 2, 512>}, {pipeline_mode = #tpu.pipeline_mode<synchronous>, transform_indices = @transform_12, window_bounds = array<i64: 2, 512, 128>}, {pipeline_mode = #tpu.pipeline_mode<synchronous>, transform_indices = @transform_13, window_bounds = array<i64: 2, 128>}, {transform_indices = @transform_14, window_bounds = array<i64: 1, 16, 128>}]} {
    %c0 = arith.constant 0 : index
    %c0_0 = arith.constant 0 : index
    %c0_1 = arith.constant 0 : index
    %0 = vector.load %arg1[%c0, %c0_0, %c0_1] : memref<1x16x128xf32, #tpu.memory_space<vmem>>, vector<1x16x128xf32>
    %1 = vector.shape_cast %0 : vector<1x16x128xf32> to vector<16x128xf32>
    %c0_2 = arith.constant 0 : index
    %c0_3 = arith.constant 0 : index
    %2 = vector.load %arg2[%c0_2, %c0_3] : memref<2x128xf32, #tpu.memory_space<vmem>>, vector<1x128xf32>
    %3 = vector.shape_cast %2 : vector<1x128xf32> to vector<128xf32>
    %c0_4 = arith.constant 0 : index
    %c0_5 = arith.constant 0 : index
    %4 = vector.load %arg3[%c0_4, %c0_5] : memref<2x128xf32, #tpu.memory_space<vmem>>, vector<1x128xf32>
    %5 = vector.shape_cast %4 : vector<1x128xf32> to vector<128xf32>
    %cst = arith.constant dense<0.000000e+00> : vector<16xf32>
    %6 = vector.multi_reduction <add>, %1, %cst [1] : vector<16x128xf32> to vector<16xf32>
    %7 = vector.shape_cast %6 : vector<16xf32> to vector<16x1xf32>
    %cst_6 = arith.constant 1.280000e+02 : f32
    %8 = vector.broadcast %cst_6 : f32 to vector<16x1xf32>
    %9 = arith.divf %7, %8 : vector<16x1xf32>
    %10 = vector.broadcast %9 : vector<16x1xf32> to vector<16x128xf32>
    %11 = arith.subf %1, %10 : vector<16x128xf32>
    %12 = arith.mulf %11, %11 : vector<16x128xf32>
    %cst_7 = arith.constant dense<0.000000e+00> : vector<16xf32>
    %13 = vector.multi_reduction <add>, %12, %cst_7 [1] : vector<16x128xf32> to vector<16xf32>
    %14 = vector.shape_cast %13 : vector<16xf32> to vector<16x1xf32>
    %cst_8 = arith.constant 1.280000e+02 : f32
    %15 = vector.broadcast %cst_8 : f32 to vector<16x1xf32>
    %16 = arith.divf %14, %15 : vector<16x1xf32>
    %cst_9 = arith.constant 9.99999974E-6 : f32
    %17 = vector.broadcast %cst_9 : f32 to vector<16x1xf32>
    %18 = arith.addf %16, %17 : vector<16x1xf32>
    %19 = math.rsqrt %18 : vector<16x1xf32>
    %20 = vector.broadcast %19 : vector<16x1xf32> to vector<16x128xf32>
    %21 = arith.mulf %11, %20 : vector<16x128xf32>
    %22 = vector.shape_cast %3 : vector<128xf32> to vector<1x128xf32>
    %23 = vector.broadcast %22 : vector<1x128xf32> to vector<16x128xf32>
    %24 = arith.mulf %21, %23 : vector<16x128xf32>
    %25 = vector.shape_cast %5 : vector<128xf32> to vector<1x128xf32>
    %26 = vector.broadcast %25 : vector<1x128xf32> to vector<16x128xf32>
    %27 = arith.addf %24, %26 : vector<16x128xf32>
    %28 = arith.truncf %27 : vector<16x128xf32> to vector<16x128xbf16>
    %29 = vector.shape_cast %28 : vector<16x128xbf16> to vector<1x16x128xbf16>
    %30 = vector.shape_cast %29 : vector<1x16x128xbf16> to vector<1x16x128xbf16>
    %31 = vector.broadcast %30 : vector<1x16x128xbf16> to vector<4x16x128xbf16>
    %c0_10 = arith.constant 0 : index
    %c0_11 = arith.constant 0 : index
    %c0_12 = arith.constant 0 : index
    %c0_13 = arith.constant 0 : index
    %32 = vector.load %arg4[%c0_10, %c0_11, %c0_12, %c0_13] : memref<2x4x128x32xbf16, #tpu.memory_space<vmem>>, vector<1x4x128x32xbf16>
    %33 = vector.shape_cast %32 : vector<1x4x128x32xbf16> to vector<4x128x32xbf16>
    %cst_14 = arith.constant dense<0.000000e+00> : vector<4x16x32xf32>
    %34 = tpu.matmul %31, %33, %cst_14 {dimension_numbers = #tpu.dot_dimension_numbers<[2], [1], [1], [2], [0, 0, 0, 1, 1, 2], [0], [0]>} : vector<4x16x128xbf16>, vector<4x128x32xbf16>, vector<4x16x32xf32> -> vector<4x16x32xf32>
    %35 = arith.truncf %34 : vector<4x16x32xf32> to vector<4x16x32xbf16>
    %c0_15 = arith.constant 0 : index
    %c0_16 = arith.constant 0 : index
    %c0_17 = arith.constant 0 : index
    %c0_18 = arith.constant 0 : index
    %36 = vector.load %arg5[%c0_15, %c0_16, %c0_17, %c0_18] : memref<2x4x128x32xbf16, #tpu.memory_space<vmem>>, vector<1x4x128x32xbf16>
    %37 = vector.shape_cast %36 : vector<1x4x128x32xbf16> to vector<4x128x32xbf16>
    %cst_19 = arith.constant dense<0.000000e+00> : vector<4x16x32xf32>
    %38 = tpu.matmul %31, %37, %cst_19 {dimension_numbers = #tpu.dot_dimension_numbers<[2], [1], [1], [2], [0, 0, 0, 1, 1, 2], [0], [0]>} : vector<4x16x128xbf16>, vector<4x128x32xbf16>, vector<4x16x32xf32> -> vector<4x16x32xf32>
    %39 = arith.truncf %38 : vector<4x16x32xf32> to vector<4x16x32xbf16>
    %c0_20 = arith.constant 0 : index
    %c0_21 = arith.constant 0 : index
    %c0_22 = arith.constant 0 : index
    %c0_23 = arith.constant 0 : index
    %40 = vector.load %arg6[%c0_20, %c0_21, %c0_22, %c0_23] : memref<2x4x128x32xbf16, #tpu.memory_space<vmem>>, vector<1x4x128x32xbf16>
    %41 = vector.shape_cast %40 : vector<1x4x128x32xbf16> to vector<4x128x32xbf16>
    %cst_24 = arith.constant dense<0.000000e+00> : vector<4x16x32xf32>
    %42 = tpu.matmul %31, %41, %cst_24 {dimension_numbers = #tpu.dot_dimension_numbers<[2], [1], [1], [2], [0, 0, 0, 1, 1, 2], [0], [0]>} : vector<4x16x128xbf16>, vector<4x128x32xbf16>, vector<4x16x32xf32> -> vector<4x16x32xf32>
    %43 = arith.truncf %42 : vector<4x16x32xf32> to vector<4x16x32xbf16>
    %cst_25 = arith.constant dense<0.000000e+00> : vector<4x16x16xf32>
    %44 = tpu.matmul %35, %39, %cst_25 {dimension_numbers = #tpu.dot_dimension_numbers<[2], [2], [1], [1], [0, 0, 0, 1, 1, 1], [0], [0]>} : vector<4x16x32xbf16>, vector<4x16x32xbf16>, vector<4x16x16xf32> -> vector<4x16x16xf32>
    %cst_26 = arith.constant dense<0xFF800000> : vector<4x16xf32>
    %45 = vector.multi_reduction <maximumf>, %44, %cst_26 [2] : vector<4x16x16xf32> to vector<4x16xf32>
    %46 = vector.shape_cast %45 : vector<4x16xf32> to vector<4x16x1xf32>
    %47 = vector.broadcast %46 : vector<4x16x1xf32> to vector<4x16x16xf32>
    %48 = arith.subf %44, %47 : vector<4x16x16xf32>
    %49 = math.exp %48 : vector<4x16x16xf32>
    %cst_27 = arith.constant dense<0.000000e+00> : vector<4x16xf32>
    %50 = vector.multi_reduction <add>, %49, %cst_27 [2] : vector<4x16x16xf32> to vector<4x16xf32>
    %51 = vector.shape_cast %50 : vector<4x16xf32> to vector<4x16x1xf32>
    %52 = tpu.reciprocal %51 {approx = true} : vector<4x16x1xf32> -> vector<4x16x1xf32>
    %53 = vector.broadcast %52 : vector<4x16x1xf32> to vector<4x16x16xf32>
    %54 = arith.mulf %49, %53 : vector<4x16x16xf32>
    %55 = arith.truncf %54 : vector<4x16x16xf32> to vector<4x16x16xbf16>
    %cst_28 = arith.constant dense<0.000000e+00> : vector<4x16x32xf32>
    %56 = tpu.matmul %55, %43, %cst_28 {dimension_numbers = #tpu.dot_dimension_numbers<[2], [1], [1], [2], [0, 0, 0, 1, 1, 2], [0], [0]>} : vector<4x16x16xbf16>, vector<4x16x32xbf16>, vector<4x16x32xf32> -> vector<4x16x32xf32>
    %57 = arith.truncf %56 : vector<4x16x32xf32> to vector<4x16x32xbf16>
    %c0_29 = arith.constant 0 : index
    %c0_30 = arith.constant 0 : index
    %c0_31 = arith.constant 0 : index
    %c0_32 = arith.constant 0 : index
    %58 = vector.load %arg7[%c0_29, %c0_30, %c0_31, %c0_32] : memref<2x4x32x128xbf16, #tpu.memory_space<vmem>>, vector<1x4x32x128xbf16>
    %59 = vector.shape_cast %58 : vector<1x4x32x128xbf16> to vector<4x32x128xbf16>
    %cst_33 = arith.constant dense<0.000000e+00> : vector<4x16x128xf32>
    %60 = tpu.matmul %57, %59, %cst_33 {dimension_numbers = #tpu.dot_dimension_numbers<[2], [1], [1], [2], [0, 0, 0, 1, 1, 2], [0], [0]>} : vector<4x16x32xbf16>, vector<4x32x128xbf16>, vector<4x16x128xf32> -> vector<4x16x128xf32>
    %cst_34 = arith.constant dense<0.000000e+00> : vector<16x128xf32>
    %61 = vector.multi_reduction <add>, %60, %cst_34 [0] : vector<4x16x128xf32> to vector<16x128xf32>
    %c0_35 = arith.constant 0 : index
    %c0_36 = arith.constant 0 : index
    %62 = vector.load %arg8[%c0_35, %c0_36] : memref<2x128xf32, #tpu.memory_space<vmem>>, vector<1x128xf32>
    %63 = vector.shape_cast %62 : vector<1x128xf32> to vector<128xf32>
    %64 = vector.shape_cast %63 : vector<128xf32> to vector<1x128xf32>
    %65 = vector.broadcast %64 : vector<1x128xf32> to vector<16x128xf32>
    %66 = arith.addf %61, %65 : vector<16x128xf32>
    %67 = arith.addf %1, %66 : vector<16x128xf32>
    %c0_37 = arith.constant 0 : index
    %c0_38 = arith.constant 0 : index
    %68 = vector.load %arg9[%c0_37, %c0_38] : memref<2x128xf32, #tpu.memory_space<vmem>>, vector<1x128xf32>
    %69 = vector.shape_cast %68 : vector<1x128xf32> to vector<128xf32>
    %c0_39 = arith.constant 0 : index
    %c0_40 = arith.constant 0 : index
    %70 = vector.load %arg10[%c0_39, %c0_40] : memref<2x128xf32, #tpu.memory_space<vmem>>, vector<1x128xf32>
    %71 = vector.shape_cast %70 : vector<1x128xf32> to vector<128xf32>
    %cst_41 = arith.constant dense<0.000000e+00> : vector<16xf32>
    %72 = vector.multi_reduction <add>, %67, %cst_41 [1] : vector<16x128xf32> to vector<16xf32>
    %73 = vector.shape_cast %72 : vector<16xf32> to vector<16x1xf32>
    %cst_42 = arith.constant 1.280000e+02 : f32
    %74 = vector.broadcast %cst_42 : f32 to vector<16x1xf32>
    %75 = arith.divf %73, %74 : vector<16x1xf32>
    %76 = vector.broadcast %75 : vector<16x1xf32> to vector<16x128xf32>
    %77 = arith.subf %67, %76 : vector<16x128xf32>
    %78 = arith.mulf %77, %77 : vector<16x128xf32>
    %cst_43 = arith.constant dense<0.000000e+00> : vector<16xf32>
    %79 = vector.multi_reduction <add>, %78, %cst_43 [1] : vector<16x128xf32> to vector<16xf32>
    %80 = vector.shape_cast %79 : vector<16xf32> to vector<16x1xf32>
    %cst_44 = arith.constant 1.280000e+02 : f32
    %81 = vector.broadcast %cst_44 : f32 to vector<16x1xf32>
    %82 = arith.divf %80, %81 : vector<16x1xf32>
    %cst_45 = arith.constant 9.99999974E-6 : f32
    %83 = vector.broadcast %cst_45 : f32 to vector<16x1xf32>
    %84 = arith.addf %82, %83 : vector<16x1xf32>
    %85 = math.rsqrt %84 : vector<16x1xf32>
    %86 = vector.broadcast %85 : vector<16x1xf32> to vector<16x128xf32>
    %87 = arith.mulf %77, %86 : vector<16x128xf32>
    %88 = vector.shape_cast %69 : vector<128xf32> to vector<1x128xf32>
    %89 = vector.broadcast %88 : vector<1x128xf32> to vector<16x128xf32>
    %90 = arith.mulf %87, %89 : vector<16x128xf32>
    %91 = vector.shape_cast %71 : vector<128xf32> to vector<1x128xf32>
    %92 = vector.broadcast %91 : vector<1x128xf32> to vector<16x128xf32>
    %93 = arith.addf %90, %92 : vector<16x128xf32>
    %94 = arith.truncf %93 : vector<16x128xf32> to vector<16x128xbf16>
    %c0_46 = arith.constant 0 : index
    %c0_47 = arith.constant 0 : index
    %c0_48 = arith.constant 0 : index
    %95 = vector.load %arg11[%c0_46, %c0_47, %c0_48] : memref<2x128x512xbf16, #tpu.memory_space<vmem>>, vector<1x128x512xbf16>
    %96 = vector.shape_cast %95 : vector<1x128x512xbf16> to vector<128x512xbf16>
    %cst_49 = arith.constant dense<0.000000e+00> : vector<16x512xf32>
    %97 = tpu.matmul %94, %96, %cst_49 {dimension_numbers = #tpu.dot_dimension_numbers<[1], [0], [0], [1], [0, 0, 1, 1], [], []>} : vector<16x128xbf16>, vector<128x512xbf16>, vector<16x512xf32> -> vector<16x512xf32>
    %c0_50 = arith.constant 0 : index
    %c0_51 = arith.constant 0 : index
    %98 = vector.load %arg12[%c0_50, %c0_51] : memref<2x512xf32, #tpu.memory_space<vmem>>, vector<1x512xf32>
    %99 = vector.shape_cast %98 : vector<1x512xf32> to vector<512xf32>
    %100 = vector.shape_cast %99 : vector<512xf32> to vector<1x512xf32>
    %101 = vector.broadcast %100 : vector<1x512xf32> to vector<16x512xf32>
    %102 = arith.addf %97, %101 : vector<16x512xf32>
    %cst_52 = arith.constant 5.000000e-01 : f32
    %103 = vector.broadcast %cst_52 : f32 to vector<16x512xf32>
    %104 = arith.mulf %103, %102 : vector<16x512xf32>
    %cst_53 = arith.constant 0.707106769 : f32
    %105 = vector.broadcast %cst_53 : f32 to vector<16x512xf32>
    %106 = arith.mulf %102, %105 : vector<16x512xf32>
    %cst_54 = arith.constant 0.000000e+00 : f32
    %107 = vector.broadcast %cst_54 : f32 to vector<16x512xf32>
    %108 = arith.cmpf oge, %106, %107 : vector<16x512xf32>
    %cst_55 = arith.constant 1.000000e+00 : f32
    %cst_56 = arith.constant -1.000000e+00 : f32
    %109 = vector.broadcast %cst_55 : f32 to vector<16x512xf32>
    %110 = vector.broadcast %cst_56 : f32 to vector<16x512xf32>
    %111 = arith.select %108, %109, %110 : vector<16x512xi1>, vector<16x512xf32>
    %112 = math.absf %106 : vector<16x512xf32>
    %cst_57 = arith.constant 0.327591091 : f32
    %113 = vector.broadcast %cst_57 : f32 to vector<16x512xf32>
    %114 = arith.mulf %113, %112 : vector<16x512xf32>
    %cst_58 = arith.constant 1.000000e+00 : f32
    %115 = vector.broadcast %cst_58 : f32 to vector<16x512xf32>
    %116 = arith.addf %115, %114 : vector<16x512xf32>
    %cst_59 = arith.constant 1.000000e+00 : f32
    %117 = vector.broadcast %cst_59 : f32 to vector<16x512xf32>
    %118 = arith.divf %117, %116 : vector<16x512xf32>
    %cst_60 = arith.constant 1.06140542 : f32
    %119 = vector.broadcast %cst_60 : f32 to vector<16x512xf32>
    %120 = arith.mulf %119, %118 : vector<16x512xf32>
    %cst_61 = arith.constant -1.45315206 : f32
    %121 = vector.broadcast %cst_61 : f32 to vector<16x512xf32>
    %122 = arith.addf %120, %121 : vector<16x512xf32>
    %123 = arith.mulf %122, %118 : vector<16x512xf32>
    %cst_62 = arith.constant 1.42141378 : f32
    %124 = vector.broadcast %cst_62 : f32 to vector<16x512xf32>
    %125 = arith.addf %123, %124 : vector<16x512xf32>
    %126 = arith.mulf %125, %118 : vector<16x512xf32>
    %cst_63 = arith.constant -0.284496725 : f32
    %127 = vector.broadcast %cst_63 : f32 to vector<16x512xf32>
    %128 = arith.addf %126, %127 : vector<16x512xf32>
    %129 = arith.mulf %128, %118 : vector<16x512xf32>
    %cst_64 = arith.constant 0.254829586 : f32
    %130 = vector.broadcast %cst_64 : f32 to vector<16x512xf32>
    %131 = arith.addf %129, %130 : vector<16x512xf32>
    %132 = arith.mulf %131, %118 : vector<16x512xf32>
    %cst_65 = arith.constant 0.000000e+00 : f32
    %133 = vector.broadcast %cst_65 : f32 to vector<16x512xf32>
    %134 = arith.subf %133, %112 : vector<16x512xf32>
    %135 = arith.mulf %134, %112 : vector<16x512xf32>
    %136 = math.exp %135 : vector<16x512xf32>
    %137 = arith.mulf %132, %136 : vector<16x512xf32>
    %cst_66 = arith.constant 1.000000e+00 : f32
    %138 = vector.broadcast %cst_66 : f32 to vector<16x512xf32>
    %139 = arith.subf %138, %137 : vector<16x512xf32>
    %140 = arith.mulf %111, %139 : vector<16x512xf32>
    %cst_67 = arith.constant 1.000000e+00 : f32
    %141 = vector.broadcast %cst_67 : f32 to vector<16x512xf32>
    %142 = arith.addf %141, %140 : vector<16x512xf32>
    %143 = arith.mulf %104, %142 : vector<16x512xf32>
    %144 = arith.truncf %143 : vector<16x512xf32> to vector<16x512xbf16>
    %c0_68 = arith.constant 0 : index
    %c0_69 = arith.constant 0 : index
    %c0_70 = arith.constant 0 : index
    %145 = vector.load %arg13[%c0_68, %c0_69, %c0_70] : memref<2x512x128xbf16, #tpu.memory_space<vmem>>, vector<1x512x128xbf16>
    %146 = vector.shape_cast %145 : vector<1x512x128xbf16> to vector<512x128xbf16>
    %cst_71 = arith.constant dense<0.000000e+00> : vector<16x128xf32>
    %147 = tpu.matmul %144, %146, %cst_71 {dimension_numbers = #tpu.dot_dimension_numbers<[1], [0], [0], [1], [0, 0, 1, 1], [], []>} : vector<16x512xbf16>, vector<512x128xbf16>, vector<16x128xf32> -> vector<16x128xf32>
    %c0_72 = arith.constant 0 : index
    %c0_73 = arith.constant 0 : index
    %148 = vector.load %arg14[%c0_72, %c0_73] : memref<2x128xf32, #tpu.memory_space<vmem>>, vector<1x128xf32>
    %149 = vector.shape_cast %148 : vector<1x128xf32> to vector<128xf32>
    %150 = vector.shape_cast %149 : vector<128xf32> to vector<1x128xf32>
    %151 = vector.broadcast %150 : vector<1x128xf32> to vector<16x128xf32>
    %152 = arith.addf %147, %151 : vector<16x128xf32>
    %153 = arith.addf %67, %152 : vector<16x128xf32>
    %c1 = arith.constant 1 : index
    %c0_74 = arith.constant 0 : index
    %154 = vector.load %arg2[%c1, %c0_74] : memref<2x128xf32, #tpu.memory_space<vmem>>, vector<1x128xf32>
    %155 = vector.shape_cast %154 : vector<1x128xf32> to vector<128xf32>
    %c1_75 = arith.constant 1 : index
    %c0_76 = arith.constant 0 : index
    %156 = vector.load %arg3[%c1_75, %c0_76] : memref<2x128xf32, #tpu.memory_space<vmem>>, vector<1x128xf32>
    %157 = vector.shape_cast %156 : vector<1x128xf32> to vector<128xf32>
    %cst_77 = arith.constant dense<0.000000e+00> : vector<16xf32>
    %158 = vector.multi_reduction <add>, %153, %cst_77 [1] : vector<16x128xf32> to vector<16xf32>
    %159 = vector.shape_cast %158 : vector<16xf32> to vector<16x1xf32>
    %cst_78 = arith.constant 1.280000e+02 : f32
    %160 = vector.broadcast %cst_78 : f32 to vector<16x1xf32>
    %161 = arith.divf %159, %160 : vector<16x1xf32>
    %162 = vector.broadcast %161 : vector<16x1xf32> to vector<16x128xf32>
    %163 = arith.subf %153, %162 : vector<16x128xf32>
    %164 = arith.mulf %163, %163 : vector<16x128xf32>
    %cst_79 = arith.constant dense<0.000000e+00> : vector<16xf32>
    %165 = vector.multi_reduction <add>, %164, %cst_79 [1] : vector<16x128xf32> to vector<16xf32>
    %166 = vector.shape_cast %165 : vector<16xf32> to vector<16x1xf32>
    %cst_80 = arith.constant 1.280000e+02 : f32
    %167 = vector.broadcast %cst_80 : f32 to vector<16x1xf32>
    %168 = arith.divf %166, %167 : vector<16x1xf32>
    %cst_81 = arith.constant 9.99999974E-6 : f32
    %169 = vector.broadcast %cst_81 : f32 to vector<16x1xf32>
    %170 = arith.addf %168, %169 : vector<16x1xf32>
    %171 = math.rsqrt %170 : vector<16x1xf32>
    %172 = vector.broadcast %171 : vector<16x1xf32> to vector<16x128xf32>
    %173 = arith.mulf %163, %172 : vector<16x128xf32>
    %174 = vector.shape_cast %155 : vector<128xf32> to vector<1x128xf32>
    %175 = vector.broadcast %174 : vector<1x128xf32> to vector<16x128xf32>
    %176 = arith.mulf %173, %175 : vector<16x128xf32>
    %177 = vector.shape_cast %157 : vector<128xf32> to vector<1x128xf32>
    %178 = vector.broadcast %177 : vector<1x128xf32> to vector<16x128xf32>
    %179 = arith.addf %176, %178 : vector<16x128xf32>
    %180 = arith.truncf %179 : vector<16x128xf32> to vector<16x128xbf16>
    %181 = vector.shape_cast %180 : vector<16x128xbf16> to vector<1x16x128xbf16>
    %182 = vector.shape_cast %181 : vector<1x16x128xbf16> to vector<1x16x128xbf16>
    %183 = vector.broadcast %182 : vector<1x16x128xbf16> to vector<4x16x128xbf16>
    %c1_82 = arith.constant 1 : index
    %c0_83 = arith.constant 0 : index
    %c0_84 = arith.constant 0 : index
    %c0_85 = arith.constant 0 : index
    %184 = vector.load %arg4[%c1_82, %c0_83, %c0_84, %c0_85] : memref<2x4x128x32xbf16, #tpu.memory_space<vmem>>, vector<1x4x128x32xbf16>
    %185 = vector.shape_cast %184 : vector<1x4x128x32xbf16> to vector<4x128x32xbf16>
    %cst_86 = arith.constant dense<0.000000e+00> : vector<4x16x32xf32>
    %186 = tpu.matmul %183, %185, %cst_86 {dimension_numbers = #tpu.dot_dimension_numbers<[2], [1], [1], [2], [0, 0, 0, 1, 1, 2], [0], [0]>} : vector<4x16x128xbf16>, vector<4x128x32xbf16>, vector<4x16x32xf32> -> vector<4x16x32xf32>
    %187 = arith.truncf %186 : vector<4x16x32xf32> to vector<4x16x32xbf16>
    %c1_87 = arith.constant 1 : index
    %c0_88 = arith.constant 0 : index
    %c0_89 = arith.constant 0 : index
    %c0_90 = arith.constant 0 : index
    %188 = vector.load %arg5[%c1_87, %c0_88, %c0_89, %c0_90] : memref<2x4x128x32xbf16, #tpu.memory_space<vmem>>, vector<1x4x128x32xbf16>
    %189 = vector.shape_cast %188 : vector<1x4x128x32xbf16> to vector<4x128x32xbf16>
    %cst_91 = arith.constant dense<0.000000e+00> : vector<4x16x32xf32>
    %190 = tpu.matmul %183, %189, %cst_91 {dimension_numbers = #tpu.dot_dimension_numbers<[2], [1], [1], [2], [0, 0, 0, 1, 1, 2], [0], [0]>} : vector<4x16x128xbf16>, vector<4x128x32xbf16>, vector<4x16x32xf32> -> vector<4x16x32xf32>
    %191 = arith.truncf %190 : vector<4x16x32xf32> to vector<4x16x32xbf16>
    %c1_92 = arith.constant 1 : index
    %c0_93 = arith.constant 0 : index
    %c0_94 = arith.constant 0 : index
    %c0_95 = arith.constant 0 : index
    %192 = vector.load %arg6[%c1_92, %c0_93, %c0_94, %c0_95] : memref<2x4x128x32xbf16, #tpu.memory_space<vmem>>, vector<1x4x128x32xbf16>
    %193 = vector.shape_cast %192 : vector<1x4x128x32xbf16> to vector<4x128x32xbf16>
    %cst_96 = arith.constant dense<0.000000e+00> : vector<4x16x32xf32>
    %194 = tpu.matmul %183, %193, %cst_96 {dimension_numbers = #tpu.dot_dimension_numbers<[2], [1], [1], [2], [0, 0, 0, 1, 1, 2], [0], [0]>} : vector<4x16x128xbf16>, vector<4x128x32xbf16>, vector<4x16x32xf32> -> vector<4x16x32xf32>
    %195 = arith.truncf %194 : vector<4x16x32xf32> to vector<4x16x32xbf16>
    %cst_97 = arith.constant dense<0.000000e+00> : vector<4x16x16xf32>
    %196 = tpu.matmul %187, %191, %cst_97 {dimension_numbers = #tpu.dot_dimension_numbers<[2], [2], [1], [1], [0, 0, 0, 1, 1, 1], [0], [0]>} : vector<4x16x32xbf16>, vector<4x16x32xbf16>, vector<4x16x16xf32> -> vector<4x16x16xf32>
    %cst_98 = arith.constant dense<0xFF800000> : vector<4x16xf32>
    %197 = vector.multi_reduction <maximumf>, %196, %cst_98 [2] : vector<4x16x16xf32> to vector<4x16xf32>
    %198 = vector.shape_cast %197 : vector<4x16xf32> to vector<4x16x1xf32>
    %199 = vector.broadcast %198 : vector<4x16x1xf32> to vector<4x16x16xf32>
    %200 = arith.subf %196, %199 : vector<4x16x16xf32>
    %201 = math.exp %200 : vector<4x16x16xf32>
    %cst_99 = arith.constant dense<0.000000e+00> : vector<4x16xf32>
    %202 = vector.multi_reduction <add>, %201, %cst_99 [2] : vector<4x16x16xf32> to vector<4x16xf32>
    %203 = vector.shape_cast %202 : vector<4x16xf32> to vector<4x16x1xf32>
    %204 = tpu.reciprocal %203 {approx = true} : vector<4x16x1xf32> -> vector<4x16x1xf32>
    %205 = vector.broadcast %204 : vector<4x16x1xf32> to vector<4x16x16xf32>
    %206 = arith.mulf %201, %205 : vector<4x16x16xf32>
    %207 = arith.truncf %206 : vector<4x16x16xf32> to vector<4x16x16xbf16>
    %cst_100 = arith.constant dense<0.000000e+00> : vector<4x16x32xf32>
    %208 = tpu.matmul %207, %195, %cst_100 {dimension_numbers = #tpu.dot_dimension_numbers<[2], [1], [1], [2], [0, 0, 0, 1, 1, 2], [0], [0]>} : vector<4x16x16xbf16>, vector<4x16x32xbf16>, vector<4x16x32xf32> -> vector<4x16x32xf32>
    %209 = arith.truncf %208 : vector<4x16x32xf32> to vector<4x16x32xbf16>
    %c1_101 = arith.constant 1 : index
    %c0_102 = arith.constant 0 : index
    %c0_103 = arith.constant 0 : index
    %c0_104 = arith.constant 0 : index
    %210 = vector.load %arg7[%c1_101, %c0_102, %c0_103, %c0_104] : memref<2x4x32x128xbf16, #tpu.memory_space<vmem>>, vector<1x4x32x128xbf16>
    %211 = vector.shape_cast %210 : vector<1x4x32x128xbf16> to vector<4x32x128xbf16>
    %cst_105 = arith.constant dense<0.000000e+00> : vector<4x16x128xf32>
    %212 = tpu.matmul %209, %211, %cst_105 {dimension_numbers = #tpu.dot_dimension_numbers<[2], [1], [1], [2], [0, 0, 0, 1, 1, 2], [0], [0]>} : vector<4x16x32xbf16>, vector<4x32x128xbf16>, vector<4x16x128xf32> -> vector<4x16x128xf32>
    %cst_106 = arith.constant dense<0.000000e+00> : vector<16x128xf32>
    %213 = vector.multi_reduction <add>, %212, %cst_106 [0] : vector<4x16x128xf32> to vector<16x128xf32>
    %c1_107 = arith.constant 1 : index
    %c0_108 = arith.constant 0 : index
    %214 = vector.load %arg8[%c1_107, %c0_108] : memref<2x128xf32, #tpu.memory_space<vmem>>, vector<1x128xf32>
    %215 = vector.shape_cast %214 : vector<1x128xf32> to vector<128xf32>
    %216 = vector.shape_cast %215 : vector<128xf32> to vector<1x128xf32>
    %217 = vector.broadcast %216 : vector<1x128xf32> to vector<16x128xf32>
    %218 = arith.addf %213, %217 : vector<16x128xf32>
    %219 = arith.addf %153, %218 : vector<16x128xf32>
    %c1_109 = arith.constant 1 : index
    %c0_110 = arith.constant 0 : index
    %220 = vector.load %arg9[%c1_109, %c0_110] : memref<2x128xf32, #tpu.memory_space<vmem>>, vector<1x128xf32>
    %221 = vector.shape_cast %220 : vector<1x128xf32> to vector<128xf32>
    %c1_111 = arith.constant 1 : index
    %c0_112 = arith.constant 0 : index
    %222 = vector.load %arg10[%c1_111, %c0_112] : memref<2x128xf32, #tpu.memory_space<vmem>>, vector<1x128xf32>
    %223 = vector.shape_cast %222 : vector<1x128xf32> to vector<128xf32>
    %cst_113 = arith.constant dense<0.000000e+00> : vector<16xf32>
    %224 = vector.multi_reduction <add>, %219, %cst_113 [1] : vector<16x128xf32> to vector<16xf32>
    %225 = vector.shape_cast %224 : vector<16xf32> to vector<16x1xf32>
    %cst_114 = arith.constant 1.280000e+02 : f32
    %226 = vector.broadcast %cst_114 : f32 to vector<16x1xf32>
    %227 = arith.divf %225, %226 : vector<16x1xf32>
    %228 = vector.broadcast %227 : vector<16x1xf32> to vector<16x128xf32>
    %229 = arith.subf %219, %228 : vector<16x128xf32>
    %230 = arith.mulf %229, %229 : vector<16x128xf32>
    %cst_115 = arith.constant dense<0.000000e+00> : vector<16xf32>
    %231 = vector.multi_reduction <add>, %230, %cst_115 [1] : vector<16x128xf32> to vector<16xf32>
    %232 = vector.shape_cast %231 : vector<16xf32> to vector<16x1xf32>
    %cst_116 = arith.constant 1.280000e+02 : f32
    %233 = vector.broadcast %cst_116 : f32 to vector<16x1xf32>
    %234 = arith.divf %232, %233 : vector<16x1xf32>
    %cst_117 = arith.constant 9.99999974E-6 : f32
    %235 = vector.broadcast %cst_117 : f32 to vector<16x1xf32>
    %236 = arith.addf %234, %235 : vector<16x1xf32>
    %237 = math.rsqrt %236 : vector<16x1xf32>
    %238 = vector.broadcast %237 : vector<16x1xf32> to vector<16x128xf32>
    %239 = arith.mulf %229, %238 : vector<16x128xf32>
    %240 = vector.shape_cast %221 : vector<128xf32> to vector<1x128xf32>
    %241 = vector.broadcast %240 : vector<1x128xf32> to vector<16x128xf32>
    %242 = arith.mulf %239, %241 : vector<16x128xf32>
    %243 = vector.shape_cast %223 : vector<128xf32> to vector<1x128xf32>
    %244 = vector.broadcast %243 : vector<1x128xf32> to vector<16x128xf32>
    %245 = arith.addf %242, %244 : vector<16x128xf32>
    %246 = arith.truncf %245 : vector<16x128xf32> to vector<16x128xbf16>
    %c1_118 = arith.constant 1 : index
    %c0_119 = arith.constant 0 : index
    %c0_120 = arith.constant 0 : index
    %247 = vector.load %arg11[%c1_118, %c0_119, %c0_120] : memref<2x128x512xbf16, #tpu.memory_space<vmem>>, vector<1x128x512xbf16>
    %248 = vector.shape_cast %247 : vector<1x128x512xbf16> to vector<128x512xbf16>
    %cst_121 = arith.constant dense<0.000000e+00> : vector<16x512xf32>
    %249 = tpu.matmul %246, %248, %cst_121 {dimension_numbers = #tpu.dot_dimension_numbers<[1], [0], [0], [1], [0, 0, 1, 1], [], []>} : vector<16x128xbf16>, vector<128x512xbf16>, vector<16x512xf32> -> vector<16x512xf32>
    %c1_122 = arith.constant 1 : index
    %c0_123 = arith.constant 0 : index
    %250 = vector.load %arg12[%c1_122, %c0_123] : memref<2x512xf32, #tpu.memory_space<vmem>>, vector<1x512xf32>
    %251 = vector.shape_cast %250 : vector<1x512xf32> to vector<512xf32>
    %252 = vector.shape_cast %251 : vector<512xf32> to vector<1x512xf32>
    %253 = vector.broadcast %252 : vector<1x512xf32> to vector<16x512xf32>
    %254 = arith.addf %249, %253 : vector<16x512xf32>
    %cst_124 = arith.constant 5.000000e-01 : f32
    %255 = vector.broadcast %cst_124 : f32 to vector<16x512xf32>
    %256 = arith.mulf %255, %254 : vector<16x512xf32>
    %cst_125 = arith.constant 0.707106769 : f32
    %257 = vector.broadcast %cst_125 : f32 to vector<16x512xf32>
    %258 = arith.mulf %254, %257 : vector<16x512xf32>
    %cst_126 = arith.constant 0.000000e+00 : f32
    %259 = vector.broadcast %cst_126 : f32 to vector<16x512xf32>
    %260 = arith.cmpf oge, %258, %259 : vector<16x512xf32>
    %cst_127 = arith.constant 1.000000e+00 : f32
    %cst_128 = arith.constant -1.000000e+00 : f32
    %261 = vector.broadcast %cst_127 : f32 to vector<16x512xf32>
    %262 = vector.broadcast %cst_128 : f32 to vector<16x512xf32>
    %263 = arith.select %260, %261, %262 : vector<16x512xi1>, vector<16x512xf32>
    %264 = math.absf %258 : vector<16x512xf32>
    %cst_129 = arith.constant 0.327591091 : f32
    %265 = vector.broadcast %cst_129 : f32 to vector<16x512xf32>
    %266 = arith.mulf %265, %264 : vector<16x512xf32>
    %cst_130 = arith.constant 1.000000e+00 : f32
    %267 = vector.broadcast %cst_130 : f32 to vector<16x512xf32>
    %268 = arith.addf %267, %266 : vector<16x512xf32>
    %cst_131 = arith.constant 1.000000e+00 : f32
    %269 = vector.broadcast %cst_131 : f32 to vector<16x512xf32>
    %270 = arith.divf %269, %268 : vector<16x512xf32>
    %cst_132 = arith.constant 1.06140542 : f32
    %271 = vector.broadcast %cst_132 : f32 to vector<16x512xf32>
    %272 = arith.mulf %271, %270 : vector<16x512xf32>
    %cst_133 = arith.constant -1.45315206 : f32
    %273 = vector.broadcast %cst_133 : f32 to vector<16x512xf32>
    %274 = arith.addf %272, %273 : vector<16x512xf32>
    %275 = arith.mulf %274, %270 : vector<16x512xf32>
    %cst_134 = arith.constant 1.42141378 : f32
    %276 = vector.broadcast %cst_134 : f32 to vector<16x512xf32>
    %277 = arith.addf %275, %276 : vector<16x512xf32>
    %278 = arith.mulf %277, %270 : vector<16x512xf32>
    %cst_135 = arith.constant -0.284496725 : f32
    %279 = vector.broadcast %cst_135 : f32 to vector<16x512xf32>
    %280 = arith.addf %278, %279 : vector<16x512xf32>
    %281 = arith.mulf %280, %270 : vector<16x512xf32>
    %cst_136 = arith.constant 0.254829586 : f32
    %282 = vector.broadcast %cst_136 : f32 to vector<16x512xf32>
    %283 = arith.addf %281, %282 : vector<16x512xf32>
    %284 = arith.mulf %283, %270 : vector<16x512xf32>
    %cst_137 = arith.constant 0.000000e+00 : f32
    %285 = vector.broadcast %cst_137 : f32 to vector<16x512xf32>
    %286 = arith.subf %285, %264 : vector<16x512xf32>
    %287 = arith.mulf %286, %264 : vector<16x512xf32>
    %288 = math.exp %287 : vector<16x512xf32>
    %289 = arith.mulf %284, %288 : vector<16x512xf32>
    %cst_138 = arith.constant 1.000000e+00 : f32
    %290 = vector.broadcast %cst_138 : f32 to vector<16x512xf32>
    %291 = arith.subf %290, %289 : vector<16x512xf32>
    %292 = arith.mulf %263, %291 : vector<16x512xf32>
    %cst_139 = arith.constant 1.000000e+00 : f32
    %293 = vector.broadcast %cst_139 : f32 to vector<16x512xf32>
    %294 = arith.addf %293, %292 : vector<16x512xf32>
    %295 = arith.mulf %256, %294 : vector<16x512xf32>
    %296 = arith.truncf %295 : vector<16x512xf32> to vector<16x512xbf16>
    %c1_140 = arith.constant 1 : index
    %c0_141 = arith.constant 0 : index
    %c0_142 = arith.constant 0 : index
    %297 = vector.load %arg13[%c1_140, %c0_141, %c0_142] : memref<2x512x128xbf16, #tpu.memory_space<vmem>>, vector<1x512x128xbf16>
    %298 = vector.shape_cast %297 : vector<1x512x128xbf16> to vector<512x128xbf16>
    %cst_143 = arith.constant dense<0.000000e+00> : vector<16x128xf32>
    %299 = tpu.matmul %296, %298, %cst_143 {dimension_numbers = #tpu.dot_dimension_numbers<[1], [0], [0], [1], [0, 0, 1, 1], [], []>} : vector<16x512xbf16>, vector<512x128xbf16>, vector<16x128xf32> -> vector<16x128xf32>
    %c1_144 = arith.constant 1 : index
    %c0_145 = arith.constant 0 : index
    %300 = vector.load %arg14[%c1_144, %c0_145] : memref<2x128xf32, #tpu.memory_space<vmem>>, vector<1x128xf32>
    %301 = vector.shape_cast %300 : vector<1x128xf32> to vector<128xf32>
    %302 = vector.shape_cast %301 : vector<128xf32> to vector<1x128xf32>
    %303 = vector.broadcast %302 : vector<1x128xf32> to vector<16x128xf32>
    %304 = arith.addf %299, %303 : vector<16x128xf32>
    %305 = arith.addf %219, %304 : vector<16x128xf32>
    %c0_146 = arith.constant 0 : index
    %c0_147 = arith.constant 0 : index
    %c0_148 = arith.constant 0 : index
    %306 = vector.load %arg15[%c0_146, %c0_147, %c0_148] : memref<1x16x128xf32, #tpu.memory_space<vmem>>, vector<1x16x128xf32>
    %307 = vector.shape_cast %306 : vector<1x16x128xf32> to vector<16x128xf32>
    %308 = vector.shape_cast %305 : vector<16x128xf32> to vector<1x16x128xf32>
    tpu.vector_store %arg15[%c0_146, %c0_147, %c0_148], %308 {strides = array<i32>} : memref<1x16x128xf32, #tpu.memory_space<vmem>>, vector<1x16x128xf32>,
    return
  }
  func.func @transform_0(%arg0: i32) -> (i32, i32, i32) {
    %c0_i32 = arith.constant 0 : i32
    %c0_i32_0 = arith.constant 0 : i32
    %c0_i32_1 = arith.constant 0 : i32
    return %arg0, %c0_i32, %c0_i32_0 : i32, i32, i32
  }
  func.func @transform_1(%arg0: i32) -> (i32, i32) {
    %c0_i32 = arith.constant 0 : i32
    %c0_i32_0 = arith.constant 0 : i32
    %c0_i32_1 = arith.constant 0 : i32
    return %c0_i32, %c0_i32_0 : i32, i32
  }
  func.func @transform_2(%arg0: i32) -> (i32, i32) {
    %c0_i32 = arith.constant 0 : i32
    %c0_i32_0 = arith.constant 0 : i32
    %c0_i32_1 = arith.constant 0 : i32
    return %c0_i32, %c0_i32_0 : i32, i32
  }
  func.func @transform_3(%arg0: i32) -> (i32, i32, i32, i32) {
    %c0_i32 = arith.constant 0 : i32
    %c0_i32_0 = arith.constant 0 : i32
    %c0_i32_1 = arith.constant 0 : i32
    %c0_i32_2 = arith.constant 0 : i32
    %c0_i32_3 = arith.constant 0 : i32
    return %c0_i32, %c0_i32_0, %c0_i32_1, %c0_i32_2 : i32, i32, i32, i32
  }
  func.func @transform_4(%arg0: i32) -> (i32, i32, i32, i32) {
    %c0_i32 = arith.constant 0 : i32
    %c0_i32_0 = arith.constant 0 : i32
    %c0_i32_1 = arith.constant 0 : i32
    %c0_i32_2 = arith.constant 0 : i32
    %c0_i32_3 = arith.constant 0 : i32
    return %c0_i32, %c0_i32_0, %c0_i32_1, %c0_i32_2 : i32, i32, i32, i32
  }
  func.func @transform_5(%arg0: i32) -> (i32, i32, i32, i32) {
    %c0_i32 = arith.constant 0 : i32
    %c0_i32_0 = arith.constant 0 : i32
    %c0_i32_1 = arith.constant 0 : i32
    %c0_i32_2 = arith.constant 0 : i32
    %c0_i32_3 = arith.constant 0 : i32
    return %c0_i32, %c0_i32_0, %c0_i32_1, %c0_i32_2 : i32, i32, i32, i32
  }
  func.func @transform_6(%arg0: i32) -> (i32, i32, i32, i32) {
    %c0_i32 = arith.constant 0 : i32
    %c0_i32_0 = arith.constant 0 : i32
    %c0_i32_1 = arith.constant 0 : i32
    %c0_i32_2 = arith.constant 0 : i32
    %c0_i32_3 = arith.constant 0 : i32
    return %c0_i32, %c0_i32_0, %c0_i32_1, %c0_i32_2 : i32, i32, i32, i32
  }
  func.func @transform_7(%arg0: i32) -> (i32, i32) {
    %c0_i32 = arith.constant 0 : i32
    %c0_i32_0 = arith.constant 0 : i32
    %c0_i32_1 = arith.constant 0 : i32
    return %c0_i32, %c0_i32_0 : i32, i32
  }
  func.func @transform_8(%arg0: i32) -> (i32, i32) {
    %c0_i32 = arith.constant 0 : i32
    %c0_i32_0 = arith.constant 0 : i32
    %c0_i32_1 = arith.constant 0 : i32
    return %c0_i32, %c0_i32_0 : i32, i32
  }
  func.func @transform_9(%arg0: i32) -> (i32, i32) {
    %c0_i32 = arith.constant 0 : i32
    %c0_i32_0 = arith.constant 0 : i32
    %c0_i32_1 = arith.constant 0 : i32
    return %c0_i32, %c0_i32_0 : i32, i32
  }
  func.func @transform_10(%arg0: i32) -> (i32, i32, i32) {
    %c0_i32 = arith.constant 0 : i32
    %c0_i32_0 = arith.constant 0 : i32
    %c0_i32_1 = arith.constant 0 : i32
    %c0_i32_2 = arith.constant 0 : i32
    return %c0_i32, %c0_i32_0, %c0_i32_1 : i32, i32, i32
  }
  func.func @transform_11(%arg0: i32) -> (i32, i32) {
    %c0_i32 = arith.constant 0 : i32
    %c0_i32_0 = arith.constant 0 : i32
    %c0_i32_1 = arith.constant 0 : i32
    return %c0_i32, %c0_i32_0 : i32, i32
  }
  func.func @transform_12(%arg0: i32) -> (i32, i32, i32) {
    %c0_i32 = arith.constant 0 : i32
    %c0_i32_0 = arith.constant 0 : i32
    %c0_i32_1 = arith.constant 0 : i32
    %c0_i32_2 = arith.constant 0 : i32
    return %c0_i32, %c0_i32_0, %c0_i32_1 : i32, i32, i32
  }
  func.func @transform_13(%arg0: i32) -> (i32, i32) {
    %c0_i32 = arith.constant 0 : i32
    %c0_i32_0 = arith.constant 0 : i32
    %c0_i32_1 = arith.constant 0 : i32
    return %c0_i32, %c0_i32_0 : i32, i32
  }
  func.func @transform_14(%arg0: i32) -> (i32, i32, i32) {
    %c0_i32 = arith.constant 0 : i32
    %c0_i32_0 = arith.constant 0 : i32
    %c0_i32_1 = arith.constant 0 : i32
    return %arg0, %c0_i32, %c0_i32_0 : i32, i32, i32
  }
}

</mosaic_0001>

<llo_original>
// kernel: tpu_custom_call.1
$region0: #{tpu_custom_call.1}
  #allocation0 [shape = 'u32[]', space=smem, size = 0x4, offset = 0x4, fixed_abs, tag = 'smem constant byte address 0x4 - core index']
  #allocation1 [shape = 'u32[72,128]{1,0:T(1,128)}', space=vmem, size = 0x9000, scoped, tag = 'internal scratch']
  %s0 = inlined_call_operand.vmem [shape: f32[2,16,128], index: 0, kind: input, shape index: {}]
  %s1 = inlined_call_operand.vmem [shape: f32[2,128], index: 1, kind: input, shape index: {}]
  %s2 = inlined_call_operand.vmem [shape: f32[2,128], index: 2, kind: input, shape index: {}]
  %s3 = inlined_call_operand.vmem [shape: bf16[2,4,128,32], index: 3, kind: input, shape index: {}]
  %s4 = inlined_call_operand.vmem [shape: bf16[2,4,128,32], index: 4, kind: input, shape index: {}]
  %s5 = inlined_call_operand.vmem [shape: bf16[2,4,128,32], index: 5, kind: input, shape index: {}]
  %s6 = inlined_call_operand.vmem [shape: bf16[2,4,32,128], index: 6, kind: input, shape index: {}]
  %s7 = inlined_call_operand.vmem [shape: f32[2,128], index: 7, kind: input, shape index: {}]
  %s8 = inlined_call_operand.vmem [shape: f32[2,128], index: 8, kind: input, shape index: {}]
  %s9 = inlined_call_operand.vmem [shape: f32[2,128], index: 9, kind: input, shape index: {}]
  %s10 = inlined_call_operand.vmem [shape: bf16[2,128,512], index: 10, kind: input, shape index: {}]
  %s11 = inlined_call_operand.vmem [shape: f32[2,512], index: 11, kind: input, shape index: {}]
  %s12 = inlined_call_operand.vmem [shape: bf16[2,512,128], index: 12, kind: input, shape index: {}]
  %s13 = inlined_call_operand.vmem [shape: f32[2,128], index: 13, kind: input, shape index: {}]
  %s14 = inlined_call_operand.hbm [shape: f32[2,16,128], index: 14, kind: output, shape index: {}]
  %s15 = sld [smem:[#allocation0]]
  $region89: #{tpu_custom_call.1} parent=0
    _
  %s17 = ssub.s32 1, %s15
  %s18 = scalar_select 0, %s17, %s15
  $region1: #{tpu_custom_call.1} parent=0
    #allocation2 [shape = 'u8[16384]{0}', space=vmem, size = 0x4000, scoped, tag = 'output window, operand 0']
    #allocation3 [shape = 's32[2]{0}', space=sflag, size = 0x8, scoped, tag = 'scoped memory for tpu_custom_call.1']
    %19 = vsyncpa [#allocation3], 0
    %s20 = scalar_lea.sflag [#allocation3], 1
    %21 = vsyncpa %s20, 0
    loop: start=0, step=1, limit=4
    $region2: #{tpu_custom_call.1} parent=1 // loop_pre_header
      _
    $region3: #{tpu_custom_call.1} parent=1 // loop_header
      %s23 = sphi 0, %s27
      %p24 = scmp.ge.s32.totalorder %s23, 4
      %s33 = sphi 0, %s35
      %s36 = sphi 0, %s33
      %s37 = sphi 0, %s36
      %s53 = sphi 0, %s37
      %s57 = sphi 0, %s57
      %s59 = sphi 0, %s57
      %s60 = sphi 0, %s59
      %s74 = sphi 0, %s60
      %s78 = sphi 0, %s78
      %s80 = sphi 0, %s78
      %s81 = sphi 0, %s80
      %s95 = sphi 0, %s81
      %s99 = sphi 0, %s99
      %s101 = sphi 0, %s99
      %s102 = sphi 0, %s101
      %s116 = sphi 0, %s102
      %s120 = sphi 0, %s120
      %s122 = sphi 0, %s120
      %s123 = sphi 0, %s122
      %s137 = sphi 0, %s123
      %s141 = sphi 0, %s141
      %s143 = sphi 0, %s141
      %s144 = sphi 0, %s143
      %s158 = sphi 0, %s144
      %s162 = sphi 0, %s162
      %s164 = sphi 0, %s162
      %s165 = sphi 0, %s164
      %s179 = sphi 0, %s165
      %s183 = sphi 0, %s183
      %s185 = sphi 0, %s183
      %s186 = sphi 0, %s185
      %s200 = sphi 0, %s186
      %s204 = sphi 0, %s204
      %s206 = sphi 0, %s204
      %s207 = sphi 0, %s206
      %s221 = sphi 0, %s207
      %s225 = sphi 0, %s225
      %s227 = sphi 0, %s225
      %s228 = sphi 0, %s227
      %s242 = sphi 0, %s228
      %s246 = sphi 0, %s246
      %s248 = sphi 0, %s246
      %s249 = sphi 0, %s248
      %s263 = sphi 0, %s249
      %s267 = sphi 0, %s267
      %s269 = sphi 0, %s267
      %s270 = sphi 0, %s269
      %s284 = sphi 0, %s270
      %s288 = sphi 0, %s288
      %s290 = sphi 0, %s288
      %s291 = sphi 0, %s290
      %s305 = sphi 0, %s291
      %s309 = sphi 0, %s309
      %s311 = sphi 0, %s309
      %s312 = sphi 0, %s311
      %s326 = sphi 0, %s312
      %s332 = sphi 0, %s334
      %s335 = sphi 0, %s332
      %s336 = sphi 0, %s335
      %s352 = sphi 0, %s336
    $region4: #{tpu_custom_call.1} parent=1 // loop_header_branch
      %26 = sbr.rel (%p24) target = $region8
    $region5: #{tpu_custom_call.1} parent=1 // loop_body
      %s28 = ssub.s32 %s23, 1
      %s29 = ssub.s32 %s23, 2
      %s30 = sadd.s32 %s23, 1
      %s31 = ssub.s32 %s23, %s30
      %p32 = scmp.eq.s32.totalorder %s31, 0
      %s34 = sadd.s32 %s33, 1
      %s35 = scalar_select %p32, %s33, %s34
      %p38 = pneg %p32
      %p39 = scmp.eq.s32.totalorder %s23, 1
      %p40 = por %p38, %p39
      %p41 = scmp.ne.s32.totalorder %s33, %s36
      %p42 = scmp.eq.s32.totalorder %s23, 0
      %p43 = por %p41, %p42
      %p44 = scmp.ne.s32.totalorder %s33, %s36
      %p45 = scmp.eq.s32.totalorder %s28, 1
      %p46 = por %p44, %p45
      %p47 = scmp.ne.s32.totalorder %s36, %s37
      %p48 = scmp.eq.s32.totalorder %s28, 0
      %p49 = por %p47, %p48
      %p50 = scmp.ne.s32.totalorder %s36, %s37
      %p51 = scmp.eq.s32.totalorder %s29, 1
      %p52 = por %p50, %p51
      %p54 = scmp.ne.s32.totalorder %s37, %s53
      %p55 = scmp.eq.s32.totalorder %s29, 0
      %p56 = por %p54, %p55
      %s58 = sadd.s32 %s57, 1
      %p61 = scmp.eq.s32.totalorder %s23, 1
      %p62 = scmp.ne.s32.totalorder %s57, %s59
      %p63 = scmp.eq.s32.totalorder %s23, 0
      %p64 = por %p62, %p63
      %p65 = scmp.ne.s32.totalorder %s57, %s59
      %p66 = scmp.eq.s32.totalorder %s28, 1
      %p67 = por %p65, %p66
      %p68 = scmp.ne.s32.totalorder %s59, %s60
      %p69 = scmp.eq.s32.totalorder %s28, 0
      %p70 = por %p68, %p69
      %p71 = scmp.ne.s32.totalorder %s59, %s60
      %p72 = scmp.eq.s32.totalorder %s29, 1
      %p73 = por %p71, %p72
      %p75 = scmp.ne.s32.totalorder %s60, %s74
      %p76 = scmp.eq.s32.totalorder %s29, 0
      %p77 = por %p75, %p76
      %s79 = sadd.s32 %s78, 1
      %p82 = scmp.eq.s32.totalorder %s23, 1
      %p83 = scmp.ne.s32.totalorder %s78, %s80
      %p84 = scmp.eq.s32.totalorder %s23, 0
      %p85 = por %p83, %p84
      %p86 = scmp.ne.s32.totalorder %s78, %s80
      %p87 = scmp.eq.s32.totalorder %s28, 1
      %p88 = por %p86, %p87
      %p89 = scmp.ne.s32.totalorder %s80, %s81
      %p90 = scmp.eq.s32.totalorder %s28, 0
      %p91 = por %p89, %p90
      %p92 = scmp.ne.s32.totalorder %s80, %s81
      %p93 = scmp.eq.s32.totalorder %s29, 1
      %p94 = por %p92, %p93
      %p96 = scmp.ne.s32.totalorder %s81, %s95
      %p97 = scmp.eq.s32.totalorder %s29, 0
      %p98 = por %p96, %p97
      %s100 = sadd.s32 %s99, 1
      %p103 = scmp.eq.s32.totalorder %s23, 1
      %p104 = scmp.ne.s32.totalorder %s99, %s101
      %p105 = scmp.eq.s32.totalorder %s23, 0
      %p106 = por %p104, %p105
      %p107 = scmp.ne.s32.totalorder %s99, %s101
      %p108 = scmp.eq.s32.totalorder %s28, 1
      %p109 = por %p107, %p108
      %p110 = scmp.ne.s32.totalorder %s101, %s102
      %p111 = scmp.eq.s32.totalorder %s28, 0
      %p112 = por %p110, %p111
      %p113 = scmp.ne.s32.totalorder %s101, %s102
      %p114 = scmp.eq.s32.totalorder %s29, 1
      %p115 = por %p113, %p114
      %p117 = scmp.ne.s32.totalorder %s102, %s116
      %p118 = scmp.eq.s32.totalorder %s29, 0
      %p119 = por %p117, %p118
      %s121 = sadd.s32 %s120, 1
      %p124 = scmp.eq.s32.totalorder %s23, 1
      %p125 = scmp.ne.s32.totalorder %s120, %s122
      %p126 = scmp.eq.s32.totalorder %s23, 0
      %p127 = por %p125, %p126
      %p128 = scmp.ne.s32.totalorder %s120, %s122
      %p129 = scmp.eq.s32.totalorder %s28, 1
      %p130 = por %p128, %p129
      %p131 = scmp.ne.s32.totalorder %s122, %s123
      %p132 = scmp.eq.s32.totalorder %s28, 0
      %p133 = por %p131, %p132
      %p134 = scmp.ne.s32.totalorder %s122, %s123
      %p135 = scmp.eq.s32.totalorder %s29, 1
      %p136 = por %p134, %p135
      %p138 = scmp.ne.s32.totalorder %s123, %s137
      %p139 = scmp.eq.s32.totalorder %s29, 0
      %p140 = por %p138, %p139
      %s142 = sadd.s32 %s141, 1
      %p145 = scmp.eq.s32.totalorder %s23, 1
      %p146 = scmp.ne.s32.totalorder %s141, %s143
      %p147 = scmp.eq.s32.totalorder %s23, 0
      %p148 = por %p146, %p147
      %p149 = scmp.ne.s32.totalorder %s141, %s143
      %p150 = scmp.eq.s32.totalorder %s28, 1
      %p151 = por %p149, %p150
      %p152 = scmp.ne.s32.totalorder %s143, %s144
      %p153 = scmp.eq.s32.totalorder %s28, 0
      %p154 = por %p152, %p153
      %p155 = scmp.ne.s32.totalorder %s143, %s144
      %p156 = scmp.eq.s32.totalorder %s29, 1
      %p157 = por %p155, %p156
      %p159 = scmp.ne.s32.totalorder %s144, %s158
      %p160 = scmp.eq.s32.totalorder %s29, 0
      %p161 = por %p159, %p160
      %s163 = sadd.s32 %s162, 1
      %p166 = scmp.eq.s32.totalorder %s23, 1
      %p167 = scmp.ne.s32.totalorder %s162, %s164
      %p168 = scmp.eq.s32.totalorder %s23, 0
      %p169 = por %p167, %p168
      %p170 = scmp.ne.s32.totalorder %s162, %s164
      %p171 = scmp.eq.s32.totalorder %s28, 1
      %p172 = por %p170, %p171
      %p173 = scmp.ne.s32.totalorder %s164, %s165
      %p174 = scmp.eq.s32.totalorder %s28, 0
      %p175 = por %p173, %p174
      %p176 = scmp.ne.s32.totalorder %s164, %s165
      %p177 = scmp.eq.s32.totalorder %s29, 1
      %p178 = por %p176, %p177
      %p180 = scmp.ne.s32.totalorder %s165, %s179
      %p181 = scmp.eq.s32.totalorder %s29, 0
      %p182 = por %p180, %p181
      %s184 = sadd.s32 %s183, 1
      %p187 = scmp.eq.s32.totalorder %s23, 1
      %p188 = scmp.ne.s32.totalorder %s183, %s185
      %p189 = scmp.eq.s32.totalorder %s23, 0
      %p190 = por %p188, %p189
      %p191 = scmp.ne.s32.totalorder %s183, %s185
      %p192 = scmp.eq.s32.totalorder %s28, 1
      %p193 = por %p191, %p192
      %p194 = scmp.ne.s32.totalorder %s185, %s186
      %p195 = scmp.eq.s32.totalorder %s28, 0
      %p196 = por %p194, %p195
      %p197 = scmp.ne.s32.totalorder %s185, %s186
      %p198 = scmp.eq.s32.totalorder %s29, 1
      %p199 = por %p197, %p198
      %p201 = scmp.ne.s32.totalorder %s186, %s200
      %p202 = scmp.eq.s32.totalorder %s29, 0
      %p203 = por %p201, %p202
      %s205 = sadd.s32 %s204, 1
      %p208 = scmp.eq.s32.totalorder %s23, 1
      %p209 = scmp.ne.s32.totalorder %s204, %s206
      %p210 = scmp.eq.s32.totalorder %s23, 0
      %p211 = por %p209, %p210
      %p212 = scmp.ne.s32.totalorder %s204, %s206
      %p213 = scmp.eq.s32.totalorder %s28, 1
      %p214 = por %p212, %p213
      %p215 = scmp.ne.s32.totalorder %s206, %s207
      %p216 = scmp.eq.s32.totalorder %s28, 0
      %p217 = por %p215, %p216
      %p218 = scmp.ne.s32.totalorder %s206, %s207
      %p219 = scmp.eq.s32.totalorder %s29, 1
      %p220 = por %p218, %p219
      %p222 = scmp.ne.s32.totalorder %s207, %s221
      %p223 = scmp.eq.s32.totalorder %s29, 0
      %p224 = por %p222, %p223
      %s226 = sadd.s32 %s225, 1
      %p229 = scmp.eq.s32.totalorder %s23, 1
      %p230 = scmp.ne.s32.totalorder %s225, %s227
      %p231 = scmp.eq.s32.totalorder %s23, 0
      %p232 = por %p230, %p231
      %p233 = scmp.ne.s32.totalorder %s225, %s227
      %p234 = scmp.eq.s32.totalorder %s28, 1
      %p235 = por %p233, %p234
      %p236 = scmp.ne.s32.totalorder %s227, %s228
      %p237 = scmp.eq.s32.totalorder %s28, 0
      %p238 = por %p236, %p237
      %p239 = scmp.ne.s32.totalorder %s227, %s228
      %p240 = scmp.eq.s32.totalorder %s29, 1
      %p241 = por %p239, %p240
      %p243 = scmp.ne.s32.totalorder %s228, %s242
      %p244 = scmp.eq.s32.totalorder %s29, 0
      %p245 = por %p243, %p244
      %s247 = sadd.s32 %s246, 1
      %p250 = scmp.eq.s32.totalorder %s23, 1
      %p251 = scmp.ne.s32.totalorder %s246, %s248
      %p252 = scmp.eq.s32.totalorder %s23, 0
      %p253 = por %p251, %p252
      %p254 = scmp.ne.s32.totalorder %s246, %s248
      %p255 = scmp.eq.s32.totalorder %s28, 1
      %p256 = por %p254, %p255
      %p257 = scmp.ne.s32.totalorder %s248, %s249
      %p258 = scmp.eq.s32.totalorder %s28, 0
      %p259 = por %p257, %p258
      %p260 = scmp.ne.s32.totalorder %s248, %s249
      %p261 = scmp.eq.s32.totalorder %s29, 1
      %p262 = por %p260, %p261
      %p264 = scmp.ne.s32.totalorder %s249, %s263
      %p265 = scmp.eq.s32.totalorder %s29, 0
      %p266 = por %p264, %p265
      %s268 = sadd.s32 %s267, 1
      %p271 = scmp.eq.s32.totalorder %s23, 1
      %p272 = scmp.ne.s32.totalorder %s267, %s269
      %p273 = scmp.eq.s32.totalorder %s23, 0
      %p274 = por %p272, %p273
      %p275 = scmp.ne.s32.totalorder %s267, %s269
      %p276 = scmp.eq.s32.totalorder %s28, 1
      %p277 = por %p275, %p276
      %p278 = scmp.ne.s32.totalorder %s269, %s270
      %p279 = scmp.eq.s32.totalorder %s28, 0
      %p280 = por %p278, %p279
      %p281 = scmp.ne.s32.totalorder %s269, %s270
      %p282 = scmp.eq.s32.totalorder %s29, 1
      %p283 = por %p281, %p282
      %p285 = scmp.ne.s32.totalorder %s270, %s284
      %p286 = scmp.eq.s32.totalorder %s29, 0
      %p287 = por %p285, %p286
      %s289 = sadd.s32 %s288, 1
      %p292 = scmp.eq.s32.totalorder %s23, 1
      %p293 = scmp.ne.s32.totalorder %s288, %s290
      %p294 = scmp.eq.s32.totalorder %s23, 0
      %p295 = por %p293, %p294
      %p296 = scmp.ne.s32.totalorder %s288, %s290
      %p297 = scmp.eq.s32.totalorder %s28, 1
      %p298 = por %p296, %p297
      %p299 = scmp.ne.s32.totalorder %s290, %s291
      %p300 = scmp.eq.s32.totalorder %s28, 0
      %p301 = por %p299, %p300
      %p302 = scmp.ne.s32.totalorder %s290, %s291
      %p303 = scmp.eq.s32.totalorder %s29, 1
      %p304 = por %p302, %p303
      %p306 = scmp.ne.s32.totalorder %s291, %s305
      %p307 = scmp.eq.s32.totalorder %s29, 0
      %p308 = por %p306, %p307
      %s310 = sadd.s32 %s309, 1
      %p313 = scmp.eq.s32.totalorder %s23, 1
      %p314 = scmp.ne.s32.totalorder %s309, %s311
      %p315 = scmp.eq.s32.totalorder %s23, 0
      %p316 = por %p314, %p315
      %p317 = scmp.ne.s32.totalorder %s309, %s311
      %p318 = scmp.eq.s32.totalorder %s28, 1
      %p319 = por %p317, %p318
      %p320 = scmp.ne.s32.totalorder %s311, %s312
      %p321 = scmp.eq.s32.totalorder %s28, 0
      %p322 = por %p320, %p321
      %p323 = scmp.ne.s32.totalorder %s311, %s312
      %p324 = scmp.eq.s32.totalorder %s29, 1
      %p325 = por %p323, %p324
      %p327 = scmp.ne.s32.totalorder %s312, %s326
      %p328 = scmp.eq.s32.totalorder %s29, 0
      %p329 = por %p327, %p328
      %s330 = ssub.s32 %s23, %s30
      %p331 = scmp.eq.s32.totalorder %s330, 0
      %s333 = sadd.s32 %s332, 1
      %s334 = scalar_select %p331, %s332, %s333
      %p337 = pneg %p331
      %p338 = scmp.eq.s32.totalorder %s23, 1
      %p339 = por %p337, %p338
      %p340 = scmp.ne.s32.totalorder %s332, %s335
      %p341 = scmp.eq.s32.totalorder %s23, 0
      %p342 = por %p340, %p341
      %p343 = scmp.ne.s32.totalorder %s332, %s335
      %p344 = scmp.eq.s32.totalorder %s28, 1
      %p345 = por %p343, %p344
      %p346 = scmp.ne.s32.totalorder %s335, %s336
      %p347 = scmp.eq.s32.totalorder %s28, 0
      %p348 = por %p346, %p347
      %p349 = scmp.ne.s32.totalorder %s335, %s336
      %p350 = scmp.eq.s32.totalorder %s29, 1
      %p351 = por %p349, %p350
      %p353 = scmp.ne.s32.totalorder %s336, %s352
      %p354 = scmp.eq.s32.totalorder %s29, 0
      %p355 = por %p353, %p354
      %p356 = scmp.le.s32.totalorder 1, %s23
      %p357 = scmp.lt.s32.totalorder %s23, 3
      %p358 = pnand %p356, %p357
      %p359 = pneg %p358
      // Predicated region
      $region9: #{tpu_custom_call.1} parent=5 // pred_check
        _
      $region10: #{tpu_custom_call.1} parent=5 // pred_check_branch
        %361 = sbr.rel (%p358) target = $region12
      $region11: #{tpu_custom_call.1} parent=5 // pred_region
        %s362 = ssub.s32 %s23, 1
        // Predicated region
        $region13: #{tpu_custom_call.1} parent=11 // pred_check
          %p363 = pneg %p70
        $region14: #{tpu_custom_call.1} parent=11 // pred_check_branch
          %365 = sbr.rel (%p363) target = $region16
        $region15: #{tpu_custom_call.1} parent=11 // pred_region
          _
        $region16: #{tpu_custom_call.1} parent=11 // pred_fallthru
          _
        // Predicated region
        $region17: #{tpu_custom_call.1} parent=11 // pred_check
          %p366 = pneg %p91
        $region18: #{tpu_custom_call.1} parent=11 // pred_check_branch
          %368 = sbr.rel (%p366) target = $region20
        $region19: #{tpu_custom_call.1} parent=11 // pred_region
          _
        $region20: #{tpu_custom_call.1} parent=11 // pred_fallthru
          _
        // Predicated region
        $region21: #{tpu_custom_call.1} parent=11 // pred_check
          %p369 = pneg %p112
        $region22: #{tpu_custom_call.1} parent=11 // pred_check_branch
          %371 = sbr.rel (%p369) target = $region24
        $region23: #{tpu_custom_call.1} parent=11 // pred_region
          _
        $region24: #{tpu_custom_call.1} parent=11 // pred_fallthru
          _
        // Predicated region
        $region25: #{tpu_custom_call.1} parent=11 // pred_check
          %p372 = pneg %p133
        $region26: #{tpu_custom_call.1} parent=11 // pred_check_branch
          %374 = sbr.rel (%p372) target = $region28
        $region27: #{tpu_custom_call.1} parent=11 // pred_region
          _
        $region28: #{tpu_custom_call.1} parent=11 // pred_fallthru
          _
        // Predicated region
        $region29: #{tpu_custom_call.1} parent=11 // pred_check
          %p375 = pneg %p154
        $region30: #{tpu_custom_call.1} parent=11 // pred_check_branch
          %377 = sbr.rel (%p375) target = $region32
        $region31: #{tpu_custom_call.1} parent=11 // pred_region
          _
        $region32: #{tpu_custom_call.1} parent=11 // pred_fallthru
          _
        // Predicated region
        $region33: #{tpu_custom_call.1} parent=11 // pred_check
          %p378 = pneg %p175
        $region34: #{tpu_custom_call.1} parent=11 // pred_check_branch
          %380 = sbr.rel (%p378) target = $region36
        $region35: #{tpu_custom_call.1} parent=11 // pred_region
          _
        $region36: #{tpu_custom_call.1} parent=11 // pred_fallthru
          _
        // Predicated region
        $region37: #{tpu_custom_call.1} parent=11 // pred_check
          %p381 = pneg %p196
        $region38: #{tpu_custom_call.1} parent=11 // pred_check_branch
          %383 = sbr.rel (%p381) target = $region40
        $region39: #{tpu_custom_call.1} parent=11 // pred_region
          _
        $region40: #{tpu_custom_call.1} parent=11 // pred_fallthru
          _
        // Predicated region
        $region41: #{tpu_custom_call.1} parent=11 // pred_check
          %p384 = pneg %p217
        $region42: #{tpu_custom_call.1} parent=11 // pred_check_branch
          %386 = sbr.rel (%p384) target = $region44
        $region43: #{tpu_custom_call.1} parent=11 // pred_region
          _
        $region44: #{tpu_custom_call.1} parent=11 // pred_fallthru
          _
        // Predicated region
        $region45: #{tpu_custom_call.1} parent=11 // pred_check
          %p387 = pneg %p238
        $region46: #{tpu_custom_call.1} parent=11 // pred_check_branch
          %389 = sbr.rel (%p387) target = $region48
        $region47: #{tpu_custom_call.1} parent=11 // pred_region
          _
        $region48: #{tpu_custom_call.1} parent=11 // pred_fallthru
          _
        // Predicated region
        $region49: #{tpu_custom_call.1} parent=11 // pred_check
          %p390 = pneg %p259
        $region50: #{tpu_custom_call.1} parent=11 // pred_check_branch
          %392 = sbr.rel (%p390) target = $region52
        $region51: #{tpu_custom_call.1} parent=11 // pred_region
          _
        $region52: #{tpu_custom_call.1} parent=11 // pred_fallthru
          _
        // Predicated region
        $region53: #{tpu_custom_call.1} parent=11 // pred_check
          %p393 = pneg %p280
        $region54: #{tpu_custom_call.1} parent=11 // pred_check_branch
          %395 = sbr.rel (%p393) target = $region56
        $region55: #{tpu_custom_call.1} parent=11 // pred_region
          _
        $region56: #{tpu_custom_call.1} parent=11 // pred_fallthru
          _
        // Predicated region
        $region57: #{tpu_custom_call.1} parent=11 // pred_check
          %p396 = pneg %p301
        $region58: #{tpu_custom_call.1} parent=11 // pred_check_branch
          %398 = sbr.rel (%p396) target = $region60
        $region59: #{tpu_custom_call.1} parent=11 // pred_region
          _
        $region60: #{tpu_custom_call.1} parent=11 // pred_fallthru
          _
        // Predicated region
        $region61: #{tpu_custom_call.1} parent=11 // pred_check
          %p399 = pneg %p322
        $region62: #{tpu_custom_call.1} parent=11 // pred_check_branch
          %401 = sbr.rel (%p399) target = $region64
        $region63: #{tpu_custom_call.1} parent=11 // pred_region
          _
        $region64: #{tpu_custom_call.1} parent=11 // pred_fallthru
          _
      $region12: #{tpu_custom_call.1} parent=5 // pred_fallthru
        _
      %p402 = scmp.lt.s32.totalorder %s23, 2
      // Predicated region
      $region65: #{tpu_custom_call.1} parent=5 // pred_check
        %p403 = pneg %p402
      $region66: #{tpu_custom_call.1} parent=5 // pred_check_branch
        %405 = sbr.rel (%p403) target = $region68
      $region67: #{tpu_custom_call.1} parent=5 // pred_region
        // Predicated region
        $region69: #{tpu_custom_call.1} parent=67 // pred_check
          %p406 = pneg %p43
        $region70: #{tpu_custom_call.1} parent=67 // pred_check_branch
          %408 = sbr.rel (%p406) target = $region72
        $region71: #{tpu_custom_call.1} parent=67 // pred_region
          %p409 = scmp.lt.s32.totalorder %s23, 1
          %s410 = scalar_select %p409, %s23, 1
          %s411 = smul.addr %s410, 2
          %s412 = smul.addr %s411, 8
          %s413 = scalar_lea.vmem %s0, %s412
        $region72: #{tpu_custom_call.1} parent=67 // pred_fallthru
          _
      $region68: #{tpu_custom_call.1} parent=5 // pred_fallthru
        _
      %p414 = scmp.le.s32.totalorder 1, %s23
      %p415 = scmp.lt.s32.totalorder %s23, 3
      %p416 = pnand %p414, %p415
      %p417 = pneg %p416
      // Predicated region
      $region73: #{tpu_custom_call.1} parent=5 // pred_check
        _
      $region74: #{tpu_custom_call.1} parent=5 // pred_check_branch
        %419 = sbr.rel (%p416) target = $region76
      $region75: #{tpu_custom_call.1} parent=5 // pred_region
        %s420 = ssub.s32 %s23, 1
        %p421 = scmp.lt.s32.totalorder %s28, 1
        %s422 = scalar_select %p421, %s28, 1
        %s423 = smul.addr %s422, 2
        %s424 = smul.addr %s423, 8
        %s425 = scalar_lea.vmem %s0, %s424
        %p426 = pneg %p49
        %p427 = pneg %p46
        %p428 = pneg %p70
        %p429 = pneg %p67
        %p430 = pneg %p91
        %p431 = pneg %p88
        %p432 = pneg %p112
        %p433 = pneg %p109
        %p434 = pneg %p133
        %p435 = pneg %p130
        %p436 = pneg %p154
        %p437 = pneg %p151
        %p438 = pneg %p175
        %p439 = pneg %p172
        %p440 = pneg %p196
        %p441 = pneg %p193
        %p442 = pneg %p217
        %p443 = pneg %p214
        %p444 = pneg %p238
        %p445 = pneg %p235
        %p446 = pneg %p259
        %p447 = pneg %p256
        %p448 = pneg %p280
        %p449 = pneg %p277
        %p450 = pneg %p301
        %p451 = pneg %p298
        %p452 = pneg %p322
        %p453 = pneg %p319
        %p454 = pneg %p348
        %p455 = pneg %p345
        %s456 = sand.u32 %s335, 1
        %s457 = scalar_lea.sflag [#allocation3], %s456
        %s458 = sand.u32 %s335, 1
        %s459 = smul.addr %s458, 16
        %s460 = scalar_lea.vmem [#allocation2], %s459
        %p461 = scmp.lt.s32.totalorder %s28, 1
        %s462 = scalar_select %p461, %s28, 1
        %s463 = smul.addr %s462, 2
        %s464 = smul.addr %s463, 8
        %s465 = scalar_lea.vmem %s0, %s464
        %v467 = vld [vmem:[%s465] sm:$0xff]
        %v468 = vld [vmem:[%s465 + $0x8] sm:$0xff]
        %v469 = vld [vmem:[%s1] sm:$0x1]
        %v470 = vld [vmem:[%s2] sm:$0x1]
        %471 = vadd.xlane.f32.xlu0 %v467
        %v472 = vpop.xlane.xlu0 %471
        %473 = vadd.xlane.f32.xlu0 %v468
        %v474 = vpop.xlane.xlu0 %473
        %v475 = vrcp.pop 128.0
        %v476 = vmul.f32 128.0, %v475
        %v477 = vsub.f32 1.0, %v476
        %v478 = vmul.f32 %v475, %v477
        %v479 = vadd.f32 %v475, %v478
        %vm480 = vweird.f32 %v475
        %v481 = vsel %vm480, %v475, %v479
        %v482 = vmul.f32 %v472, %v481
        %v483 = vmul.f32 %v474, %v481
        %v484 = vsub.f32 %v467, %v482
        %v485 = vsub.f32 %v468, %v483
        %v486 = vmul.f32 %v484, %v484
        %v487 = vmul.f32 %v485, %v485
        %488 = vadd.xlane.f32.xlu0 %v486
        %v489 = vpop.xlane.xlu0 %488
        %490 = vadd.xlane.f32.xlu0 %v487
        %v491 = vpop.xlane.xlu0 %490
        %v492 = vmul.f32 %v489, %v481
        %v493 = vmul.f32 %v491, %v481
        %v494 = vadd.f32 %v492, 1e-05
        %v495 = vadd.f32 %v493, 1e-05
        %v496 = vrsqrt.pop %v494
        %v497 = vmul.f32 %v496, %v494
        %v498 = vmul.f32 %v497, %v496
        %v499 = vmul.f32 0.5, %v498
        %v500 = vsub.f32 1.5, %v499
        %v501 = vmul.f32 %v496, %v500
        %vm502 = vweird.f32 %v494
        %vm503 = vweird.f32 %v496
        %vm504 = vmor %vm502, %vm503
        %v505 = vsel %vm504, %v496, %v501
        %v506 = vrsqrt.pop %v495
        %v507 = vmul.f32 %v506, %v495
        %v508 = vmul.f32 %v507, %v506
        %v509 = vmul.f32 0.5, %v508
        %v510 = vsub.f32 1.5, %v509
        %v511 = vmul.f32 %v506, %v510
        %vm512 = vweird.f32 %v495
        %vm513 = vweird.f32 %v506
        %vm514 = vmor %vm512, %vm513
        %v515 = vsel %vm514, %v506, %v511
        %v516 = vmul.f32 %v484, %v505
        %v517 = vmul.f32 %v485, %v515
        %v518 = vperm.slane %v469, 0
        %v519 = vmul.f32 %v516, %v518
        %v520 = vmul.f32 %v517, %v518
        %v521 = vperm.slane %v470, 0
        %v522 = vadd.f32 %v519, %v521
        %v523 = vadd.f32 %v520, %v521
        %v524 = vpack.c.bf16 %v522, %v522
        %v525 = vpack.c.bf16 %v523, %v523
        %v526 = vld [vmem:[%s3] sm:$0xf]
        %v527 = vld [vmem:[%s3 + $0x4] sm:$0xf]
        %v528 = vld [vmem:[%s3 + $0x8] sm:$0xf]
        %v529 = vld [vmem:[%s3 + $0xc] sm:$0xf]
        %v530 = vld [vmem:[%s3 + $0x10] sm:$0xf]
        %v531 = vld [vmem:[%s3 + $0x14] sm:$0xf]
        %v532 = vld [vmem:[%s3 + $0x18] sm:$0xf]
        %v533 = vld [vmem:[%s3 + $0x1c] sm:$0xf]
        %v534 = vld [vmem:[%s3 + $0x20] sm:$0xf]
        %v535 = vld [vmem:[%s3 + $0x24] sm:$0xf]
        %v536 = vld [vmem:[%s3 + $0x28] sm:$0xf]
        %v537 = vld [vmem:[%s3 + $0x2c] sm:$0xf]
        %v538 = vld [vmem:[%s3 + $0x30] sm:$0xf]
        %v539 = vld [vmem:[%s3 + $0x34] sm:$0xf]
        %v540 = vld [vmem:[%s3 + $0x38] sm:$0xf]
        %v541 = vld [vmem:[%s3 + $0x3c] sm:$0xf]
        %v542 = vld [vmem:[%s3 + $0x40] sm:$0xf]
        %v543 = vld [vmem:[%s3 + $0x44] sm:$0xf]
        %v544 = vld [vmem:[%s3 + $0x48] sm:$0xf]
        %v545 = vld [vmem:[%s3 + $0x4c] sm:$0xf]
        %v546 = vld [vmem:[%s3 + $0x50] sm:$0xf]
        %v547 = vld [vmem:[%s3 + $0x54] sm:$0xf]
        %v548 = vld [vmem:[%s3 + $0x58] sm:$0xf]
        %v549 = vld [vmem:[%s3 + $0x5c] sm:$0xf]
        %v550 = vld [vmem:[%s3 + $0x60] sm:$0xf]
        %v551 = vld [vmem:[%s3 + $0x64] sm:$0xf]
        %v552 = vld [vmem:[%s3 + $0x68] sm:$0xf]
        %v553 = vld [vmem:[%s3 + $0x6c] sm:$0xf]
        %v554 = vld [vmem:[%s3 + $0x70] sm:$0xf]
        %v555 = vld [vmem:[%s3 + $0x74] sm:$0xf]
        %v556 = vld [vmem:[%s3 + $0x78] sm:$0xf]
        %v557 = vld [vmem:[%s3 + $0x7c] sm:$0xf]
        %v558 = vld [vmem:[%s3 + $0x80] sm:$0xf]
        %v559 = vld [vmem:[%s3 + $0x84] sm:$0xf]
        %v560 = vld [vmem:[%s3 + $0x88] sm:$0xf]
        %v561 = vld [vmem:[%s3 + $0x8c] sm:$0xf]
        %v562 = vld [vmem:[%s3 + $0x90] sm:$0xf]
        %v563 = vld [vmem:[%s3 + $0x94] sm:$0xf]
        %v564 = vld [vmem:[%s3 + $0x98] sm:$0xf]
        %v565 = vld [vmem:[%s3 + $0x9c] sm:$0xf]
        %v566 = vld [vmem:[%s3 + $0xa0] sm:$0xf]
        %v567 = vld [vmem:[%s3 + $0xa4] sm:$0xf]
        %v568 = vld [vmem:[%s3 + $0xa8] sm:$0xf]
        %v569 = vld [vmem:[%s3 + $0xac] sm:$0xf]
        %v570 = vld [vmem:[%s3 + $0xb0] sm:$0xf]
        %v571 = vld [vmem:[%s3 + $0xb4] sm:$0xf]
        %v572 = vld [vmem:[%s3 + $0xb8] sm:$0xf]
        %v573 = vld [vmem:[%s3 + $0xbc] sm:$0xf]
        %v574 = vld [vmem:[%s3 + $0xc0] sm:$0xf]
        %v575 = vld [vmem:[%s3 + $0xc4] sm:$0xf]
        %v576 = vld [vmem:[%s3 + $0xc8] sm:$0xf]
        %v577 = vld [vmem:[%s3 + $0xcc] sm:$0xf]
        %v578 = vld [vmem:[%s3 + $0xd0] sm:$0xf]
        %v579 = vld [vmem:[%s3 + $0xd4] sm:$0xf]
        %v580 = vld [vmem:[%s3 + $0xd8] sm:$0xf]
        %v581 = vld [vmem:[%s3 + $0xdc] sm:$0xf]
        %v582 = vld [vmem:[%s3 + $0xe0] sm:$0xf]
        %v583 = vld [vmem:[%s3 + $0xe4] sm:$0xf]
        %v584 = vld [vmem:[%s3 + $0xe8] sm:$0xf]
        %v585 = vld [vmem:[%s3 + $0xec] sm:$0xf]
        %v586 = vld [vmem:[%s3 + $0xf0] sm:$0xf]
        %v587 = vld [vmem:[%s3 + $0xf4] sm:$0xf]
        %v588 = vld [vmem:[%s3 + $0xf8] sm:$0xf]
        %v589 = vld [vmem:[%s3 + $0xfc] sm:$0xf]
        %v592 = vunpack.c.l.b16 %v524
        %v593 = vunpack.c.l.b16 %v525
        %v594 = vpack.c.b16 %v593, %v592
        %v612 = vunpack.c.l.b16 %v526
        %v613 = vunpack.c.l.b16 %v527
        %v614 = vunpack.c.l.b16 %v528
        %v615 = vunpack.c.l.b16 %v529
        %v616 = vunpack.c.l.b16 %v530
        %v617 = vunpack.c.l.b16 %v531
        %v618 = vunpack.c.l.b16 %v532
        %v619 = vunpack.c.l.b16 %v533
        %v620 = vunpack.c.l.b16 %v534
        %v621 = vunpack.c.l.b16 %v535
        %v622 = vunpack.c.l.b16 %v536
        %v623 = vunpack.c.l.b16 %v537
        %v624 = vunpack.c.l.b16 %v538
        %v625 = vunpack.c.l.b16 %v539
        %v626 = vunpack.c.l.b16 %v540
        %v627 = vunpack.c.l.b16 %v541
        %v628 = vpack.c.b16 %v613, %v612
        %v629 = vpack.c.b16 %v615, %v614
        %v630 = vpack.c.b16 %v617, %v616
        %v631 = vpack.c.b16 %v619, %v618
        %v632 = vpack.c.b16 %v621, %v620
        %v633 = vpack.c.b16 %v623, %v622
        %v634 = vpack.c.b16 %v625, %v624
        %v635 = vpack.c.b16 %v627, %v626
        %644 = vmatpush.bf16.msra.mxu0 %v635
        %645 = vmatpush.bf16.msra.mxu0 %v634
        %646 = vmatpush.bf16.msra.mxu0 %v633
        %647 = vmatpush.bf16.msra.mxu0 %v632
        %648 = vmatpush.bf16.msra.mxu0 %v631
        %649 = vmatpush.bf16.msra.mxu0 %v630
        %650 = vmatpush.bf16.msra.mxu0 %v629
        %651 = vmatpush.bf16.msra.mxu0 %v628
        %652 = vmatmul.bf16.gmra.mxu0 %v594
        %v653 = vpop.f32.mrf.mxu0
        %v654 = vadd.f32 0.0, %v653
        %v655 = vpop.f32.mrf.mxu0
        %v656 = vadd.f32 0.0, %v655
        %657 = vdwg.mxu0
        %v674 = vunpack.c.l.b16 %v542
        %v675 = vunpack.c.l.b16 %v543
        %v676 = vunpack.c.l.b16 %v544
        %v677 = vunpack.c.l.b16 %v545
        %v678 = vunpack.c.l.b16 %v546
        %v679 = vunpack.c.l.b16 %v547
        %v680 = vunpack.c.l.b16 %v548
        %v681 = vunpack.c.l.b16 %v549
        %v682 = vunpack.c.l.b16 %v550
        %v683 = vunpack.c.l.b16 %v551
        %v684 = vunpack.c.l.b16 %v552
        %v685 = vunpack.c.l.b16 %v553
        %v686 = vunpack.c.l.b16 %v554
        %v687 = vunpack.c.l.b16 %v555
        %v688 = vunpack.c.l.b16 %v556
        %v689 = vunpack.c.l.b16 %v557
        %v690 = vpack.c.b16 %v675, %v674
        %v691 = vpack.c.b16 %v677, %v676
        %v692 = vpack.c.b16 %v679, %v678
        %v693 = vpack.c.b16 %v681, %v680
        %v694 = vpack.c.b16 %v683, %v682
        %v695 = vpack.c.b16 %v685, %v684
        %v696 = vpack.c.b16 %v687, %v686
        %v697 = vpack.c.b16 %v689, %v688
        %706 = vmatpush.bf16.msra.mxu0 %v697
        %707 = vmatpush.bf16.msra.mxu0 %v696
        %708 = vmatpush.bf16.msra.mxu0 %v695
        %709 = vmatpush.bf16.msra.mxu0 %v694
        %710 = vmatpush.bf16.msra.mxu0 %v693
        %711 = vmatpush.bf16.msra.mxu0 %v692
        %712 = vmatpush.bf16.msra.mxu0 %v691
        %713 = vmatpush.bf16.msra.mxu0 %v690
        %714 = vmatmul.bf16.gmra.mxu0 %v594
        %v715 = vpop.f32.mrf.mxu0
        %v716 = vadd.f32 0.0, %v715
        %v717 = vpop.f32.mrf.mxu0
        %v718 = vadd.f32 0.0, %v717
        %719 = vdwg.mxu0
        %v736 = vunpack.c.l.b16 %v558
        %v737 = vunpack.c.l.b16 %v559
        %v738 = vunpack.c.l.b16 %v560
        %v739 = vunpack.c.l.b16 %v561
        %v740 = vunpack.c.l.b16 %v562
        %v741 = vunpack.c.l.b16 %v563
        %v742 = vunpack.c.l.b16 %v564
        %v743 = vunpack.c.l.b16 %v565
        %v744 = vunpack.c.l.b16 %v566
        %v745 = vunpack.c.l.b16 %v567
        %v746 = vunpack.c.l.b16 %v568
        %v747 = vunpack.c.l.b16 %v569
        %v748 = vunpack.c.l.b16 %v570
        %v749 = vunpack.c.l.b16 %v571
        %v750 = vunpack.c.l.b16 %v572
        %v751 = vunpack.c.l.b16 %v573
        %v752 = vpack.c.b16 %v737, %v736
        %v753 = vpack.c.b16 %v739, %v738
        %v754 = vpack.c.b16 %v741, %v740
        %v755 = vpack.c.b16 %v743, %v742
        %v756 = vpack.c.b16 %v745, %v744
        %v757 = vpack.c.b16 %v747, %v746
        %v758 = vpack.c.b16 %v749, %v748
        %v759 = vpack.c.b16 %v751, %v750
        %768 = vmatpush.bf16.msra.mxu0 %v759
        %769 = vmatpush.bf16.msra.mxu0 %v758
        %770 = vmatpush.bf16.msra.mxu0 %v757
        %771 = vmatpush.bf16.msra.mxu0 %v756
        %772 = vmatpush.bf16.msra.mxu0 %v755
        %773 = vmatpush.bf16.msra.mxu0 %v754
        %774 = vmatpush.bf16.msra.mxu0 %v753
        %775 = vmatpush.bf16.msra.mxu0 %v752
        %776 = vmatmul.bf16.gmra.mxu0 %v594
        %v777 = vpop.f32.mrf.mxu0
        %v778 = vadd.f32 0.0, %v777
        %v779 = vpop.f32.mrf.mxu0
        %v780 = vadd.f32 0.0, %v779
        %781 = vdwg.mxu0
        %v798 = vunpack.c.l.b16 %v574
        %v799 = vunpack.c.l.b16 %v575
        %v800 = vunpack.c.l.b16 %v576
        %v801 = vunpack.c.l.b16 %v577
        %v802 = vunpack.c.l.b16 %v578
        %v803 = vunpack.c.l.b16 %v579
        %v804 = vunpack.c.l.b16 %v580
        %v805 = vunpack.c.l.b16 %v581
        %v806 = vunpack.c.l.b16 %v582
        %v807 = vunpack.c.l.b16 %v583
        %v808 = vunpack.c.l.b16 %v584
        %v809 = vunpack.c.l.b16 %v585
        %v810 = vunpack.c.l.b16 %v586
        %v811 = vunpack.c.l.b16 %v587
        %v812 = vunpack.c.l.b16 %v588
        %v813 = vunpack.c.l.b16 %v589
        %v814 = vpack.c.b16 %v799, %v798
        %v815 = vpack.c.b16 %v801, %v800
        %v816 = vpack.c.b16 %v803, %v802
        %v817 = vpack.c.b16 %v805, %v804
        %v818 = vpack.c.b16 %v807, %v806
        %v819 = vpack.c.b16 %v809, %v808
        %v820 = vpack.c.b16 %v811, %v810
        %v821 = vpack.c.b16 %v813, %v812
        %830 = vmatpush.bf16.msra.mxu0 %v821
        %831 = vmatpush.bf16.msra.mxu0 %v820
        %832 = vmatpush.bf16.msra.mxu0 %v819
        %833 = vmatpush.bf16.msra.mxu0 %v818
        %834 = vmatpush.bf16.msra.mxu0 %v817
        %835 = vmatpush.bf16.msra.mxu0 %v816
        %836 = vmatpush.bf16.msra.mxu0 %v815
        %837 = vmatpush.bf16.msra.mxu0 %v814
        %838 = vmatmul.bf16.gmra.mxu0 %v594
        %v839 = vpop.f32.mrf.mxu0
        %v840 = vadd.f32 0.0, %v839
        %v841 = vpop.f32.mrf.mxu0
        %v842 = vadd.f32 0.0, %v841
        %843 = vdwg.mxu0
        %v844 = vpack.c.bf16 %v654, %v654
        %v845 = vpack.c.bf16 %v656, %v656
        %v846 = vpack.c.bf16 %v716, %v716
        %v847 = vpack.c.bf16 %v718, %v718
        %v848 = vpack.c.bf16 %v778, %v778
        %v849 = vpack.c.bf16 %v780, %v780
        %v850 = vpack.c.bf16 %v840, %v840
        %v851 = vpack.c.bf16 %v842, %v842
        %v852 = vld [vmem:[%s4] sm:$0xf]
        %v853 = vld [vmem:[%s4 + $0x4] sm:$0xf]
        %v854 = vld [vmem:[%s4 + $0x8] sm:$0xf]
        %v855 = vld [vmem:[%s4 + $0xc] sm:$0xf]
        %v856 = vld [vmem:[%s4 + $0x10] sm:$0xf]
        %v857 = vld [vmem:[%s4 + $0x14] sm:$0xf]
        %v858 = vld [vmem:[%s4 + $0x18] sm:$0xf]
        %v859 = vld [vmem:[%s4 + $0x1c] sm:$0xf]
        %v860 = vld [vmem:[%s4 + $0x20] sm:$0xf]
        %v861 = vld [vmem:[%s4 + $0x24] sm:$0xf]
        %v862 = vld [vmem:[%s4 + $0x28] sm:$0xf]
        %v863 = vld [vmem:[%s4 + $0x2c] sm:$0xf]
        %v864 = vld [vmem:[%s4 + $0x30] sm:$0xf]
        %v865 = vld [vmem:[%s4 + $0x34] sm:$0xf]
        %v866 = vld [vmem:[%s4 + $0x38] sm:$0xf]
        %v867 = vld [vmem:[%s4 + $0x3c] sm:$0xf]
        %v868 = vld [vmem:[%s4 + $0x40] sm:$0xf]
        %v869 = vld [vmem:[%s4 + $0x44] sm:$0xf]
        %v870 = vld [vmem:[%s4 + $0x48] sm:$0xf]
        %v871 = vld [vmem:[%s4 + $0x4c] sm:$0xf]
        %v872 = vld [vmem:[%s4 + $0x50] sm:$0xf]
        %v873 = vld [vmem:[%s4 + $0x54] sm:$0xf]
        %v874 = vld [vmem:[%s4 + $0x58] sm:$0xf]
        %v875 = vld [vmem:[%s4 + $0x5c] sm:$0xf]
        %v876 = vld [vmem:[%s4 + $0x60] sm:$0xf]
        %v877 = vld [vmem:[%s4 + $0x64] sm:$0xf]
        %v878 = vld [vmem:[%s4 + $0x68] sm:$0xf]
        %v879 = vld [vmem:[%s4 + $0x6c] sm:$0xf]
        %v880 = vld [vmem:[%s4 + $0x70] sm:$0xf]
        %v881 = vld [vmem:[%s4 + $0x74] sm:$0xf]
        %v882 = vld [vmem:[%s4 + $0x78] sm:$0xf]
        %v883 = vld [vmem:[%s4 + $0x7c] sm:$0xf]
        %v884 = vld [vmem:[%s4 + $0x80] sm:$0xf]
        %v885 = vld [vmem:[%s4 + $0x84] sm:$0xf]
        %v886 = vld [vmem:[%s4 + $0x88] sm:$0xf]
        %v887 = vld [vmem:[%s4 + $0x8c] sm:$0xf]
        %v888 = vld [vmem:[%s4 + $0x90] sm:$0xf]
        %v889 = vld [vmem:[%s4 + $0x94] sm:$0xf]
        %v890 = vld [vmem:[%s4 + $0x98] sm:$0xf]
        %v891 = vld [vmem:[%s4 + $0x9c] sm:$0xf]
        %v892 = vld [vmem:[%s4 + $0xa0] sm:$0xf]
        %v893 = vld [vmem:[%s4 + $0xa4] sm:$0xf]
        %v894 = vld [vmem:[%s4 + $0xa8] sm:$0xf]
        %v895 = vld [vmem:[%s4 + $0xac] sm:$0xf]
        %v896 = vld [vmem:[%s4 + $0xb0] sm:$0xf]
        %v897 = vld [vmem:[%s4 + $0xb4] sm:$0xf]
        %v898 = vld [vmem:[%s4 + $0xb8] sm:$0xf]
        %v899 = vld [vmem:[%s4 + $0xbc] sm:$0xf]
        %v900 = vld [vmem:[%s4 + $0xc0] sm:$0xf]
        %v901 = vld [vmem:[%s4 + $0xc4] sm:$0xf]
        %v902 = vld [vmem:[%s4 + $0xc8] sm:$0xf]
        %v903 = vld [vmem:[%s4 + $0xcc] sm:$0xf]
        %v904 = vld [vmem:[%s4 + $0xd0] sm:$0xf]
        %v905 = vld [vmem:[%s4 + $0xd4] sm:$0xf]
        %v906 = vld [vmem:[%s4 + $0xd8] sm:$0xf]
        %v907 = vld [vmem:[%s4 + $0xdc] sm:$0xf]
        %v908 = vld [vmem:[%s4 + $0xe0] sm:$0xf]
        %v909 = vld [vmem:[%s4 + $0xe4] sm:$0xf]
        %v910 = vld [vmem:[%s4 + $0xe8] sm:$0xf]
        %v911 = vld [vmem:[%s4 + $0xec] sm:$0xf]
        %v912 = vld [vmem:[%s4 + $0xf0] sm:$0xf]
        %v913 = vld [vmem:[%s4 + $0xf4] sm:$0xf]
        %v914 = vld [vmem:[%s4 + $0xf8] sm:$0xf]
        %v915 = vld [vmem:[%s4 + $0xfc] sm:$0xf]
        %v932 = vunpack.c.l.b16 %v852
        %v933 = vunpack.c.l.b16 %v853
        %v934 = vunpack.c.l.b16 %v854
        %v935 = vunpack.c.l.b16 %v855
        %v936 = vunpack.c.l.b16 %v856
        %v937 = vunpack.c.l.b16 %v857
        %v938 = vunpack.c.l.b16 %v858
        %v939 = vunpack.c.l.b16 %v859
        %v940 = vunpack.c.l.b16 %v860
        %v941 = vunpack.c.l.b16 %v861
        %v942 = vunpack.c.l.b16 %v862
        %v943 = vunpack.c.l.b16 %v863
        %v944 = vunpack.c.l.b16 %v864
        %v945 = vunpack.c.l.b16 %v865
        %v946 = vunpack.c.l.b16 %v866
        %v947 = vunpack.c.l.b16 %v867
        %v948 = vpack.c.b16 %v933, %v932
        %v949 = vpack.c.b16 %v935, %v934
        %v950 = vpack.c.b16 %v937, %v936
        %v951 = vpack.c.b16 %v939, %v938
        %v952 = vpack.c.b16 %v941, %v940
        %v953 = vpack.c.b16 %v943, %v942
        %v954 = vpack.c.b16 %v945, %v944
        %v955 = vpack.c.b16 %v947, %v946
        %964 = vmatpush.bf16.msra.mxu0 %v955
        %965 = vmatpush.bf16.msra.mxu0 %v954
        %966 = vmatpush.bf16.msra.mxu0 %v953
        %967 = vmatpush.bf16.msra.mxu0 %v952
        %968 = vmatpush.bf16.msra.mxu0 %v951
        %969 = vmatpush.bf16.msra.mxu0 %v950
        %970 = vmatpush.bf16.msra.mxu0 %v949
        %971 = vmatpush.bf16.msra.mxu0 %v948
        %972 = vmatmul.bf16.gmra.mxu0 %v594
        %v973 = vpop.f32.mrf.mxu0
        %v974 = vadd.f32 0.0, %v973
        %v975 = vpop.f32.mrf.mxu0
        %v976 = vadd.f32 0.0, %v975
        %977 = vdwg.mxu0
        %v994 = vunpack.c.l.b16 %v868
        %v995 = vunpack.c.l.b16 %v869
        %v996 = vunpack.c.l.b16 %v870
        %v997 = vunpack.c.l.b16 %v871
        %v998 = vunpack.c.l.b16 %v872
        %v999 = vunpack.c.l.b16 %v873
        %v1000 = vunpack.c.l.b16 %v874
        %v1001 = vunpack.c.l.b16 %v875
        %v1002 = vunpack.c.l.b16 %v876
        %v1003 = vunpack.c.l.b16 %v877
        %v1004 = vunpack.c.l.b16 %v878
        %v1005 = vunpack.c.l.b16 %v879
        %v1006 = vunpack.c.l.b16 %v880
        %v1007 = vunpack.c.l.b16 %v881
        %v1008 = vunpack.c.l.b16 %v882
        %v1009 = vunpack.c.l.b16 %v883
        %v1010 = vpack.c.b16 %v995, %v994
        %v1011 = vpack.c.b16 %v997, %v996
        %v1012 = vpack.c.b16 %v999, %v998
        %v1013 = vpack.c.b16 %v1001, %v1000
        %v1014 = vpack.c.b16 %v1003, %v1002
        %v1015 = vpack.c.b16 %v1005, %v1004
        %v1016 = vpack.c.b16 %v1007, %v1006
        %v1017 = vpack.c.b16 %v1009, %v1008
        %1026 = vmatpush.bf16.msra.mxu0 %v1017
        %1027 = vmatpush.bf16.msra.mxu0 %v1016
        %1028 = vmatpush.bf16.msra.mxu0 %v1015
        %1029 = vmatpush.bf16.msra.mxu0 %v1014
        %1030 = vmatpush.bf16.msra.mxu0 %v1013
        %1031 = vmatpush.bf16.msra.mxu0 %v1012
        %1032 = vmatpush.bf16.msra.mxu0 %v1011
        %1033 = vmatpush.bf16.msra.mxu0 %v1010
        %1034 = vmatmul.bf16.gmra.mxu0 %v594
        %v1035 = vpop.f32.mrf.mxu0
        %v1036 = vadd.f32 0.0, %v1035
        %v1037 = vpop.f32.mrf.mxu0
        %v1038 = vadd.f32 0.0, %v1037
        %1039 = vdwg.mxu0
        %v1056 = vunpack.c.l.b16 %v884
        %v1057 = vunpack.c.l.b16 %v885
        %v1058 = vunpack.c.l.b16 %v886
        %v1059 = vunpack.c.l.b16 %v887
        %v1060 = vunpack.c.l.b16 %v888
        %v1061 = vunpack.c.l.b16 %v889
        %v1062 = vunpack.c.l.b16 %v890
        %v1063 = vunpack.c.l.b16 %v891
        %v1064 = vunpack.c.l.b16 %v892
        %v1065 = vunpack.c.l.b16 %v893
        %v1066 = vunpack.c.l.b16 %v894
        %v1067 = vunpack.c.l.b16 %v895
        %v1068 = vunpack.c.l.b16 %v896
        %v1069 = vunpack.c.l.b16 %v897
        %v1070 = vunpack.c.l.b16 %v898
        %v1071 = vunpack.c.l.b16 %v899
        %v1072 = vpack.c.b16 %v1057, %v1056
        %v1073 = vpack.c.b16 %v1059, %v1058
        %v1074 = vpack.c.b16 %v1061, %v1060
        %v1075 = vpack.c.b16 %v1063, %v1062
        %v1076 = vpack.c.b16 %v1065, %v1064
        %v1077 = vpack.c.b16 %v1067, %v1066
        %v1078 = vpack.c.b16 %v1069, %v1068
        %v1079 = vpack.c.b16 %v1071, %v1070
        %1088 = vmatpush.bf16.msra.mxu0 %v1079
        %1089 = vmatpush.bf16.msra.mxu0 %v1078
        %1090 = vmatpush.bf16.msra.mxu0 %v1077
        %1091 = vmatpush.bf16.msra.mxu0 %v1076
        %1092 = vmatpush.bf16.msra.mxu0 %v1075
        %1093 = vmatpush.bf16.msra.mxu0 %v1074
        %1094 = vmatpush.bf16.msra.mxu0 %v1073
        %1095 = vmatpush.bf16.msra.mxu0 %v1072
        %1096 = vmatmul.bf16.gmra.mxu0 %v594
        %v1097 = vpop.f32.mrf.mxu0
        %v1098 = vadd.f32 0.0, %v1097
        %v1099 = vpop.f32.mrf.mxu0
        %v1100 = vadd.f32 0.0, %v1099
        %1101 = vdwg.mxu0
        %v1118 = vunpack.c.l.b16 %v900
        %v1119 = vunpack.c.l.b16 %v901
        %v1120 = vunpack.c.l.b16 %v902
        %v1121 = vunpack.c.l.b16 %v903
        %v1122 = vunpack.c.l.b16 %v904
        %v1123 = vunpack.c.l.b16 %v905
        %v1124 = vunpack.c.l.b16 %v906
        %v1125 = vunpack.c.l.b16 %v907
        %v1126 = vunpack.c.l.b16 %v908
        %v1127 = vunpack.c.l.b16 %v909
        %v1128 = vunpack.c.l.b16 %v910
        %v1129 = vunpack.c.l.b16 %v911
        %v1130 = vunpack.c.l.b16 %v912
        %v1131 = vunpack.c.l.b16 %v913
        %v1132 = vunpack.c.l.b16 %v914
        %v1133 = vunpack.c.l.b16 %v915
        %v1134 = vpack.c.b16 %v1119, %v1118
        %v1135 = vpack.c.b16 %v1121, %v1120
        %v1136 = vpack.c.b16 %v1123, %v1122
        %v1137 = vpack.c.b16 %v1125, %v1124
        %v1138 = vpack.c.b16 %v1127, %v1126
        %v1139 = vpack.c.b16 %v1129, %v1128
        %v1140 = vpack.c.b16 %v1131, %v1130
        %v1141 = vpack.c.b16 %v1133, %v1132
        %1150 = vmatpush.bf16.msra.mxu0 %v1141
        %1151 = vmatpush.bf16.msra.mxu0 %v1140
        %1152 = vmatpush.bf16.msra.mxu0 %v1139
        %1153 = vmatpush.bf16.msra.mxu0 %v1138
        %1154 = vmatpush.bf16.msra.mxu0 %v1137
        %1155 = vmatpush.bf16.msra.mxu0 %v1136
        %1156 = vmatpush.bf16.msra.mxu0 %v1135
        %1157 = vmatpush.bf16.msra.mxu0 %v1134
        %1158 = vmatmul.bf16.gmra.mxu0 %v594
        %v1159 = vpop.f32.mrf.mxu0
        %v1160 = vadd.f32 0.0, %v1159
        %v1161 = vpop.f32.mrf.mxu0
        %v1162 = vadd.f32 0.0, %v1161
        %1163 = vdwg.mxu0
        %v1164 = vpack.c.bf16 %v974, %v974
        %v1165 = vpack.c.bf16 %v976, %v976
        %v1166 = vpack.c.bf16 %v1036, %v1036
        %v1167 = vpack.c.bf16 %v1038, %v1038
        %v1168 = vpack.c.bf16 %v1098, %v1098
        %v1169 = vpack.c.bf16 %v1100, %v1100
        %v1170 = vpack.c.bf16 %v1160, %v1160
        %v1171 = vpack.c.bf16 %v1162, %v1162
        %v1172 = vld [vmem:[%s5] sm:$0xf]
        %v1173 = vld [vmem:[%s5 + $0x4] sm:$0xf]
        %v1174 = vld [vmem:[%s5 + $0x8] sm:$0xf]
        %v1175 = vld [vmem:[%s5 + $0xc] sm:$0xf]
        %v1176 = vld [vmem:[%s5 + $0x10] sm:$0xf]
        %v1177 = vld [vmem:[%s5 + $0x14] sm:$0xf]
        %v1178 = vld [vmem:[%s5 + $0x18] sm:$0xf]
        %v1179 = vld [vmem:[%s5 + $0x1c] sm:$0xf]
        %v1180 = vld [vmem:[%s5 + $0x20] sm:$0xf]
        %v1181 = vld [vmem:[%s5 + $0x24] sm:$0xf]
        %v1182 = vld [vmem:[%s5 + $0x28] sm:$0xf]
        %v1183 = vld [vmem:[%s5 + $0x2c] sm:$0xf]
        %v1184 = vld [vmem:[%s5 + $0x30] sm:$0xf]
        %v1185 = vld [vmem:[%s5 + $0x34] sm:$0xf]
        %v1186 = vld [vmem:[%s5 + $0x38] sm:$0xf]
        %v1187 = vld [vmem:[%s5 + $0x3c] sm:$0xf]
        %v1188 = vld [vmem:[%s5 + $0x40] sm:$0xf]
        %v1189 = vld [vmem:[%s5 + $0x44] sm:$0xf]
        %v1190 = vld [vmem:[%s5 + $0x48] sm:$0xf]
        %v1191 = vld [vmem:[%s5 + $0x4c] sm:$0xf]
        %v1192 = vld [vmem:[%s5 + $0x50] sm:$0xf]
        %v1193 = vld [vmem:[%s5 + $0x54] sm:$0xf]
        %v1194 = vld [vmem:[%s5 + $0x58] sm:$0xf]
        %v1195 = vld [vmem:[%s5 + $0x5c] sm:$0xf]
        %v1196 = vld [vmem:[%s5 + $0x60] sm:$0xf]
        %v1197 = vld [vmem:[%s5 + $0x64] sm:$0xf]
        %v1198 = vld [vmem:[%s5 + $0x68] sm:$0xf]
        %v1199 = vld [vmem:[%s5 + $0x6c] sm:$0xf]
        %v1200 = vld [vmem:[%s5 + $0x70] sm:$0xf]
        %v1201 = vld [vmem:[%s5 + $0x74] sm:$0xf]
        %v1202 = vld [vmem:[%s5 + $0x78] sm:$0xf]
        %v1203 = vld [vmem:[%s5 + $0x7c] sm:$0xf]
        %v1204 = vld [vmem:[%s5 + $0x80] sm:$0xf]
        %v1205 = vld [vmem:[%s5 + $0x84] sm:$0xf]
        %v1206 = vld [vmem:[%s5 + $0x88] sm:$0xf]
        %v1207 = vld [vmem:[%s5 + $0x8c] sm:$0xf]
        %v1208 = vld [vmem:[%s5 + $0x90] sm:$0xf]
        %v1209 = vld [vmem:[%s5 + $0x94] sm:$0xf]
        %v1210 = vld [vmem:[%s5 + $0x98] sm:$0xf]
        %v1211 = vld [vmem:[%s5 + $0x9c] sm:$0xf]
        %v1212 = vld [vmem:[%s5 + $0xa0] sm:$0xf]
        %v1213 = vld [vmem:[%s5 + $0xa4] sm:$0xf]
        %v1214 = vld [vmem:[%s5 + $0xa8] sm:$0xf]
        %v1215 = vld [vmem:[%s5 + $0xac] sm:$0xf]
        %v1216 = vld [vmem:[%s5 + $0xb0] sm:$0xf]
        %v1217 = vld [vmem:[%s5 + $0xb4] sm:$0xf]
        %v1218 = vld [vmem:[%s5 + $0xb8] sm:$0xf]
        %v1219 = vld [vmem:[%s5 + $0xbc] sm:$0xf]
        %v1220 = vld [vmem:[%s5 + $0xc0] sm:$0xf]
        %v1221 = vld [vmem:[%s5 + $0xc4] sm:$0xf]
        %v1222 = vld [vmem:[%s5 + $0xc8] sm:$0xf]
        %v1223 = vld [vmem:[%s5 + $0xcc] sm:$0xf]
        %v1224 = vld [vmem:[%s5 + $0xd0] sm:$0xf]
        %v1225 = vld [vmem:[%s5 + $0xd4] sm:$0xf]
        %v1226 = vld [vmem:[%s5 + $0xd8] sm:$0xf]
        %v1227 = vld [vmem:[%s5 + $0xdc] sm:$0xf]
        %v1228 = vld [vmem:[%s5 + $0xe0] sm:$0xf]
        %v1229 = vld [vmem:[%s5 + $0xe4] sm:$0xf]
        %v1230 = vld [vmem:[%s5 + $0xe8] sm:$0xf]
        %v1231 = vld [vmem:[%s5 + $0xec] sm:$0xf]
        %v1232 = vld [vmem:[%s5 + $0xf0] sm:$0xf]
        %v1233 = vld [vmem:[%s5 + $0xf4] sm:$0xf]
        %v1234 = vld [vmem:[%s5 + $0xf8] sm:$0xf]
        %v1235 = vld [vmem:[%s5 + $0xfc] sm:$0xf]
        %v1252 = vunpack.c.l.b16 %v1172
        %v1253 = vunpack.c.l.b16 %v1173
        %v1254 = vunpack.c.l.b16 %v1174
        %v1255 = vunpack.c.l.b16 %v1175
        %v1256 = vunpack.c.l.b16 %v1176
        %v1257 = vunpack.c.l.b16 %v1177
        %v1258 = vunpack.c.l.b16 %v1178
        %v1259 = vunpack.c.l.b16 %v1179
        %v1260 = vunpack.c.l.b16 %v1180
        %v1261 = vunpack.c.l.b16 %v1181
        %v1262 = vunpack.c.l.b16 %v1182
        %v1263 = vunpack.c.l.b16 %v1183
        %v1264 = vunpack.c.l.b16 %v1184
        %v1265 = vunpack.c.l.b16 %v1185
        %v1266 = vunpack.c.l.b16 %v1186
        %v1267 = vunpack.c.l.b16 %v1187
        %v1268 = vpack.c.b16 %v1253, %v1252
        %v1269 = vpack.c.b16 %v1255, %v1254
        %v1270 = vpack.c.b16 %v1257, %v1256
        %v1271 = vpack.c.b16 %v1259, %v1258
        %v1272 = vpack.c.b16 %v1261, %v1260
        %v1273 = vpack.c.b16 %v1263, %v1262
        %v1274 = vpack.c.b16 %v1265, %v1264
        %v1275 = vpack.c.b16 %v1267, %v1266
        %1284 = vmatpush.bf16.msra.mxu0 %v1275
        %1285 = vmatpush.bf16.msra.mxu0 %v1274
        %1286 = vmatpush.bf16.msra.mxu0 %v1273
        %1287 = vmatpush.bf16.msra.mxu0 %v1272
        %1288 = vmatpush.bf16.msra.mxu0 %v1271
        %1289 = vmatpush.bf16.msra.mxu0 %v1270
        %1290 = vmatpush.bf16.msra.mxu0 %v1269
        %1291 = vmatpush.bf16.msra.mxu0 %v1268
        %1292 = vmatmul.bf16.gmra.mxu0 %v594
        %v1293 = vpop.f32.mrf.mxu0
        %v1294 = vadd.f32 0.0, %v1293
        %v1295 = vpop.f32.mrf.mxu0
        %v1296 = vadd.f32 0.0, %v1295
        %1297 = vdwg.mxu0
        %v1314 = vunpack.c.l.b16 %v1188
        %v1315 = vunpack.c.l.b16 %v1189
        %v1316 = vunpack.c.l.b16 %v1190
        %v1317 = vunpack.c.l.b16 %v1191
        %v1318 = vunpack.c.l.b16 %v1192
        %v1319 = vunpack.c.l.b16 %v1193
        %v1320 = vunpack.c.l.b16 %v1194
        %v1321 = vunpack.c.l.b16 %v1195
        %v1322 = vunpack.c.l.b16 %v1196
        %v1323 = vunpack.c.l.b16 %v1197
        %v1324 = vunpack.c.l.b16 %v1198
        %v1325 = vunpack.c.l.b16 %v1199
        %v1326 = vunpack.c.l.b16 %v1200
        %v1327 = vunpack.c.l.b16 %v1201
        %v1328 = vunpack.c.l.b16 %v1202
        %v1329 = vunpack.c.l.b16 %v1203
        %v1330 = vpack.c.b16 %v1315, %v1314
        %v1331 = vpack.c.b16 %v1317, %v1316
        %v1332 = vpack.c.b16 %v1319, %v1318
        %v1333 = vpack.c.b16 %v1321, %v1320
        %v1334 = vpack.c.b16 %v1323, %v1322
        %v1335 = vpack.c.b16 %v1325, %v1324
        %v1336 = vpack.c.b16 %v1327, %v1326
        %v1337 = vpack.c.b16 %v1329, %v1328
        %1346 = vmatpush.bf16.msra.mxu0 %v1337
        %1347 = vmatpush.bf16.msra.mxu0 %v1336
        %1348 = vmatpush.bf16.msra.mxu0 %v1335
        %1349 = vmatpush.bf16.msra.mxu0 %v1334
        %1350 = vmatpush.bf16.msra.mxu0 %v1333
        %1351 = vmatpush.bf16.msra.mxu0 %v1332
        %1352 = vmatpush.bf16.msra.mxu0 %v1331
        %1353 = vmatpush.bf16.msra.mxu0 %v1330
        %1354 = vmatmul.bf16.gmra.mxu0 %v594
        %v1355 = vpop.f32.mrf.mxu0
        %v1356 = vadd.f32 0.0, %v1355
        %v1357 = vpop.f32.mrf.mxu0
        %v1358 = vadd.f32 0.0, %v1357
        %1359 = vdwg.mxu0
        %v1376 = vunpack.c.l.b16 %v1204
        %v1377 = vunpack.c.l.b16 %v1205
        %v1378 = vunpack.c.l.b16 %v1206
        %v1379 = vunpack.c.l.b16 %v1207
        %v1380 = vunpack.c.l.b16 %v1208
        %v1381 = vunpack.c.l.b16 %v1209
        %v1382 = vunpack.c.l.b16 %v1210
        %v1383 = vunpack.c.l.b16 %v1211
        %v1384 = vunpack.c.l.b16 %v1212
        %v1385 = vunpack.c.l.b16 %v1213
        %v1386 = vunpack.c.l.b16 %v1214
        %v1387 = vunpack.c.l.b16 %v1215
        %v1388 = vunpack.c.l.b16 %v1216
        %v1389 = vunpack.c.l.b16 %v1217
        %v1390 = vunpack.c.l.b16 %v1218
        %v1391 = vunpack.c.l.b16 %v1219
        %v1392 = vpack.c.b16 %v1377, %v1376
        %v1393 = vpack.c.b16 %v1379, %v1378
        %v1394 = vpack.c.b16 %v1381, %v1380
        %v1395 = vpack.c.b16 %v1383, %v1382
        %v1396 = vpack.c.b16 %v1385, %v1384
        %v1397 = vpack.c.b16 %v1387, %v1386
        %v1398 = vpack.c.b16 %v1389, %v1388
        %v1399 = vpack.c.b16 %v1391, %v1390
        %1408 = vmatpush.bf16.msra.mxu0 %v1399
        %1409 = vmatpush.bf16.msra.mxu0 %v1398
        %1410 = vmatpush.bf16.msra.mxu0 %v1397
        %1411 = vmatpush.bf16.msra.mxu0 %v1396
        %1412 = vmatpush.bf16.msra.mxu0 %v1395
        %1413 = vmatpush.bf16.msra.mxu0 %v1394
        %1414 = vmatpush.bf16.msra.mxu0 %v1393
        %1415 = vmatpush.bf16.msra.mxu0 %v1392
        %1416 = vmatmul.bf16.gmra.mxu0 %v594
        %v1417 = vpop.f32.mrf.mxu0
        %v1418 = vadd.f32 0.0, %v1417
        %v1419 = vpop.f32.mrf.mxu0
        %v1420 = vadd.f32 0.0, %v1419
        %1421 = vdwg.mxu0
        %v1438 = vunpack.c.l.b16 %v1220
        %v1439 = vunpack.c.l.b16 %v1221
        %v1440 = vunpack.c.l.b16 %v1222
        %v1441 = vunpack.c.l.b16 %v1223
        %v1442 = vunpack.c.l.b16 %v1224
        %v1443 = vunpack.c.l.b16 %v1225
        %v1444 = vunpack.c.l.b16 %v1226
        %v1445 = vunpack.c.l.b16 %v1227
        %v1446 = vunpack.c.l.b16 %v1228
        %v1447 = vunpack.c.l.b16 %v1229
        %v1448 = vunpack.c.l.b16 %v1230
        %v1449 = vunpack.c.l.b16 %v1231
        %v1450 = vunpack.c.l.b16 %v1232
        %v1451 = vunpack.c.l.b16 %v1233
        %v1452 = vunpack.c.l.b16 %v1234
        %v1453 = vunpack.c.l.b16 %v1235
        %v1454 = vpack.c.b16 %v1439, %v1438
        %v1455 = vpack.c.b16 %v1441, %v1440
        %v1456 = vpack.c.b16 %v1443, %v1442
        %v1457 = vpack.c.b16 %v1445, %v1444
        %v1458 = vpack.c.b16 %v1447, %v1446
        %v1459 = vpack.c.b16 %v1449, %v1448
        %v1460 = vpack.c.b16 %v1451, %v1450
        %v1461 = vpack.c.b16 %v1453, %v1452
        %1470 = vmatpush.bf16.msra.mxu0 %v1461
        %1471 = vmatpush.bf16.msra.mxu0 %v1460
        %1472 = vmatpush.bf16.msra.mxu0 %v1459
        %1473 = vmatpush.bf16.msra.mxu0 %v1458
        %1474 = vmatpush.bf16.msra.mxu0 %v1457
        %1475 = vmatpush.bf16.msra.mxu0 %v1456
        %1476 = vmatpush.bf16.msra.mxu0 %v1455
        %1477 = vmatpush.bf16.msra.mxu0 %v1454
        %1478 = vmatmul.bf16.gmra.mxu0 %v594
        %v1479 = vpop.f32.mrf.mxu0
        %v1480 = vadd.f32 0.0, %v1479
        %v1481 = vpop.f32.mrf.mxu0
        %v1482 = vadd.f32 0.0, %v1481
        %1483 = vdwg.mxu0
        %v1484 = vpack.c.bf16 %v1294, %v1294
        %v1485 = vpack.c.bf16 %v1296, %v1296
        %v1486 = vpack.c.bf16 %v1356, %v1356
        %v1487 = vpack.c.bf16 %v1358, %v1358
        %v1488 = vpack.c.bf16 %v1418, %v1418
        %v1489 = vpack.c.bf16 %v1420, %v1420
        %v1490 = vpack.c.bf16 %v1480, %v1480
        %v1491 = vpack.c.bf16 %v1482, %v1482
        %v1494 = vunpack.c.l.b16 %v844
        %v1495 = vunpack.c.l.b16 %v845
        %v1496 = vpack.c.b16 %v1495, %v1494
        %v1499 = vunpack.c.l.b16 %v1164
        %v1500 = vunpack.c.l.b16 %v1165
        %v1501 = vpack.c.b16 %v1500, %v1499
        %vm1502 = vcmask 261120
        %v1504 = vsel %vm1502, %v1496, 0
        %v1507 = vsel %vm1502, %v1501, 0
        %1509 = vmatpush.bf16.xpose.msra.mxu0 0
        %1510 = vmatpush.bf16.xpose.msra.mxu0 0
        %1511 = vmatpush.bf16.xpose.msra.mxu0 0
        %1512 = vmatpush.bf16.xpose.msra.mxu0 0
        %1513 = vmatpush.bf16.xpose.msra.mxu0 0
        %1514 = vmatpush.bf16.xpose.msra.mxu0 0
        %1515 = vmatpush.bf16.xpose.msra.mxu0 0
        %1516 = vmatpush.bf16.xpose.msra.mxu0 %v1507
        %1517 = vmatmul.bf16.gmra.mxu0 %v1504
        %v1518 = vpop.f32.mrf.mxu0
        %v1519 = vadd.f32 0.0, %v1518
        %v1520 = vpop.f32.mrf.mxu0
        %v1521 = vadd.f32 0.0, %v1520
        %1522 = vdwg.mxu0
        %v1525 = vunpack.c.l.b16 %v846
        %v1526 = vunpack.c.l.b16 %v847
        %v1527 = vpack.c.b16 %v1526, %v1525
        %v1530 = vunpack.c.l.b16 %v1166
        %v1531 = vunpack.c.l.b16 %v1167
        %v1532 = vpack.c.b16 %v1531, %v1530
        %v1534 = vsel %vm1502, %v1527, 0
        %v1537 = vsel %vm1502, %v1532, 0
        %1539 = vmatpush.bf16.xpose.msra.mxu0 0
        %1540 = vmatpush.bf16.xpose.msra.mxu0 0
        %1541 = vmatpush.bf16.xpose.msra.mxu0 0
        %1542 = vmatpush.bf16.xpose.msra.mxu0 0
        %1543 = vmatpush.bf16.xpose.msra.mxu0 0
        %1544 = vmatpush.bf16.xpose.msra.mxu0 0
        %1545 = vmatpush.bf16.xpose.msra.mxu0 0
        %1546 = vmatpush.bf16.xpose.msra.mxu0 %v1537
        %1547 = vmatmul.bf16.gmra.mxu0 %v1534
        %v1548 = vpop.f32.mrf.mxu0
        %v1549 = vadd.f32 0.0, %v1548
        %v1550 = vpop.f32.mrf.mxu0
        %v1551 = vadd.f32 0.0, %v1550
        %1552 = vdwg.mxu0
        %v1555 = vunpack.c.l.b16 %v848
        %v1556 = vunpack.c.l.b16 %v849
        %v1557 = vpack.c.b16 %v1556, %v1555
        %v1560 = vunpack.c.l.b16 %v1168
        %v1561 = vunpack.c.l.b16 %v1169
        %v1562 = vpack.c.b16 %v1561, %v1560
        %v1564 = vsel %vm1502, %v1557, 0
        %v1567 = vsel %vm1502, %v1562, 0
        %1569 = vmatpush.bf16.xpose.msra.mxu0 0
        %1570 = vmatpush.bf16.xpose.msra.mxu0 0
        %1571 = vmatpush.bf16.xpose.msra.mxu0 0
        %1572 = vmatpush.bf16.xpose.msra.mxu0 0
        %1573 = vmatpush.bf16.xpose.msra.mxu0 0
        %1574 = vmatpush.bf16.xpose.msra.mxu0 0
        %1575 = vmatpush.bf16.xpose.msra.mxu0 0
        %1576 = vmatpush.bf16.xpose.msra.mxu0 %v1567
        %1577 = vmatmul.bf16.gmra.mxu0 %v1564
        %v1578 = vpop.f32.mrf.mxu0
        %v1579 = vadd.f32 0.0, %v1578
        %v1580 = vpop.f32.mrf.mxu0
        %v1581 = vadd.f32 0.0, %v1580
        %1582 = vdwg.mxu0
        %v1585 = vunpack.c.l.b16 %v850
        %v1586 = vunpack.c.l.b16 %v851
        %v1587 = vpack.c.b16 %v1586, %v1585
        %v1590 = vunpack.c.l.b16 %v1170
        %v1591 = vunpack.c.l.b16 %v1171
        %v1592 = vpack.c.b16 %v1591, %v1590
        %v1594 = vsel %vm1502, %v1587, 0
        %v1597 = vsel %vm1502, %v1592, 0
        %1599 = vmatpush.bf16.xpose.msra.mxu0 0
        %1600 = vmatpush.bf16.xpose.msra.mxu0 0
        %1601 = vmatpush.bf16.xpose.msra.mxu0 0
        %1602 = vmatpush.bf16.xpose.msra.mxu0 0
        %1603 = vmatpush.bf16.xpose.msra.mxu0 0
        %1604 = vmatpush.bf16.xpose.msra.mxu0 0
        %1605 = vmatpush.bf16.xpose.msra.mxu0 0
        %1606 = vmatpush.bf16.xpose.msra.mxu0 %v1597
        %1607 = vmatmul.bf16.gmra.mxu0 %v1594
        %v1608 = vpop.f32.mrf.mxu0
        %v1609 = vadd.f32 0.0, %v1608
        %v1610 = vpop.f32.mrf.mxu0
        %v1611 = vadd.f32 0.0, %v1610
        %1612 = vdwg.mxu0
        %vm1613 = vcmask 130048
        %v1614 = vsel %vm1613, %v1519, -inf
        %1615 = vmax.xlane.f32.xlu0 %v1614
        %v1616 = vpop.xlane.xlu0 %1615
        %v1617 = vsel %vm1613, %v1521, -inf
        %1618 = vmax.xlane.f32.xlu0 %v1617
        %v1619 = vpop.xlane.xlu0 %1618
        %v1620 = vsel %vm1613, %v1549, -inf
        %1621 = vmax.xlane.f32.xlu0 %v1620
        %v1622 = vpop.xlane.xlu0 %1621
        %v1623 = vsel %vm1613, %v1551, -inf
        %1624 = vmax.xlane.f32.xlu0 %v1623
        %v1625 = vpop.xlane.xlu0 %1624
        %v1626 = vsel %vm1613, %v1579, -inf
        %1627 = vmax.xlane.f32.xlu0 %v1626
        %v1628 = vpop.xlane.xlu0 %1627
        %v1629 = vsel %vm1613, %v1581, -inf
        %1630 = vmax.xlane.f32.xlu0 %v1629
        %v1631 = vpop.xlane.xlu0 %1630
        %v1632 = vsel %vm1613, %v1609, -inf
        %1633 = vmax.xlane.f32.xlu0 %v1632
        %v1634 = vpop.xlane.xlu0 %1633
        %v1635 = vsel %vm1613, %v1611, -inf
        %1636 = vmax.xlane.f32.xlu0 %v1635
        %v1637 = vpop.xlane.xlu0 %1636
        %v1638 = vsub.f32 %v1519, %v1616
        %v1639 = vsub.f32 %v1521, %v1619
        %v1640 = vsub.f32 %v1549, %v1622
        %v1641 = vsub.f32 %v1551, %v1625
        %v1642 = vsub.f32 %v1579, %v1628
        %v1643 = vsub.f32 %v1581, %v1631
        %v1644 = vsub.f32 %v1609, %v1634
        %v1645 = vsub.f32 %v1611, %v1637
        %v1646 = vmul.f32 %v1638, 1.442695
        %v1647 = vpow.pop %v1646
        %v1648 = vmul.f32 %v1639, 1.442695
        %v1649 = vpow.pop %v1648
        %v1650 = vmul.f32 %v1640, 1.442695
        %v1651 = vpow.pop %v1650
        %v1652 = vmul.f32 %v1641, 1.442695
        %v1653 = vpow.pop %v1652
        %v1654 = vmul.f32 %v1642, 1.442695
        %v1655 = vpow.pop %v1654
        %v1656 = vmul.f32 %v1643, 1.442695
        %v1657 = vpow.pop %v1656
        %v1658 = vmul.f32 %v1644, 1.442695
        %v1659 = vpow.pop %v1658
        %v1660 = vmul.f32 %v1645, 1.442695
        %v1661 = vpow.pop %v1660
        %v1662 = vsel %vm1613, %v1647, 0.0
        %1663 = vadd.xlane.f32.xlu0 %v1662
        %v1664 = vpop.xlane.xlu0 %1663
        %v1665 = vsel %vm1613, %v1649, 0.0
        %1666 = vadd.xlane.f32.xlu0 %v1665
        %v1667 = vpop.xlane.xlu0 %1666
        %v1668 = vsel %vm1613, %v1651, 0.0
        %1669 = vadd.xlane.f32.xlu0 %v1668
        %v1670 = vpop.xlane.xlu0 %1669
        %v1671 = vsel %vm1613, %v1653, 0.0
        %1672 = vadd.xlane.f32.xlu0 %v1671
        %v1673 = vpop.xlane.xlu0 %1672
        %v1674 = vsel %vm1613, %v1655, 0.0
        %1675 = vadd.xlane.f32.xlu0 %v1674
        %v1676 = vpop.xlane.xlu0 %1675
        %v1677 = vsel %vm1613, %v1657, 0.0
        %1678 = vadd.xlane.f32.xlu0 %v1677
        %v1679 = vpop.xlane.xlu0 %1678
        %v1680 = vsel %vm1613, %v1659, 0.0
        %1681 = vadd.xlane.f32.xlu0 %v1680
        %v1682 = vpop.xlane.xlu0 %1681
        %v1683 = vsel %vm1613, %v1661, 0.0
        %1684 = vadd.xlane.f32.xlu0 %v1683
        %v1685 = vpop.xlane.xlu0 %1684
        %v1686 = vrcp.pop %v1664
        %v1687 = vrcp.pop %v1667
        %v1688 = vrcp.pop %v1670
        %v1689 = vrcp.pop %v1673
        %v1690 = vrcp.pop %v1676
        %v1691 = vrcp.pop %v1679
        %v1692 = vrcp.pop %v1682
        %v1693 = vrcp.pop %v1685
        %v1694 = vmul.f32 %v1647, %v1686
        %v1695 = vmul.f32 %v1649, %v1687
        %v1696 = vmul.f32 %v1651, %v1688
        %v1697 = vmul.f32 %v1653, %v1689
        %v1698 = vmul.f32 %v1655, %v1690
        %v1699 = vmul.f32 %v1657, %v1691
        %v1700 = vmul.f32 %v1659, %v1692
        %v1701 = vmul.f32 %v1661, %v1693
        %v1702 = vpack.c.bf16 %v1694, %v1694
        %v1703 = vpack.c.bf16 %v1695, %v1695
        %v1704 = vpack.c.bf16 %v1696, %v1696
        %v1705 = vpack.c.bf16 %v1697, %v1697
        %v1706 = vpack.c.bf16 %v1698, %v1698
        %v1707 = vpack.c.bf16 %v1699, %v1699
        %v1708 = vpack.c.bf16 %v1700, %v1700
        %v1709 = vpack.c.bf16 %v1701, %v1701
        %v1712 = vunpack.c.l.b16 %v1702
        %v1713 = vunpack.c.l.b16 %v1703
        %v1714 = vpack.c.b16 %v1713, %v1712
        %v1717 = vunpack.c.l.b16 %v1484
        %v1718 = vunpack.c.l.b16 %v1485
        %v1719 = vpack.c.b16 %v1718, %v1717
        %v1722 = vsel %vm1613, %v1714, 0
        %1724 = vmatpush.bf16.msra.mxu0 0
        %1725 = vmatpush.bf16.msra.mxu0 0
        %1726 = vmatpush.bf16.msra.mxu0 0
        %1727 = vmatpush.bf16.msra.mxu0 0
        %1728 = vmatpush.bf16.msra.mxu0 0
        %1729 = vmatpush.bf16.msra.mxu0 0
        %1730 = vmatpush.bf16.msra.mxu0 0
        %1731 = vmatpush.bf16.msra.mxu0 %v1719
        %1732 = vmatmul.bf16.gmra.mxu0 %v1722
        %v1733 = vpop.f32.mrf.mxu0
        %v1734 = vadd.f32 0.0, %v1733
        %v1735 = vpop.f32.mrf.mxu0
        %v1736 = vadd.f32 0.0, %v1735
        %1737 = vdwg.mxu0
        %v1740 = vunpack.c.l.b16 %v1704
        %v1741 = vunpack.c.l.b16 %v1705
        %v1742 = vpack.c.b16 %v1741, %v1740
        %v1745 = vunpack.c.l.b16 %v1486
        %v1746 = vunpack.c.l.b16 %v1487
        %v1747 = vpack.c.b16 %v1746, %v1745
        %v1750 = vsel %vm1613, %v1742, 0
        %1752 = vmatpush.bf16.msra.mxu0 0
        %1753 = vmatpush.bf16.msra.mxu0 0
        %1754 = vmatpush.bf16.msra.mxu0 0
        %1755 = vmatpush.bf16.msra.mxu0 0
        %1756 = vmatpush.bf16.msra.mxu0 0
        %1757 = vmatpush.bf16.msra.mxu0 0
        %1758 = vmatpush.bf16.msra.mxu0 0
        %1759 = vmatpush.bf16.msra.mxu0 %v1747
        %1760 = vmatmul.bf16.gmra.mxu0 %v1750
        %v1761 = vpop.f32.mrf.mxu0
        %v1762 = vadd.f32 0.0, %v1761
        %v1763 = vpop.f32.mrf.mxu0
        %v1764 = vadd.f32 0.0, %v1763
        %1765 = vdwg.mxu0
        %v1768 = vunpack.c.l.b16 %v1706
        %v1769 = vunpack.c.l.b16 %v1707
        %v1770 = vpack.c.b16 %v1769, %v1768
        %v1773 = vunpack.c.l.b16 %v1488
        %v1774 = vunpack.c.l.b16 %v1489
        %v1775 = vpack.c.b16 %v1774, %v1773
        %v1778 = vsel %vm1613, %v1770, 0
        %1780 = vmatpush.bf16.msra.mxu0 0
        %1781 = vmatpush.bf16.msra.mxu0 0
        %1782 = vmatpush.bf16.msra.mxu0 0
        %1783 = vmatpush.bf16.msra.mxu0 0
        %1784 = vmatpush.bf16.msra.mxu0 0
        %1785 = vmatpush.bf16.msra.mxu0 0
        %1786 = vmatpush.bf16.msra.mxu0 0
        %1787 = vmatpush.bf16.msra.mxu0 %v1775
        %1788 = vmatmul.bf16.gmra.mxu0 %v1778
        %v1789 = vpop.f32.mrf.mxu0
        %v1790 = vadd.f32 0.0, %v1789
        %v1791 = vpop.f32.mrf.mxu0
        %v1792 = vadd.f32 0.0, %v1791
        %1793 = vdwg.mxu0
        %v1796 = vunpack.c.l.b16 %v1708
        %v1797 = vunpack.c.l.b16 %v1709
        %v1798 = vpack.c.b16 %v1797, %v1796
        %v1801 = vunpack.c.l.b16 %v1490
        %v1802 = vunpack.c.l.b16 %v1491
        %v1803 = vpack.c.b16 %v1802, %v1801
        %v1806 = vsel %vm1613, %v1798, 0
        %1808 = vmatpush.bf16.msra.mxu0 0
        %1809 = vmatpush.bf16.msra.mxu0 0
        %1810 = vmatpush.bf16.msra.mxu0 0
        %1811 = vmatpush.bf16.msra.mxu0 0
        %1812 = vmatpush.bf16.msra.mxu0 0
        %1813 = vmatpush.bf16.msra.mxu0 0
        %1814 = vmatpush.bf16.msra.mxu0 0
        %1815 = vmatpush.bf16.msra.mxu0 %v1803
        %1816 = vmatmul.bf16.gmra.mxu0 %v1806
        %v1817 = vpop.f32.mrf.mxu0
        %v1818 = vadd.f32 0.0, %v1817
        %v1819 = vpop.f32.mrf.mxu0
        %v1820 = vadd.f32 0.0, %v1819
        %1821 = vdwg.mxu0
        %v1822 = vpack.c.bf16 %v1734, %v1734
        %v1823 = vpack.c.bf16 %v1736, %v1736
        %v1824 = vpack.c.bf16 %v1762, %v1762
        %v1825 = vpack.c.bf16 %v1764, %v1764
        %v1826 = vpack.c.bf16 %v1790, %v1790
        %v1827 = vpack.c.bf16 %v1792, %v1792
        %v1828 = vpack.c.bf16 %v1818, %v1818
        %v1829 = vpack.c.bf16 %v1820, %v1820
        %v1830 = vld [vmem:[%s6] sm:$0xf]
        %v1831 = vld [vmem:[%s6 + $0x4] sm:$0xf]
        %v1832 = vld [vmem:[%s6 + $0x8] sm:$0xf]
        %v1833 = vld [vmem:[%s6 + $0xc] sm:$0xf]
        %v1834 = vld [vmem:[%s6 + $0x10] sm:$0xf]
        %v1835 = vld [vmem:[%s6 + $0x14] sm:$0xf]
        %v1836 = vld [vmem:[%s6 + $0x18] sm:$0xf]
        %v1837 = vld [vmem:[%s6 + $0x1c] sm:$0xf]
        %v1838 = vld [vmem:[%s6 + $0x20] sm:$0xf]
        %v1839 = vld [vmem:[%s6 + $0x24] sm:$0xf]
        %v1840 = vld [vmem:[%s6 + $0x28] sm:$0xf]
        %v1841 = vld [vmem:[%s6 + $0x2c] sm:$0xf]
        %v1842 = vld [vmem:[%s6 + $0x30] sm:$0xf]
        %v1843 = vld [vmem:[%s6 + $0x34] sm:$0xf]
        %v1844 = vld [vmem:[%s6 + $0x38] sm:$0xf]
        %v1845 = vld [vmem:[%s6 + $0x3c] sm:$0xf]
        %v1848 = vunpack.c.l.b16 %v1822
        %v1849 = vunpack.c.l.b16 %v1823
        %v1850 = vpack.c.b16 %v1849, %v1848
        %v1855 = vunpack.c.l.b16 %v1830
        %v1856 = vunpack.c.l.b16 %v1831
        %v1857 = vunpack.c.l.b16 %v1832
        %v1858 = vunpack.c.l.b16 %v1833
        %v1859 = vpack.c.b16 %v1856, %v1855
        %v1860 = vpack.c.b16 %v1858, %v1857
        %v1864 = vsel %vm1502, %v1850, 0
        %1866 = vmatpush.bf16.msra.mxu0 0
        %1867 = vmatpush.bf16.msra.mxu0 0
        %1868 = vmatpush.bf16.msra.mxu0 0
        %1869 = vmatpush.bf16.msra.mxu0 0
        %1870 = vmatpush.bf16.msra.mxu0 0
        %1871 = vmatpush.bf16.msra.mxu0 0
        %1872 = vmatpush.bf16.msra.mxu0 %v1860
        %1873 = vmatpush.bf16.msra.mxu0 %v1859
        %1874 = vmatmul.bf16.gmra.mxu0 %v1864
        %v1875 = vpop.f32.mrf.mxu0
        %v1876 = vadd.f32 0.0, %v1875
        %v1877 = vpop.f32.mrf.mxu0
        %v1878 = vadd.f32 0.0, %v1877
        %1879 = vdwg.mxu0
        %v1882 = vunpack.c.l.b16 %v1824
        %v1883 = vunpack.c.l.b16 %v1825
        %v1884 = vpack.c.b16 %v1883, %v1882
        %v1889 = vunpack.c.l.b16 %v1834
        %v1890 = vunpack.c.l.b16 %v1835
        %v1891 = vunpack.c.l.b16 %v1836
        %v1892 = vunpack.c.l.b16 %v1837
        %v1893 = vpack.c.b16 %v1890, %v1889
        %v1894 = vpack.c.b16 %v1892, %v1891
        %v1898 = vsel %vm1502, %v1884, 0
        %1900 = vmatpush.bf16.msra.mxu0 0
        %1901 = vmatpush.bf16.msra.mxu0 0
        %1902 = vmatpush.bf16.msra.mxu0 0
        %1903 = vmatpush.bf16.msra.mxu0 0
        %1904 = vmatpush.bf16.msra.mxu0 0
        %1905 = vmatpush.bf16.msra.mxu0 0
        %1906 = vmatpush.bf16.msra.mxu0 %v1894
        %1907 = vmatpush.bf16.msra.mxu0 %v1893
        %1908 = vmatmul.bf16.gmra.mxu0 %v1898
        %v1909 = vpop.f32.mrf.mxu0
        %v1910 = vadd.f32 0.0, %v1909
        %v1911 = vpop.f32.mrf.mxu0
        %v1912 = vadd.f32 0.0, %v1911
        %1913 = vdwg.mxu0
        %v1916 = vunpack.c.l.b16 %v1826
        %v1917 = vunpack.c.l.b16 %v1827
        %v1918 = vpack.c.b16 %v1917, %v1916
        %v1923 = vunpack.c.l.b16 %v1838
        %v1924 = vunpack.c.l.b16 %v1839
        %v1925 = vunpack.c.l.b16 %v1840
        %v1926 = vunpack.c.l.b16 %v1841
        %v1927 = vpack.c.b16 %v1924, %v1923
        %v1928 = vpack.c.b16 %v1926, %v1925
        %v1932 = vsel %vm1502, %v1918, 0
        %1934 = vmatpush.bf16.msra.mxu0 0
        %1935 = vmatpush.bf16.msra.mxu0 0
        %1936 = vmatpush.bf16.msra.mxu0 0
        %1937 = vmatpush.bf16.msra.mxu0 0
        %1938 = vmatpush.bf16.msra.mxu0 0
        %1939 = vmatpush.bf16.msra.mxu0 0
        %1940 = vmatpush.bf16.msra.mxu0 %v1928
        %1941 = vmatpush.bf16.msra.mxu0 %v1927
        %1942 = vmatmul.bf16.gmra.mxu0 %v1932
        %v1943 = vpop.f32.mrf.mxu0
        %v1944 = vadd.f32 0.0, %v1943
        %v1945 = vpop.f32.mrf.mxu0
        %v1946 = vadd.f32 0.0, %v1945
        %1947 = vdwg.mxu0
        %v1950 = vunpack.c.l.b16 %v1828
        %v1951 = vunpack.c.l.b16 %v1829
        %v1952 = vpack.c.b16 %v1951, %v1950
        %v1957 = vunpack.c.l.b16 %v1842
        %v1958 = vunpack.c.l.b16 %v1843
        %v1959 = vunpack.c.l.b16 %v1844
        %v1960 = vunpack.c.l.b16 %v1845
        %v1961 = vpack.c.b16 %v1958, %v1957
        %v1962 = vpack.c.b16 %v1960, %v1959
        %v1966 = vsel %vm1502, %v1952, 0
        %1968 = vmatpush.bf16.msra.mxu0 0
        %1969 = vmatpush.bf16.msra.mxu0 0
        %1970 = vmatpush.bf16.msra.mxu0 0
        %1971 = vmatpush.bf16.msra.mxu0 0
        %1972 = vmatpush.bf16.msra.mxu0 0
        %1973 = vmatpush.bf16.msra.mxu0 0
        %1974 = vmatpush.bf16.msra.mxu0 %v1962
        %1975 = vmatpush.bf16.msra.mxu0 %v1961
        %1976 = vmatmul.bf16.gmra.mxu0 %v1966
        %v1977 = vpop.f32.mrf.mxu0
        %v1978 = vadd.f32 0.0, %v1977
        %v1979 = vpop.f32.mrf.mxu0
        %v1980 = vadd.f32 0.0, %v1979
        %1981 = vdwg.mxu0
        %v1982 = vadd.f32 %v1876, %v1910
        %v1983 = vadd.f32 %v1982, %v1944
        %v1984 = vadd.f32 %v1983, %v1978
        %v1985 = vadd.f32 %v1878, %v1912
        %v1986 = vadd.f32 %v1985, %v1946
        %v1987 = vadd.f32 %v1986, %v1980
        %v1988 = vld [vmem:[%s7] sm:$0x1]
        %v1989 = vperm.slane %v1988, 0
        %v1990 = vadd.f32 %v1984, %v1989
        %v1991 = vadd.f32 %v1987, %v1989
        %v1992 = vadd.f32 %v467, %v1990
        %v1993 = vadd.f32 %v468, %v1991
        %v1994 = vld [vmem:[%s8] sm:$0x1]
        %v1995 = vld [vmem:[%s9] sm:$0x1]
        %1996 = vadd.xlane.f32.xlu0 %v1992
        %v1997 = vpop.xlane.xlu0 %1996
        %1998 = vadd.xlane.f32.xlu0 %v1993
        %v1999 = vpop.xlane.xlu0 %1998
        %v2000 = vmul.f32 %v1997, %v481
        %v2001 = vmul.f32 %v1999, %v481
        %v2002 = vsub.f32 %v1992, %v2000
        %v2003 = vsub.f32 %v1993, %v2001
        %v2004 = vmul.f32 %v2002, %v2002
        %v2005 = vmul.f32 %v2003, %v2003
        %2006 = vadd.xlane.f32.xlu0 %v2004
        %v2007 = vpop.xlane.xlu0 %2006
        %2008 = vadd.xlane.f32.xlu0 %v2005
        %v2009 = vpop.xlane.xlu0 %2008
        %v2010 = vmul.f32 %v2007, %v481
        %v2011 = vmul.f32 %v2009, %v481
        %v2012 = vadd.f32 %v2010, 1e-05
        %v2013 = vadd.f32 %v2011, 1e-05
        %v2014 = vrsqrt.pop %v2012
        %v2015 = vmul.f32 %v2014, %v2012
        %v2016 = vmul.f32 %v2015, %v2014
        %v2017 = vmul.f32 0.5, %v2016
        %v2018 = vsub.f32 1.5, %v2017
        %v2019 = vmul.f32 %v2014, %v2018
        %vm2020 = vweird.f32 %v2012
        %vm2021 = vweird.f32 %v2014
        %vm2022 = vmor %vm2020, %vm2021
        %v2023 = vsel %vm2022, %v2014, %v2019
        %v2024 = vrsqrt.pop %v2013
        %v2025 = vmul.f32 %v2024, %v2013
        %v2026 = vmul.f32 %v2025, %v2024
        %v2027 = vmul.f32 0.5, %v2026
        %v2028 = vsub.f32 1.5, %v2027
        %v2029 = vmul.f32 %v2024, %v2028
        %vm2030 = vweird.f32 %v2013
        %vm2031 = vweird.f32 %v2024
        %vm2032 = vmor %vm2030, %vm2031
        %v2033 = vsel %vm2032, %v2024, %v2029
        %v2034 = vmul.f32 %v2002, %v2023
        %v2035 = vmul.f32 %v2003, %v2033
        %v2036 = vperm.slane %v1994, 0
        %v2037 = vmul.f32 %v2034, %v2036
        %v2038 = vmul.f32 %v2035, %v2036
        %v2039 = vperm.slane %v1995, 0
        %v2040 = vadd.f32 %v2037, %v2039
        %v2041 = vadd.f32 %v2038, %v2039
        %v2042 = vpack.c.bf16 %v2041, %v2040
        %v2043 = vld [vmem:[%s10] sm:$0xff]
        %v2044 = vld [vmem:[%s10 + $0x8] sm:$0xff]
        %v2045 = vld [vmem:[%s10 + $0x10] sm:$0xff]
        %v2046 = vld [vmem:[%s10 + $0x18] sm:$0xff]
        %v2047 = vld [vmem:[%s10 + $0x20] sm:$0xff]
        %v2048 = vld [vmem:[%s10 + $0x28] sm:$0xff]
        %v2049 = vld [vmem:[%s10 + $0x30] sm:$0xff]
        %v2050 = vld [vmem:[%s10 + $0x38] sm:$0xff]
        %v2051 = vld [vmem:[%s10 + $0x40] sm:$0xff]
        %v2052 = vld [vmem:[%s10 + $0x48] sm:$0xff]
        %v2053 = vld [vmem:[%s10 + $0x50] sm:$0xff]
        %v2054 = vld [vmem:[%s10 + $0x58] sm:$0xff]
        %v2055 = vld [vmem:[%s10 + $0x60] sm:$0xff]
        %v2056 = vld [vmem:[%s10 + $0x68] sm:$0xff]
        %v2057 = vld [vmem:[%s10 + $0x70] sm:$0xff]
        %v2058 = vld [vmem:[%s10 + $0x78] sm:$0xff]
        %v2059 = vld [vmem:[%s10 + $0x80] sm:$0xff]
        %v2060 = vld [vmem:[%s10 + $0x88] sm:$0xff]
        %v2061 = vld [vmem:[%s10 + $0x90] sm:$0xff]
        %v2062 = vld [vmem:[%s10 + $0x98] sm:$0xff]
        %v2063 = vld [vmem:[%s10 + $0xa0] sm:$0xff]
        %v2064 = vld [vmem:[%s10 + $0xa8] sm:$0xff]
        %v2065 = vld [vmem:[%s10 + $0xb0] sm:$0xff]
        %v2066 = vld [vmem:[%s10 + $0xb8] sm:$0xff]
        %v2067 = vld [vmem:[%s10 + $0xc0] sm:$0xff]
        %v2068 = vld [vmem:[%s10 + $0xc8] sm:$0xff]
        %v2069 = vld [vmem:[%s10 + $0xd0] sm:$0xff]
        %v2070 = vld [vmem:[%s10 + $0xd8] sm:$0xff]
        %v2071 = vld [vmem:[%s10 + $0xe0] sm:$0xff]
        %v2072 = vld [vmem:[%s10 + $0xe8] sm:$0xff]
        %v2073 = vld [vmem:[%s10 + $0xf0] sm:$0xff]
        %v2074 = vld [vmem:[%s10 + $0xf8] sm:$0xff]
        %v2075 = vld [vmem:[%s11] ss:$2 sm:$0xf]
        %v2077 = vperm.slane %v2075, 0
        %v2078 = vperm.slane %v2075, 1
        %v2079 = vperm.slane %v2075, 2
        %v2080 = vperm.slane %v2075, 3
        %v2117 = vunpack.c.l.b16 %v2043
        %v2118 = vunpack.c.h.b16 %v2043
        %v2119 = vunpack.c.l.b16 %v2044
        %v2120 = vunpack.c.h.b16 %v2044
        %v2121 = vunpack.c.l.b16 %v2045
        %v2122 = vunpack.c.h.b16 %v2045
        %v2123 = vunpack.c.l.b16 %v2046
        %v2124 = vunpack.c.h.b16 %v2046
        %v2125 = vunpack.c.l.b16 %v2047
        %v2126 = vunpack.c.h.b16 %v2047
        %v2127 = vunpack.c.l.b16 %v2048
        %v2128 = vunpack.c.h.b16 %v2048
        %v2129 = vunpack.c.l.b16 %v2049
        %v2130 = vunpack.c.h.b16 %v2049
        %v2131 = vunpack.c.l.b16 %v2050
        %v2132 = vunpack.c.h.b16 %v2050
        %v2133 = vunpack.c.l.b16 %v2051
        %v2134 = vunpack.c.h.b16 %v2051
        %v2135 = vunpack.c.l.b16 %v2052
        %v2136 = vunpack.c.h.b16 %v2052
        %v2137 = vunpack.c.l.b16 %v2053
        %v2138 = vunpack.c.h.b16 %v2053
        %v2139 = vunpack.c.l.b16 %v2054
        %v2140 = vunpack.c.h.b16 %v2054
        %v2141 = vunpack.c.l.b16 %v2055
        %v2142 = vunpack.c.h.b16 %v2055
        %v2143 = vunpack.c.l.b16 %v2056
        %v2144 = vunpack.c.h.b16 %v2056
        %v2145 = vunpack.c.l.b16 %v2057
        %v2146 = vunpack.c.h.b16 %v2057
        %v2147 = vunpack.c.l.b16 %v2058
        %v2148 = vunpack.c.h.b16 %v2058
        %v2149 = vunpack.c.l.b16 %v2059
        %v2150 = vunpack.c.h.b16 %v2059
        %v2151 = vunpack.c.l.b16 %v2060
        %v2152 = vunpack.c.h.b16 %v2060
        %v2153 = vunpack.c.l.b16 %v2061
        %v2154 = vunpack.c.h.b16 %v2061
        %v2155 = vunpack.c.l.b16 %v2062
        %v2156 = vunpack.c.h.b16 %v2062
        %v2157 = vunpack.c.l.b16 %v2063
        %v2158 = vunpack.c.h.b16 %v2063
        %v2159 = vunpack.c.l.b16 %v2064
        %v2160 = vunpack.c.h.b16 %v2064
        %v2161 = vunpack.c.l.b16 %v2065
        %v2162 = vunpack.c.h.b16 %v2065
        %v2163 = vunpack.c.l.b16 %v2066
        %v2164 = vunpack.c.h.b16 %v2066
        %v2165 = vunpack.c.l.b16 %v2067
        %v2166 = vunpack.c.h.b16 %v2067
        %v2167 = vunpack.c.l.b16 %v2068
        %v2168 = vunpack.c.h.b16 %v2068
        %v2169 = vunpack.c.l.b16 %v2069
        %v2170 = vunpack.c.h.b16 %v2069
        %v2171 = vunpack.c.l.b16 %v2070
        %v2172 = vunpack.c.h.b16 %v2070
        %v2173 = vunpack.c.l.b16 %v2071
        %v2174 = vunpack.c.h.b16 %v2071
        %v2175 = vunpack.c.l.b16 %v2072
        %v2176 = vunpack.c.h.b16 %v2072
        %v2177 = vunpack.c.l.b16 %v2073
        %v2178 = vunpack.c.h.b16 %v2073
        %v2179 = vunpack.c.l.b16 %v2074
        %v2180 = vunpack.c.h.b16 %v2074
        %v2181 = vpack.c.b16 %v2121, %v2117
        %v2182 = vpack.c.b16 %v2122, %v2118
        %v2183 = vpack.c.b16 %v2123, %v2119
        %v2184 = vpack.c.b16 %v2124, %v2120
        %v2185 = vpack.c.b16 %v2129, %v2125
        %v2186 = vpack.c.b16 %v2130, %v2126
        %v2187 = vpack.c.b16 %v2131, %v2127
        %v2188 = vpack.c.b16 %v2132, %v2128
        %v2189 = vpack.c.b16 %v2137, %v2133
        %v2190 = vpack.c.b16 %v2138, %v2134
        %v2191 = vpack.c.b16 %v2139, %v2135
        %v2192 = vpack.c.b16 %v2140, %v2136
        %v2193 = vpack.c.b16 %v2145, %v2141
        %v2194 = vpack.c.b16 %v2146, %v2142
        %v2195 = vpack.c.b16 %v2147, %v2143
        %v2196 = vpack.c.b16 %v2148, %v2144
        %v2197 = vpack.c.b16 %v2153, %v2149
        %v2198 = vpack.c.b16 %v2154, %v2150
        %v2199 = vpack.c.b16 %v2155, %v2151
        %v2200 = vpack.c.b16 %v2156, %v2152
        %v2201 = vpack.c.b16 %v2161, %v2157
        %v2202 = vpack.c.b16 %v2162, %v2158
        %v2203 = vpack.c.b16 %v2163, %v2159
        %v2204 = vpack.c.b16 %v2164, %v2160
        %v2205 = vpack.c.b16 %v2169, %v2165
        %v2206 = vpack.c.b16 %v2170, %v2166
        %v2207 = vpack.c.b16 %v2171, %v2167
        %v2208 = vpack.c.b16 %v2172, %v2168
        %v2209 = vpack.c.b16 %v2177, %v2173
        %v2210 = vpack.c.b16 %v2178, %v2174
        %v2211 = vpack.c.b16 %v2179, %v2175
        %v2212 = vpack.c.b16 %v2180, %v2176
        %2245 = vmatpush.bf16.msra.mxu0 %v2209
        %2246 = vmatpush.bf16.msra.mxu0 %v2205
        %2247 = vmatpush.bf16.msra.mxu0 %v2201
        %2248 = vmatpush.bf16.msra.mxu0 %v2197
        %2249 = vmatpush.bf16.msra.mxu0 %v2193
        %2250 = vmatpush.bf16.msra.mxu0 %v2189
        %2251 = vmatpush.bf16.msra.mxu0 %v2185
        %2252 = vmatpush.bf16.msra.mxu0 %v2181
        %2253 = vmatmul.bf16.gmra.mxu0 %v2042
        %v2254 = vpop.f32.mrf.mxu0
        %v2255 = vadd.f32 %v2077, %v2254
        %v2256 = vpop.f32.mrf.mxu0
        %v2257 = vadd.f32 %v2077, %v2256
        %2258 = vdwg.mxu0
        %2259 = vmatpush.bf16.msra.mxu0 %v2210
        %2260 = vmatpush.bf16.msra.mxu0 %v2206
        %2261 = vmatpush.bf16.msra.mxu0 %v2202
        %2262 = vmatpush.bf16.msra.mxu0 %v2198
        %2263 = vmatpush.bf16.msra.mxu0 %v2194
        %2264 = vmatpush.bf16.msra.mxu0 %v2190
        %2265 = vmatpush.bf16.msra.mxu0 %v2186
        %2266 = vmatpush.bf16.msra.mxu0 %v2182
        %2267 = vmatmul.bf16.gmra.mxu0 %v2042
        %v2268 = vpop.f32.mrf.mxu0
        %v2269 = vadd.f32 %v2078, %v2268
        %v2270 = vpop.f32.mrf.mxu0
        %v2271 = vadd.f32 %v2078, %v2270
        %2272 = vdwg.mxu0
        %2273 = vmatpush.bf16.msra.mxu0 %v2211
        %2274 = vmatpush.bf16.msra.mxu0 %v2207
        %2275 = vmatpush.bf16.msra.mxu0 %v2203
        %2276 = vmatpush.bf16.msra.mxu0 %v2199
        %2277 = vmatpush.bf16.msra.mxu0 %v2195
        %2278 = vmatpush.bf16.msra.mxu0 %v2191
        %2279 = vmatpush.bf16.msra.mxu0 %v2187
        %2280 = vmatpush.bf16.msra.mxu0 %v2183
        %2281 = vmatmul.bf16.gmra.mxu0 %v2042
        %v2282 = vpop.f32.mrf.mxu0
        %v2283 = vadd.f32 %v2079, %v2282
        %v2284 = vpop.f32.mrf.mxu0
        %v2285 = vadd.f32 %v2079, %v2284
        %2286 = vdwg.mxu0
        %2287 = vmatpush.bf16.msra.mxu0 %v2212
        %2288 = vmatpush.bf16.msra.mxu0 %v2208
        %2289 = vmatpush.bf16.msra.mxu0 %v2204
        %2290 = vmatpush.bf16.msra.mxu0 %v2200
        %2291 = vmatpush.bf16.msra.mxu0 %v2196
        %2292 = vmatpush.bf16.msra.mxu0 %v2192
        %2293 = vmatpush.bf16.msra.mxu0 %v2188
        %2294 = vmatpush.bf16.msra.mxu0 %v2184
        %2295 = vmatmul.bf16.gmra.mxu0 %v2042
        %v2296 = vpop.f32.mrf.mxu0
        %v2297 = vadd.f32 %v2080, %v2296
        %v2298 = vpop.f32.mrf.mxu0
        %v2299 = vadd.f32 %v2080, %v2298
        %2300 = vdwg.mxu0
        %v2301 = vmul.f32 %v2255, 0.5
        %v2302 = vmul.f32 %v2269, 0.5
        %v2303 = vmul.f32 %v2283, 0.5
        %v2304 = vmul.f32 %v2297, 0.5
        %v2305 = vmul.f32 %v2257, 0.5
        %v2306 = vmul.f32 %v2271, 0.5
        %v2307 = vmul.f32 %v2285, 0.5
        %v2308 = vmul.f32 %v2299, 0.5
        %v2309 = vmul.f32 %v2255, 0.70710677
        %v2310 = vmul.f32 %v2269, 0.70710677
        %v2311 = vmul.f32 %v2283, 0.70710677
        %v2312 = vmul.f32 %v2297, 0.70710677
        %v2313 = vmul.f32 %v2257, 0.70710677
        %v2314 = vmul.f32 %v2271, 0.70710677
        %v2315 = vmul.f32 %v2285, 0.70710677
        %v2316 = vmul.f32 %v2299, 0.70710677
        %vm2317 = vcmp.ge.f32.partialorder %v2309, 0.0
        %vm2318 = vcmp.ge.f32.partialorder %v2310, 0.0
        %vm2319 = vcmp.ge.f32.partialorder %v2311, 0.0
        %vm2320 = vcmp.ge.f32.partialorder %v2312, 0.0
        %vm2321 = vcmp.ge.f32.partialorder %v2313, 0.0
        %vm2322 = vcmp.ge.f32.partialorder %v2314, 0.0
        %vm2323 = vcmp.ge.f32.partialorder %v2315, 0.0
        %vm2324 = vcmp.ge.f32.partialorder %v2316, 0.0
        %v2325 = vsel %vm2317, 1.0, -1.0
        %v2326 = vsel %vm2318, 1.0, -1.0
        %v2327 = vsel %vm2319, 1.0, -1.0
        %v2328 = vsel %vm2320, 1.0, -1.0
        %v2329 = vsel %vm2321, 1.0, -1.0
        %v2330 = vsel %vm2322, 1.0, -1.0
        %v2331 = vsel %vm2323, 1.0, -1.0
        %v2332 = vsel %vm2324, 1.0, -1.0
        %v2333 = vand.u32 2147483647, %v2309
        %v2334 = vand.u32 2147483647, %v2310
        %v2335 = vand.u32 2147483647, %v2311
        %v2336 = vand.u32 2147483647, %v2312
        %v2337 = vand.u32 2147483647, %v2313
        %v2338 = vand.u32 2147483647, %v2314
        %v2339 = vand.u32 2147483647, %v2315
        %v2340 = vand.u32 2147483647, %v2316
        %v2341 = vmul.f32 %v2333, 0.3275911
        %v2342 = vmul.f32 %v2334, 0.3275911
        %v2343 = vmul.f32 %v2335, 0.3275911
        %v2344 = vmul.f32 %v2336, 0.3275911
        %v2345 = vmul.f32 %v2337, 0.3275911
        %v2346 = vmul.f32 %v2338, 0.3275911
        %v2347 = vmul.f32 %v2339, 0.3275911
        %v2348 = vmul.f32 %v2340, 0.3275911
        %v2349 = vadd.f32 %v2341, 1.0
        %v2350 = vadd.f32 %v2342, 1.0
        %v2351 = vadd.f32 %v2343, 1.0
        %v2352 = vadd.f32 %v2344, 1.0
        %v2353 = vadd.f32 %v2345, 1.0
        %v2354 = vadd.f32 %v2346, 1.0
        %v2355 = vadd.f32 %v2347, 1.0
        %v2356 = vadd.f32 %v2348, 1.0
        %v2357 = vrcp.pop %v2349
        %v2358 = vmul.f32 %v2349, %v2357
        %v2359 = vsub.f32 1.0, %v2358
        %v2360 = vmul.f32 %v2357, %v2359
        %v2361 = vadd.f32 %v2357, %v2360
        %vm2362 = vweird.f32 %v2349
        %vm2363 = vweird.f32 %v2357
        %vm2364 = vmor %vm2362, %vm2363
        %v2365 = vsel %vm2364, %v2357, %v2361
        %v2366 = vand.u32 2147483647, %v2349
        %vm2367 = vcmp.eq.f32.partialorder %v2366, 8.507059e+37
        %v2368 = vand.u32 %v2349, 2147483648
        %v2369 = vor.u32 1.1754944e-38, %v2368
        %v2370 = vsel %vm2367, %v2369, %v2365
        %v2371 = vmul.f32 1.0, %v2370
        %v2372 = vrcp.pop %v2350
        %v2373 = vmul.f32 %v2350, %v2372
        %v2374 = vsub.f32 1.0, %v2373
        %v2375 = vmul.f32 %v2372, %v2374
        %v2376 = vadd.f32 %v2372, %v2375
        %vm2377 = vweird.f32 %v2350
        %vm2378 = vweird.f32 %v2372
        %vm2379 = vmor %vm2377, %vm2378
        %v2380 = vsel %vm2379, %v2372, %v2376
        %v2381 = vand.u32 2147483647, %v2350
        %vm2382 = vcmp.eq.f32.partialorder %v2381, 8.507059e+37
        %v2383 = vand.u32 %v2350, 2147483648
        %v2384 = vor.u32 1.1754944e-38, %v2383
        %v2385 = vsel %vm2382, %v2384, %v2380
        %v2386 = vmul.f32 1.0, %v2385
        %v2387 = vrcp.pop %v2351
        %v2388 = vmul.f32 %v2351, %v2387
        %v2389 = vsub.f32 1.0, %v2388
        %v2390 = vmul.f32 %v2387, %v2389
        %v2391 = vadd.f32 %v2387, %v2390
        %vm2392 = vweird.f32 %v2351
        %vm2393 = vweird.f32 %v2387
        %vm2394 = vmor %vm2392, %vm2393
        %v2395 = vsel %vm2394, %v2387, %v2391
        %v2396 = vand.u32 2147483647, %v2351
        %vm2397 = vcmp.eq.f32.partialorder %v2396, 8.507059e+37
        %v2398 = vand.u32 %v2351, 2147483648
        %v2399 = vor.u32 1.1754944e-38, %v2398
        %v2400 = vsel %vm2397, %v2399, %v2395
        %v2401 = vmul.f32 1.0, %v2400
        %v2402 = vrcp.pop %v2352
        %v2403 = vmul.f32 %v2352, %v2402
        %v2404 = vsub.f32 1.0, %v2403
        %v2405 = vmul.f32 %v2402, %v2404
        %v2406 = vadd.f32 %v2402, %v2405
        %vm2407 = vweird.f32 %v2352
        %vm2408 = vweird.f32 %v2402
        %vm2409 = vmor %vm2407, %vm2408
        %v2410 = vsel %vm2409, %v2402, %v2406
        %v2411 = vand.u32 2147483647, %v2352
        %vm2412 = vcmp.eq.f32.partialorder %v2411, 8.507059e+37
        %v2413 = vand.u32 %v2352, 2147483648
        %v2414 = vor.u32 1.1754944e-38, %v2413
        %v2415 = vsel %vm2412, %v2414, %v2410
        %v2416 = vmul.f32 1.0, %v2415
        %v2417 = vrcp.pop %v2353
        %v2418 = vmul.f32 %v2353, %v2417
        %v2419 = vsub.f32 1.0, %v2418
        %v2420 = vmul.f32 %v2417, %v2419
        %v2421 = vadd.f32 %v2417, %v2420
        %vm2422 = vweird.f32 %v2353
        %vm2423 = vweird.f32 %v2417
        %vm2424 = vmor %vm2422, %vm2423
        %v2425 = vsel %vm2424, %v2417, %v2421
        %v2426 = vand.u32 2147483647, %v2353
        %vm2427 = vcmp.eq.f32.partialorder %v2426, 8.507059e+37
        %v2428 = vand.u32 %v2353, 2147483648
        %v2429 = vor.u32 1.1754944e-38, %v2428
        %v2430 = vsel %vm2427, %v2429, %v2425
        %v2431 = vmul.f32 1.0, %v2430
        %v2432 = vrcp.pop %v2354
        %v2433 = vmul.f32 %v2354, %v2432
        %v2434 = vsub.f32 1.0, %v2433
        %v2435 = vmul.f32 %v2432, %v2434
        %v2436 = vadd.f32 %v2432, %v2435
        %vm2437 = vweird.f32 %v2354
        %vm2438 = vweird.f32 %v2432
        %vm2439 = vmor %vm2437, %vm2438
        %v2440 = vsel %vm2439, %v2432, %v2436
        %v2441 = vand.u32 2147483647, %v2354
        %vm2442 = vcmp.eq.f32.partialorder %v2441, 8.507059e+37
        %v2443 = vand.u32 %v2354, 2147483648
        %v2444 = vor.u32 1.1754944e-38, %v2443
        %v2445 = vsel %vm2442, %v2444, %v2440
        %v2446 = vmul.f32 1.0, %v2445
        %v2447 = vrcp.pop %v2355
        %v2448 = vmul.f32 %v2355, %v2447
        %v2449 = vsub.f32 1.0, %v2448
        %v2450 = vmul.f32 %v2447, %v2449
        %v2451 = vadd.f32 %v2447, %v2450
        %vm2452 = vweird.f32 %v2355
        %vm2453 = vweird.f32 %v2447
        %vm2454 = vmor %vm2452, %vm2453
        %v2455 = vsel %vm2454, %v2447, %v2451
        %v2456 = vand.u32 2147483647, %v2355
        %vm2457 = vcmp.eq.f32.partialorder %v2456, 8.507059e+37
        %v2458 = vand.u32 %v2355, 2147483648
        %v2459 = vor.u32 1.1754944e-38, %v2458
        %v2460 = vsel %vm2457, %v2459, %v2455
        %v2461 = vmul.f32 1.0, %v2460
        %v2462 = vrcp.pop %v2356
        %v2463 = vmul.f32 %v2356, %v2462
        %v2464 = vsub.f32 1.0, %v2463
        %v2465 = vmul.f32 %v2462, %v2464
        %v2466 = vadd.f32 %v2462, %v2465
        %vm2467 = vweird.f32 %v2356
        %vm2468 = vweird.f32 %v2462
        %vm2469 = vmor %vm2467, %vm2468
        %v2470 = vsel %vm2469, %v2462, %v2466
        %v2471 = vand.u32 2147483647, %v2356
        %vm2472 = vcmp.eq.f32.partialorder %v2471, 8.507059e+37
        %v2473 = vand.u32 %v2356, 2147483648
        %v2474 = vor.u32 1.1754944e-38, %v2473
        %v2475 = vsel %vm2472, %v2474, %v2470
        %v2476 = vmul.f32 1.0, %v2475
        %v2477 = vmul.f32 %v2371, 1.0614054
        %v2478 = vmul.f32 %v2386, 1.0614054
        %v2479 = vmul.f32 %v2401, 1.0614054
        %v2480 = vmul.f32 %v2416, 1.0614054
        %v2481 = vmul.f32 %v2431, 1.0614054
        %v2482 = vmul.f32 %v2446, 1.0614054
        %v2483 = vmul.f32 %v2461, 1.0614054
        %v2484 = vmul.f32 %v2476, 1.0614054
        %v2485 = vadd.f32 %v2477, -1.4531521
        %v2486 = vadd.f32 %v2478, -1.4531521
        %v2487 = vadd.f32 %v2479, -1.4531521
        %v2488 = vadd.f32 %v2480, -1.4531521
        %v2489 = vadd.f32 %v2481, -1.4531521
        %v2490 = vadd.f32 %v2482, -1.4531521
        %v2491 = vadd.f32 %v2483, -1.4531521
        %v2492 = vadd.f32 %v2484, -1.4531521
        %v2493 = vmul.f32 %v2485, %v2371
        %v2494 = vmul.f32 %v2486, %v2386
        %v2495 = vmul.f32 %v2487, %v2401
        %v2496 = vmul.f32 %v2488, %v2416
        %v2497 = vmul.f32 %v2489, %v2431
        %v2498 = vmul.f32 %v2490, %v2446
        %v2499 = vmul.f32 %v2491, %v2461
        %v2500 = vmul.f32 %v2492, %v2476
        %v2501 = vadd.f32 %v2493, 1.4214138
        %v2502 = vadd.f32 %v2494, 1.4214138
        %v2503 = vadd.f32 %v2495, 1.4214138
        %v2504 = vadd.f32 %v2496, 1.4214138
        %v2505 = vadd.f32 %v2497, 1.4214138
        %v2506 = vadd.f32 %v2498, 1.4214138
        %v2507 = vadd.f32 %v2499, 1.4214138
        %v2508 = vadd.f32 %v2500, 1.4214138
        %v2509 = vmul.f32 %v2501, %v2371
        %v2510 = vmul.f32 %v2502, %v2386
        %v2511 = vmul.f32 %v2503, %v2401
        %v2512 = vmul.f32 %v2504, %v2416
        %v2513 = vmul.f32 %v2505, %v2431
        %v2514 = vmul.f32 %v2506, %v2446
        %v2515 = vmul.f32 %v2507, %v2461
        %v2516 = vmul.f32 %v2508, %v2476
        %v2517 = vadd.f32 %v2509, -0.28449672
        %v2518 = vadd.f32 %v2510, -0.28449672
        %v2519 = vadd.f32 %v2511, -0.28449672
        %v2520 = vadd.f32 %v2512, -0.28449672
        %v2521 = vadd.f32 %v2513, -0.28449672
        %v2522 = vadd.f32 %v2514, -0.28449672
        %v2523 = vadd.f32 %v2515, -0.28449672
        %v2524 = vadd.f32 %v2516, -0.28449672
        %v2525 = vmul.f32 %v2517, %v2371
        %v2526 = vmul.f32 %v2518, %v2386
        %v2527 = vmul.f32 %v2519, %v2401
        %v2528 = vmul.f32 %v2520, %v2416
        %v2529 = vmul.f32 %v2521, %v2431
        %v2530 = vmul.f32 %v2522, %v2446
        %v2531 = vmul.f32 %v2523, %v2461
        %v2532 = vmul.f32 %v2524, %v2476
        %v2533 = vadd.f32 %v2525, 0.2548296
        %v2534 = vadd.f32 %v2526, 0.2548296
        %v2535 = vadd.f32 %v2527, 0.2548296
        %v2536 = vadd.f32 %v2528, 0.2548296
        %v2537 = vadd.f32 %v2529, 0.2548296
        %v2538 = vadd.f32 %v2530, 0.2548296
        %v2539 = vadd.f32 %v2531, 0.2548296
        %v2540 = vadd.f32 %v2532, 0.2548296
        %v2541 = vmul.f32 %v2533, %v2371
        %v2542 = vmul.f32 %v2534, %v2386
        %v2543 = vmul.f32 %v2535, %v2401
        %v2544 = vmul.f32 %v2536, %v2416
        %v2545 = vmul.f32 %v2537, %v2431
        %v2546 = vmul.f32 %v2538, %v2446
        %v2547 = vmul.f32 %v2539, %v2461
        %v2548 = vmul.f32 %v2540, %v2476
        %v2549 = vsub.f32 0.0, %v2333
        %v2550 = vsub.f32 0.0, %v2334
        %v2551 = vsub.f32 0.0, %v2335
        %v2552 = vsub.f32 0.0, %v2336
        %v2553 = vsub.f32 0.0, %v2337
        %v2554 = vsub.f32 0.0, %v2338
        %v2555 = vsub.f32 0.0, %v2339
        %v2556 = vsub.f32 0.0, %v2340
        %v2557 = vmul.f32 %v2549, %v2333
        %v2558 = vmul.f32 %v2550, %v2334
        %v2559 = vmul.f32 %v2551, %v2335
        %v2560 = vmul.f32 %v2552, %v2336
        %v2561 = vmul.f32 %v2553, %v2337
        %v2562 = vmul.f32 %v2554, %v2338
        %v2563 = vmul.f32 %v2555, %v2339
        %v2564 = vmul.f32 %v2556, %v2340
        %v2565 = vmul.f32 %v2557, 1.442695
        %v2566 = vpow.pop %v2565
        %v2567 = vmul.f32 %v2558, 1.442695
        %v2568 = vpow.pop %v2567
        %v2569 = vmul.f32 %v2559, 1.442695
        %v2570 = vpow.pop %v2569
        %v2571 = vmul.f32 %v2560, 1.442695
        %v2572 = vpow.pop %v2571
        %v2573 = vmul.f32 %v2561, 1.442695
        %v2574 = vpow.pop %v2573
        %v2575 = vmul.f32 %v2562, 1.442695
        %v2576 = vpow.pop %v2575
        %v2577 = vmul.f32 %v2563, 1.442695
        %v2578 = vpow.pop %v2577
        %v2579 = vmul.f32 %v2564, 1.442695
        %v2580 = vpow.pop %v2579
        %v2581 = vmul.f32 %v2541, %v2566
        %v2582 = vmul.f32 %v2542, %v2568
        %v2583 = vmul.f32 %v2543, %v2570
        %v2584 = vmul.f32 %v2544, %v2572
        %v2585 = vmul.f32 %v2545, %v2574
        %v2586 = vmul.f32 %v2546, %v2576
        %v2587 = vmul.f32 %v2547, %v2578
        %v2588 = vmul.f32 %v2548, %v2580
        %v2589 = vsub.f32 1.0, %v2581
        %v2590 = vsub.f32 1.0, %v2582
        %v2591 = vsub.f32 1.0, %v2583
        %v2592 = vsub.f32 1.0, %v2584
        %v2593 = vsub.f32 1.0, %v2585
        %v2594 = vsub.f32 1.0, %v2586
        %v2595 = vsub.f32 1.0, %v2587
        %v2596 = vsub.f32 1.0, %v2588
        %v2597 = vmul.f32 %v2325, %v2589
        %v2598 = vmul.f32 %v2326, %v2590
        %v2599 = vmul.f32 %v2327, %v2591
        %v2600 = vmul.f32 %v2328, %v2592
        %v2601 = vmul.f32 %v2329, %v2593
        %v2602 = vmul.f32 %v2330, %v2594
        %v2603 = vmul.f32 %v2331, %v2595
        %v2604 = vmul.f32 %v2332, %v2596
        %v2605 = vadd.f32 %v2597, 1.0
        %v2606 = vadd.f32 %v2598, 1.0
        %v2607 = vadd.f32 %v2599, 1.0
        %v2608 = vadd.f32 %v2600, 1.0
        %v2609 = vadd.f32 %v2601, 1.0
        %v2610 = vadd.f32 %v2602, 1.0
        %v2611 = vadd.f32 %v2603, 1.0
        %v2612 = vadd.f32 %v2604, 1.0
        %v2613 = vmul.f32 %v2301, %v2605
        %v2614 = vmul.f32 %v2302, %v2606
        %v2615 = vmul.f32 %v2303, %v2607
        %v2616 = vmul.f32 %v2304, %v2608
        %v2617 = vmul.f32 %v2305, %v2609
        %v2618 = vmul.f32 %v2306, %v2610
        %v2619 = vmul.f32 %v2307, %v2611
        %v2620 = vmul.f32 %v2308, %v2612
        %v2621 = vpack.c.bf16 %v2617, %v2613
        %v2622 = vpack.c.bf16 %v2618, %v2614
        %v2623 = vpack.c.bf16 %v2619, %v2615
        %v2624 = vpack.c.bf16 %v2620, %v2616
        %v2625 = vld [vmem:[%s12] sm:$0xf]
        %v2626 = vld [vmem:[%s12 + $0x4] sm:$0xf]
        %v2627 = vld [vmem:[%s12 + $0x8] sm:$0xf]
        %v2628 = vld [vmem:[%s12 + $0xc] sm:$0xf]
        %v2629 = vld [vmem:[%s12 + $0x10] sm:$0xf]
        %v2630 = vld [vmem:[%s12 + $0x14] sm:$0xf]
        %v2631 = vld [vmem:[%s12 + $0x18] sm:$0xf]
        %v2632 = vld [vmem:[%s12 + $0x1c] sm:$0xf]
        %v2633 = vld [vmem:[%s12 + $0x20] sm:$0xf]
        %v2634 = vld [vmem:[%s12 + $0x24] sm:$0xf]
        %v2635 = vld [vmem:[%s12 + $0x28] sm:$0xf]
        %v2636 = vld [vmem:[%s12 + $0x2c] sm:$0xf]
        %v2637 = vld [vmem:[%s12 + $0x30] sm:$0xf]
        %v2638 = vld [vmem:[%s12 + $0x34] sm:$0xf]
        %v2639 = vld [vmem:[%s12 + $0x38] sm:$0xf]
        %v2640 = vld [vmem:[%s12 + $0x3c] sm:$0xf]
        %v2641 = vld [vmem:[%s12 + $0x40] sm:$0xf]
        %v2642 = vld [vmem:[%s12 + $0x44] sm:$0xf]
        %v2643 = vld [vmem:[%s12 + $0x48] sm:$0xf]
        %v2644 = vld [vmem:[%s12 + $0x4c] sm:$0xf]
        %v2645 = vld [vmem:[%s12 + $0x50] sm:$0xf]
        %v2646 = vld [vmem:[%s12 + $0x54] sm:$0xf]
        %v2647 = vld [vmem:[%s12 + $0x58] sm:$0xf]
        %v2648 = vld [vmem:[%s12 + $0x5c] sm:$0xf]
        %v2649 = vld [vmem:[%s12 + $0x60] sm:$0xf]
        %v2650 = vld [vmem:[%s12 + $0x64] sm:$0xf]
        %v2651 = vld [vmem:[%s12 + $0x68] sm:$0xf]
        %v2652 = vld [vmem:[%s12 + $0x6c] sm:$0xf]
        %v2653 = vld [vmem:[%s12 + $0x70] sm:$0xf]
        %v2654 = vld [vmem:[%s12 + $0x74] sm:$0xf]
        %v2655 = vld [vmem:[%s12 + $0x78] sm:$0xf]
        %v2656 = vld [vmem:[%s12 + $0x7c] sm:$0xf]
        %v2657 = vld [vmem:[%s12 + $0x80] sm:$0xf]
        %v2658 = vld [vmem:[%s12 + $0x84] sm:$0xf]
        %v2659 = vld [vmem:[%s12 + $0x88] sm:$0xf]
        %v2660 = vld [vmem:[%s12 + $0x8c] sm:$0xf]
        %v2661 = vld [vmem:[%s12 + $0x90] sm:$0xf]
        %v2662 = vld [vmem:[%s12 + $0x94] sm:$0xf]
        %v2663 = vld [vmem:[%s12 + $0x98] sm:$0xf]
        %v2664 = vld [vmem:[%s12 + $0x9c] sm:$0xf]
        %v2665 = vld [vmem:[%s12 + $0xa0] sm:$0xf]
        %v2666 = vld [vmem:[%s12 + $0xa4] sm:$0xf]
        %v2667 = vld [vmem:[%s12 + $0xa8] sm:$0xf]
        %v2668 = vld [vmem:[%s12 + $0xac] sm:$0xf]
        %v2669 = vld [vmem:[%s12 + $0xb0] sm:$0xf]
        %v2670 = vld [vmem:[%s12 + $0xb4] sm:$0xf]
        %v2671 = vld [vmem:[%s12 + $0xb8] sm:$0xf]
        %v2672 = vld [vmem:[%s12 + $0xbc] sm:$0xf]
        %v2673 = vld [vmem:[%s12 + $0xc0] sm:$0xf]
        %v2674 = vld [vmem:[%s12 + $0xc4] sm:$0xf]
        %v2675 = vld [vmem:[%s12 + $0xc8] sm:$0xf]
        %v2676 = vld [vmem:[%s12 + $0xcc] sm:$0xf]
        %v2677 = vld [vmem:[%s12 + $0xd0] sm:$0xf]
        %v2678 = vld [vmem:[%s12 + $0xd4] sm:$0xf]
        %v2679 = vld [vmem:[%s12 + $0xd8] sm:$0xf]
        %v2680 = vld [vmem:[%s12 + $0xdc] sm:$0xf]
        %v2681 = vld [vmem:[%s12 + $0xe0] sm:$0xf]
        %v2682 = vld [vmem:[%s12 + $0xe4] sm:$0xf]
        %v2683 = vld [vmem:[%s12 + $0xe8] sm:$0xf]
        %v2684 = vld [vmem:[%s12 + $0xec] sm:$0xf]
        %v2685 = vld [vmem:[%s12 + $0xf0] sm:$0xf]
        %v2686 = vld [vmem:[%s12 + $0xf4] sm:$0xf]
        %v2687 = vld [vmem:[%s12 + $0xf8] sm:$0xf]
        %v2688 = vld [vmem:[%s12 + $0xfc] sm:$0xf]
        %v2689 = vld [vmem:[%s13] sm:$0x1]
        %v2690 = vperm.slane %v2689, 0
        %v2755 = vunpack.c.l.b16 %v2625
        %v2756 = vunpack.c.l.b16 %v2626
        %v2757 = vunpack.c.l.b16 %v2627
        %v2758 = vunpack.c.l.b16 %v2628
        %v2759 = vunpack.c.l.b16 %v2629
        %v2760 = vunpack.c.l.b16 %v2630
        %v2761 = vunpack.c.l.b16 %v2631
        %v2762 = vunpack.c.l.b16 %v2632
        %v2763 = vunpack.c.l.b16 %v2633
        %v2764 = vunpack.c.l.b16 %v2634
        %v2765 = vunpack.c.l.b16 %v2635
        %v2766 = vunpack.c.l.b16 %v2636
        %v2767 = vunpack.c.l.b16 %v2637
        %v2768 = vunpack.c.l.b16 %v2638
        %v2769 = vunpack.c.l.b16 %v2639
        %v2770 = vunpack.c.l.b16 %v2640
        %v2771 = vunpack.c.l.b16 %v2641
        %v2772 = vunpack.c.l.b16 %v2642
        %v2773 = vunpack.c.l.b16 %v2643
        %v2774 = vunpack.c.l.b16 %v2644
        %v2775 = vunpack.c.l.b16 %v2645
        %v2776 = vunpack.c.l.b16 %v2646
        %v2777 = vunpack.c.l.b16 %v2647
        %v2778 = vunpack.c.l.b16 %v2648
        %v2779 = vunpack.c.l.b16 %v2649
        %v2780 = vunpack.c.l.b16 %v2650
        %v2781 = vunpack.c.l.b16 %v2651
        %v2782 = vunpack.c.l.b16 %v2652
        %v2783 = vunpack.c.l.b16 %v2653
        %v2784 = vunpack.c.l.b16 %v2654
        %v2785 = vunpack.c.l.b16 %v2655
        %v2786 = vunpack.c.l.b16 %v2656
        %v2787 = vunpack.c.l.b16 %v2657
        %v2788 = vunpack.c.l.b16 %v2658
        %v2789 = vunpack.c.l.b16 %v2659
        %v2790 = vunpack.c.l.b16 %v2660
        %v2791 = vunpack.c.l.b16 %v2661
        %v2792 = vunpack.c.l.b16 %v2662
        %v2793 = vunpack.c.l.b16 %v2663
        %v2794 = vunpack.c.l.b16 %v2664
        %v2795 = vunpack.c.l.b16 %v2665
        %v2796 = vunpack.c.l.b16 %v2666
        %v2797 = vunpack.c.l.b16 %v2667
        %v2798 = vunpack.c.l.b16 %v2668
        %v2799 = vunpack.c.l.b16 %v2669
        %v2800 = vunpack.c.l.b16 %v2670
        %v2801 = vunpack.c.l.b16 %v2671
        %v2802 = vunpack.c.l.b16 %v2672
        %v2803 = vunpack.c.l.b16 %v2673
        %v2804 = vunpack.c.l.b16 %v2674
        %v2805 = vunpack.c.l.b16 %v2675
        %v2806 = vunpack.c.l.b16 %v2676
        %v2807 = vunpack.c.l.b16 %v2677
        %v2808 = vunpack.c.l.b16 %v2678
        %v2809 = vunpack.c.l.b16 %v2679
        %v2810 = vunpack.c.l.b16 %v2680
        %v2811 = vunpack.c.l.b16 %v2681
        %v2812 = vunpack.c.l.b16 %v2682
        %v2813 = vunpack.c.l.b16 %v2683
        %v2814 = vunpack.c.l.b16 %v2684
        %v2815 = vunpack.c.l.b16 %v2685
        %v2816 = vunpack.c.l.b16 %v2686
        %v2817 = vunpack.c.l.b16 %v2687
        %v2818 = vunpack.c.l.b16 %v2688
        %v2819 = vpack.c.b16 %v2756, %v2755
        %v2820 = vpack.c.b16 %v2758, %v2757
        %v2821 = vpack.c.b16 %v2760, %v2759
        %v2822 = vpack.c.b16 %v2762, %v2761
        %v2823 = vpack.c.b16 %v2764, %v2763
        %v2824 = vpack.c.b16 %v2766, %v2765
        %v2825 = vpack.c.b16 %v2768, %v2767
        %v2826 = vpack.c.b16 %v2770, %v2769
        %v2827 = vpack.c.b16 %v2772, %v2771
        %v2828 = vpack.c.b16 %v2774, %v2773
        %v2829 = vpack.c.b16 %v2776, %v2775
        %v2830 = vpack.c.b16 %v2778, %v2777
        %v2831 = vpack.c.b16 %v2780, %v2779
        %v2832 = vpack.c.b16 %v2782, %v2781
        %v2833 = vpack.c.b16 %v2784, %v2783
        %v2834 = vpack.c.b16 %v2786, %v2785
        %v2835 = vpack.c.b16 %v2788, %v2787
        %v2836 = vpack.c.b16 %v2790, %v2789
        %v2837 = vpack.c.b16 %v2792, %v2791
        %v2838 = vpack.c.b16 %v2794, %v2793
        %v2839 = vpack.c.b16 %v2796, %v2795
        %v2840 = vpack.c.b16 %v2798, %v2797
        %v2841 = vpack.c.b16 %v2800, %v2799
        %v2842 = vpack.c.b16 %v2802, %v2801
        %v2843 = vpack.c.b16 %v2804, %v2803
        %v2844 = vpack.c.b16 %v2806, %v2805
        %v2845 = vpack.c.b16 %v2808, %v2807
        %v2846 = vpack.c.b16 %v2810, %v2809
        %v2847 = vpack.c.b16 %v2812, %v2811
        %v2848 = vpack.c.b16 %v2814, %v2813
        %v2849 = vpack.c.b16 %v2816, %v2815
        %v2850 = vpack.c.b16 %v2818, %v2817
        %2883 = vmatpush.bf16.msra.mxu0 %v2826
        %2884 = vmatpush.bf16.msra.mxu0 %v2825
        %2885 = vmatpush.bf16.msra.mxu0 %v2824
        %2886 = vmatpush.bf16.msra.mxu0 %v2823
        %2887 = vmatpush.bf16.msra.mxu0 %v2822
        %2888 = vmatpush.bf16.msra.mxu0 %v2821
        %2889 = vmatpush.bf16.msra.mxu0 %v2820
        %2890 = vmatpush.bf16.msra.mxu0 %v2819
        %2891 = vmatmul.bf16.gmra.mxu0 %v2621
        %v2892 = vpop.f32.mrf.mxu0
        %v2893 = vadd.f32 %v2690, %v2892
        %v2894 = vpop.f32.mrf.mxu0
        %v2895 = vadd.f32 %v2690, %v2894
        %2896 = vdwg.mxu0
        %2897 = vmatpush.bf16.msra.mxu0 %v2834
        %2898 = vmatpush.bf16.msra.mxu0 %v2833
        %2899 = vmatpush.bf16.msra.mxu0 %v2832
        %2900 = vmatpush.bf16.msra.mxu0 %v2831
        %2901 = vmatpush.bf16.msra.mxu0 %v2830
        %2902 = vmatpush.bf16.msra.mxu0 %v2829
        %2903 = vmatpush.bf16.msra.mxu0 %v2828
        %2904 = vmatpush.bf16.msra.mxu0 %v2827
        %2905 = vmatmul.bf16.gmra.mxu0 %v2622
        %v2906 = vpop.f32.mrf.mxu0
        %v2907 = vadd.f32 %v2893, %v2906
        %v2908 = vpop.f32.mrf.mxu0
        %v2909 = vadd.f32 %v2895, %v2908
        %2910 = vdwg.mxu0
        %2911 = vmatpush.bf16.msra.mxu0 %v2842
        %2912 = vmatpush.bf16.msra.mxu0 %v2841
        %2913 = vmatpush.bf16.msra.mxu0 %v2840
        %2914 = vmatpush.bf16.msra.mxu0 %v2839
        %2915 = vmatpush.bf16.msra.mxu0 %v2838
        %2916 = vmatpush.bf16.msra.mxu0 %v2837
        %2917 = vmatpush.bf16.msra.mxu0 %v2836
        %2918 = vmatpush.bf16.msra.mxu0 %v2835
        %2919 = vmatmul.bf16.gmra.mxu0 %v2623
        %v2920 = vpop.f32.mrf.mxu0
        %v2921 = vadd.f32 %v2907, %v2920
        %v2922 = vpop.f32.mrf.mxu0
        %v2923 = vadd.f32 %v2909, %v2922
        %2924 = vdwg.mxu0
        %2925 = vmatpush.bf16.msra.mxu0 %v2850
        %2926 = vmatpush.bf16.msra.mxu0 %v2849
        %2927 = vmatpush.bf16.msra.mxu0 %v2848
        %2928 = vmatpush.bf16.msra.mxu0 %v2847
        %2929 = vmatpush.bf16.msra.mxu0 %v2846
        %2930 = vmatpush.bf16.msra.mxu0 %v2845
        %2931 = vmatpush.bf16.msra.mxu0 %v2844
        %2932 = vmatpush.bf16.msra.mxu0 %v2843
        %2933 = vmatmul.bf16.gmra.mxu0 %v2624
        %v2934 = vpop.f32.mrf.mxu0
        %v2935 = vadd.f32 %v2921, %v2934
        %v2936 = vpop.f32.mrf.mxu0
        %v2937 = vadd.f32 %v2923, %v2936
        %2938 = vdwg.mxu0
        %v2939 = vadd.f32 %v1992, %v2935
        %v2940 = vadd.f32 %v1993, %v2937
        %v2941 = vld [vmem:[%s1 + $0x1] sm:$0x1]
        %v2942 = vld [vmem:[%s2 + $0x1] sm:$0x1]
        %2943 = vadd.xlane.f32.xlu0 %v2939
        %v2944 = vpop.xlane.xlu0 %2943
        %2945 = vadd.xlane.f32.xlu0 %v2940
        %v2946 = vpop.xlane.xlu0 %2945
        %v2947 = vmul.f32 %v2944, %v481
        %v2948 = vmul.f32 %v2946, %v481
        %v2949 = vsub.f32 %v2939, %v2947
        %v2950 = vsub.f32 %v2940, %v2948
        %v2951 = vmul.f32 %v2949, %v2949
        %v2952 = vmul.f32 %v2950, %v2950
        %2953 = vadd.xlane.f32.xlu0 %v2951
        %v2954 = vpop.xlane.xlu0 %2953
        %2955 = vadd.xlane.f32.xlu0 %v2952
        %v2956 = vpop.xlane.xlu0 %2955
        %v2957 = vmul.f32 %v2954, %v481
        %v2958 = vmul.f32 %v2956, %v481
        %v2959 = vadd.f32 %v2957, 1e-05
        %v2960 = vadd.f32 %v2958, 1e-05
        %v2961 = vrsqrt.pop %v2959
        %v2962 = vmul.f32 %v2961, %v2959
        %v2963 = vmul.f32 %v2962, %v2961
        %v2964 = vmul.f32 0.5, %v2963
        %v2965 = vsub.f32 1.5, %v2964
        %v2966 = vmul.f32 %v2961, %v2965
        %vm2967 = vweird.f32 %v2959
        %vm2968 = vweird.f32 %v2961
        %vm2969 = vmor %vm2967, %vm2968
        %v2970 = vsel %vm2969, %v2961, %v2966
        %v2971 = vrsqrt.pop %v2960
        %v2972 = vmul.f32 %v2971, %v2960
        %v2973 = vmul.f32 %v2972, %v2971
        %v2974 = vmul.f32 0.5, %v2973
        %v2975 = vsub.f32 1.5, %v2974
        %v2976 = vmul.f32 %v2971, %v2975
        %vm2977 = vweird.f32 %v2960
        %vm2978 = vweird.f32 %v2971
        %vm2979 = vmor %vm2977, %vm2978
        %v2980 = vsel %vm2979, %v2971, %v2976
        %v2981 = vmul.f32 %v2949, %v2970
        %v2982 = vmul.f32 %v2950, %v2980
        %v2983 = vperm.slane %v2941, 0
        %v2984 = vmul.f32 %v2981, %v2983
        %v2985 = vmul.f32 %v2982, %v2983
        %v2986 = vperm.slane %v2942, 0
        %v2987 = vadd.f32 %v2984, %v2986
        %v2988 = vadd.f32 %v2985, %v2986
        %v2989 = vpack.c.bf16 %v2987, %v2987
        %v2990 = vpack.c.bf16 %v2988, %v2988
        %s2991 = scalar_lea.vmem %s3, 256
        %v2992 = vld [vmem:[%s2991] sm:$0xf]
        %v2993 = vld [vmem:[%s2991 + $0x4] sm:$0xf]
        %v2994 = vld [vmem:[%s2991 + $0x8] sm:$0xf]
        %v2995 = vld [vmem:[%s2991 + $0xc] sm:$0xf]
        %v2996 = vld [vmem:[%s2991 + $0x10] sm:$0xf]
        %v2997 = vld [vmem:[%s2991 + $0x14] sm:$0xf]
        %v2998 = vld [vmem:[%s2991 + $0x18] sm:$0xf]
        %v2999 = vld [vmem:[%s2991 + $0x1c] sm:$0xf]
        %v3000 = vld [vmem:[%s2991 + $0x20] sm:$0xf]
        %v3001 = vld [vmem:[%s2991 + $0x24] sm:$0xf]
        %v3002 = vld [vmem:[%s2991 + $0x28] sm:$0xf]
        %v3003 = vld [vmem:[%s2991 + $0x2c] sm:$0xf]
        %v3004 = vld [vmem:[%s2991 + $0x30] sm:$0xf]
        %v3005 = vld [vmem:[%s2991 + $0x34] sm:$0xf]
        %v3006 = vld [vmem:[%s2991 + $0x38] sm:$0xf]
        %v3007 = vld [vmem:[%s2991 + $0x3c] sm:$0xf]
        %v3008 = vld [vmem:[%s2991 + $0x40] sm:$0xf]
        %v3009 = vld [vmem:[%s2991 + $0x44] sm:$0xf]
        %v3010 = vld [vmem:[%s2991 + $0x48] sm:$0xf]
        %v3011 = vld [vmem:[%s2991 + $0x4c] sm:$0xf]
        %v3012 = vld [vmem:[%s2991 + $0x50] sm:$0xf]
        %v3013 = vld [vmem:[%s2991 + $0x54] sm:$0xf]
        %v3014 = vld [vmem:[%s2991 + $0x58] sm:$0xf]
        %v3015 = vld [vmem:[%s2991 + $0x5c] sm:$0xf]
        %v3016 = vld [vmem:[%s2991 + $0x60] sm:$0xf]
        %v3017 = vld [vmem:[%s2991 + $0x64] sm:$0xf]
        %v3018 = vld [vmem:[%s2991 + $0x68] sm:$0xf]
        %v3019 = vld [vmem:[%s2991 + $0x6c] sm:$0xf]
        %v3020 = vld [vmem:[%s2991 + $0x70] sm:$0xf]
        %v3021 = vld [vmem:[%s2991 + $0x74] sm:$0xf]
        %v3022 = vld [vmem:[%s2991 + $0x78] sm:$0xf]
        %v3023 = vld [vmem:[%s2991 + $0x7c] sm:$0xf]
        %v3024 = vld [vmem:[%s2991 + $0x80] sm:$0xf]
        %v3025 = vld [vmem:[%s2991 + $0x84] sm:$0xf]
        %v3026 = vld [vmem:[%s2991 + $0x88] sm:$0xf]
        %v3027 = vld [vmem:[%s2991 + $0x8c] sm:$0xf]
        %v3028 = vld [vmem:[%s2991 + $0x90] sm:$0xf]
        %v3029 = vld [vmem:[%s2991 + $0x94] sm:$0xf]
        %v3030 = vld [vmem:[%s2991 + $0x98] sm:$0xf]
        %v3031 = vld [vmem:[%s2991 + $0x9c] sm:$0xf]
        %v3032 = vld [vmem:[%s2991 + $0xa0] sm:$0xf]
        %v3033 = vld [vmem:[%s2991 + $0xa4] sm:$0xf]
        %v3034 = vld [vmem:[%s2991 + $0xa8] sm:$0xf]
        %v3035 = vld [vmem:[%s2991 + $0xac] sm:$0xf]
        %v3036 = vld [vmem:[%s2991 + $0xb0] sm:$0xf]
        %v3037 = vld [vmem:[%s2991 + $0xb4] sm:$0xf]
        %v3038 = vld [vmem:[%s2991 + $0xb8] sm:$0xf]
        %v3039 = vld [vmem:[%s2991 + $0xbc] sm:$0xf]
        %v3040 = vld [vmem:[%s2991 + $0xc0] sm:$0xf]
        %v3041 = vld [vmem:[%s2991 + $0xc4] sm:$0xf]
        %v3042 = vld [vmem:[%s2991 + $0xc8] sm:$0xf]
        %v3043 = vld [vmem:[%s2991 + $0xcc] sm:$0xf]
        %v3044 = vld [vmem:[%s2991 + $0xd0] sm:$0xf]
        %v3045 = vld [vmem:[%s2991 + $0xd4] sm:$0xf]
        %v3046 = vld [vmem:[%s2991 + $0xd8] sm:$0xf]
        %v3047 = vld [vmem:[%s2991 + $0xdc] sm:$0xf]
        %v3048 = vld [vmem:[%s2991 + $0xe0] sm:$0xf]
        %v3049 = vld [vmem:[%s2991 + $0xe4] sm:$0xf]
        %v3050 = vld [vmem:[%s2991 + $0xe8] sm:$0xf]
        %v3051 = vld [vmem:[%s2991 + $0xec] sm:$0xf]
        %v3052 = vld [vmem:[%s2991 + $0xf0] sm:$0xf]
        %v3053 = vld [vmem:[%s2991 + $0xf4] sm:$0xf]
        %v3054 = vld [vmem:[%s2991 + $0xf8] sm:$0xf]
        %v3055 = vld [vmem:[%s2991 + $0xfc] sm:$0xf]
        %v3058 = vunpack.c.l.b16 %v2989
        %v3059 = vunpack.c.l.b16 %v2990
        %v3060 = vpack.c.b16 %v3059, %v3058
        %v3078 = vunpack.c.l.b16 %v2992
        %v3079 = vunpack.c.l.b16 %v2993
        %v3080 = vunpack.c.l.b16 %v2994
        %v3081 = vunpack.c.l.b16 %v2995
        %v3082 = vunpack.c.l.b16 %v2996
        %v3083 = vunpack.c.l.b16 %v2997
        %v3084 = vunpack.c.l.b16 %v2998
        %v3085 = vunpack.c.l.b16 %v2999
        %v3086 = vunpack.c.l.b16 %v3000
        %v3087 = vunpack.c.l.b16 %v3001
        %v3088 = vunpack.c.l.b16 %v3002
        %v3089 = vunpack.c.l.b16 %v3003
        %v3090 = vunpack.c.l.b16 %v3004
        %v3091 = vunpack.c.l.b16 %v3005
        %v3092 = vunpack.c.l.b16 %v3006
        %v3093 = vunpack.c.l.b16 %v3007
        %v3094 = vpack.c.b16 %v3079, %v3078
        %v3095 = vpack.c.b16 %v3081, %v3080
        %v3096 = vpack.c.b16 %v3083, %v3082
        %v3097 = vpack.c.b16 %v3085, %v3084
        %v3098 = vpack.c.b16 %v3087, %v3086
        %v3099 = vpack.c.b16 %v3089, %v3088
        %v3100 = vpack.c.b16 %v3091, %v3090
        %v3101 = vpack.c.b16 %v3093, %v3092
        %3110 = vmatpush.bf16.msra.mxu0 %v3101
        %3111 = vmatpush.bf16.msra.mxu0 %v3100
        %3112 = vmatpush.bf16.msra.mxu0 %v3099
        %3113 = vmatpush.bf16.msra.mxu0 %v3098
        %3114 = vmatpush.bf16.msra.mxu0 %v3097
        %3115 = vmatpush.bf16.msra.mxu0 %v3096
        %3116 = vmatpush.bf16.msra.mxu0 %v3095
        %3117 = vmatpush.bf16.msra.mxu0 %v3094
        %3118 = vmatmul.bf16.gmra.mxu0 %v3060
        %v3119 = vpop.f32.mrf.mxu0
        %v3120 = vadd.f32 0.0, %v3119
        %v3121 = vpop.f32.mrf.mxu0
        %v3122 = vadd.f32 0.0, %v3121
        %3123 = vdwg.mxu0
        %v3140 = vunpack.c.l.b16 %v3008
        %v3141 = vunpack.c.l.b16 %v3009
        %v3142 = vunpack.c.l.b16 %v3010
        %v3143 = vunpack.c.l.b16 %v3011
        %v3144 = vunpack.c.l.b16 %v3012
        %v3145 = vunpack.c.l.b16 %v3013
        %v3146 = vunpack.c.l.b16 %v3014
        %v3147 = vunpack.c.l.b16 %v3015
        %v3148 = vunpack.c.l.b16 %v3016
        %v3149 = vunpack.c.l.b16 %v3017
        %v3150 = vunpack.c.l.b16 %v3018
        %v3151 = vunpack.c.l.b16 %v3019
        %v3152 = vunpack.c.l.b16 %v3020
        %v3153 = vunpack.c.l.b16 %v3021
        %v3154 = vunpack.c.l.b16 %v3022
        %v3155 = vunpack.c.l.b16 %v3023
        %v3156 = vpack.c.b16 %v3141, %v3140
        %v3157 = vpack.c.b16 %v3143, %v3142
        %v3158 = vpack.c.b16 %v3145, %v3144
        %v3159 = vpack.c.b16 %v3147, %v3146
        %v3160 = vpack.c.b16 %v3149, %v3148
        %v3161 = vpack.c.b16 %v3151, %v3150
        %v3162 = vpack.c.b16 %v3153, %v3152
        %v3163 = vpack.c.b16 %v3155, %v3154
        %3172 = vmatpush.bf16.msra.mxu0 %v3163
        %3173 = vmatpush.bf16.msra.mxu0 %v3162
        %3174 = vmatpush.bf16.msra.mxu0 %v3161
        %3175 = vmatpush.bf16.msra.mxu0 %v3160
        %3176 = vmatpush.bf16.msra.mxu0 %v3159
        %3177 = vmatpush.bf16.msra.mxu0 %v3158
        %3178 = vmatpush.bf16.msra.mxu0 %v3157
        %3179 = vmatpush.bf16.msra.mxu0 %v3156
        %3180 = vmatmul.bf16.gmra.mxu0 %v3060
        %v3181 = vpop.f32.mrf.mxu0
        %v3182 = vadd.f32 0.0, %v3181
        %v3183 = vpop.f32.mrf.mxu0
        %v3184 = vadd.f32 0.0, %v3183
        %3185 = vdwg.mxu0
        %v3202 = vunpack.c.l.b16 %v3024
        %v3203 = vunpack.c.l.b16 %v3025
        %v3204 = vunpack.c.l.b16 %v3026
        %v3205 = vunpack.c.l.b16 %v3027
        %v3206 = vunpack.c.l.b16 %v3028
        %v3207 = vunpack.c.l.b16 %v3029
        %v3208 = vunpack.c.l.b16 %v3030
        %v3209 = vunpack.c.l.b16 %v3031
        %v3210 = vunpack.c.l.b16 %v3032
        %v3211 = vunpack.c.l.b16 %v3033
        %v3212 = vunpack.c.l.b16 %v3034
        %v3213 = vunpack.c.l.b16 %v3035
        %v3214 = vunpack.c.l.b16 %v3036
        %v3215 = vunpack.c.l.b16 %v3037
        %v3216 = vunpack.c.l.b16 %v3038
        %v3217 = vunpack.c.l.b16 %v3039
        %v3218 = vpack.c.b16 %v3203, %v3202
        %v3219 = vpack.c.b16 %v3205, %v3204
        %v3220 = vpack.c.b16 %v3207, %v3206
        %v3221 = vpack.c.b16 %v3209, %v3208
        %v3222 = vpack.c.b16 %v3211, %v3210
        %v3223 = vpack.c.b16 %v3213, %v3212
        %v3224 = vpack.c.b16 %v3215, %v3214
        %v3225 = vpack.c.b16 %v3217, %v3216
        %3234 = vmatpush.bf16.msra.mxu0 %v3225
        %3235 = vmatpush.bf16.msra.mxu0 %v3224
        %3236 = vmatpush.bf16.msra.mxu0 %v3223
        %3237 = vmatpush.bf16.msra.mxu0 %v3222
        %3238 = vmatpush.bf16.msra.mxu0 %v3221
        %3239 = vmatpush.bf16.msra.mxu0 %v3220
        %3240 = vmatpush.bf16.msra.mxu0 %v3219
        %3241 = vmatpush.bf16.msra.mxu0 %v3218
        %3242 = vmatmul.bf16.gmra.mxu0 %v3060
        %v3243 = vpop.f32.mrf.mxu0
        %v3244 = vadd.f32 0.0, %v3243
        %v3245 = vpop.f32.mrf.mxu0
        %v3246 = vadd.f32 0.0, %v3245
        %3247 = vdwg.mxu0
        %v3264 = vunpack.c.l.b16 %v3040
        %v3265 = vunpack.c.l.b16 %v3041
        %v3266 = vunpack.c.l.b16 %v3042
        %v3267 = vunpack.c.l.b16 %v3043
        %v3268 = vunpack.c.l.b16 %v3044
        %v3269 = vunpack.c.l.b16 %v3045
        %v3270 = vunpack.c.l.b16 %v3046
        %v3271 = vunpack.c.l.b16 %v3047
        %v3272 = vunpack.c.l.b16 %v3048
        %v3273 = vunpack.c.l.b16 %v3049
        %v3274 = vunpack.c.l.b16 %v3050
        %v3275 = vunpack.c.l.b16 %v3051
        %v3276 = vunpack.c.l.b16 %v3052
        %v3277 = vunpack.c.l.b16 %v3053
        %v3278 = vunpack.c.l.b16 %v3054
        %v3279 = vunpack.c.l.b16 %v3055
        %v3280 = vpack.c.b16 %v3265, %v3264
        %v3281 = vpack.c.b16 %v3267, %v3266
        %v3282 = vpack.c.b16 %v3269, %v3268
        %v3283 = vpack.c.b16 %v3271, %v3270
        %v3284 = vpack.c.b16 %v3273, %v3272
        %v3285 = vpack.c.b16 %v3275, %v3274
        %v3286 = vpack.c.b16 %v3277, %v3276
        %v3287 = vpack.c.b16 %v3279, %v3278
        %3296 = vmatpush.bf16.msra.mxu0 %v3287
        %3297 = vmatpush.bf16.msra.mxu0 %v3286
        %3298 = vmatpush.bf16.msra.mxu0 %v3285
        %3299 = vmatpush.bf16.msra.mxu0 %v3284
        %3300 = vmatpush.bf16.msra.mxu0 %v3283
        %3301 = vmatpush.bf16.msra.mxu0 %v3282
        %3302 = vmatpush.bf16.msra.mxu0 %v3281
        %3303 = vmatpush.bf16.msra.mxu0 %v3280
        %3304 = vmatmul.bf16.gmra.mxu0 %v3060
        %v3305 = vpop.f32.mrf.mxu0
        %v3306 = vadd.f32 0.0, %v3305
        %v3307 = vpop.f32.mrf.mxu0
        %v3308 = vadd.f32 0.0, %v3307
        %3309 = vdwg.mxu0
        %v3310 = vpack.c.bf16 %v3120, %v3120
        %v3311 = vpack.c.bf16 %v3122, %v3122
        %v3312 = vpack.c.bf16 %v3182, %v3182
        %v3313 = vpack.c.bf16 %v3184, %v3184
        %v3314 = vpack.c.bf16 %v3244, %v3244
        %v3315 = vpack.c.bf16 %v3246, %v3246
        %v3316 = vpack.c.bf16 %v3306, %v3306
        %v3317 = vpack.c.bf16 %v3308, %v3308
        %s3318 = scalar_lea.vmem %s4, 256
        %v3319 = vld [vmem:[%s3318] sm:$0xf]
        %v3320 = vld [vmem:[%s3318 + $0x4] sm:$0xf]
        %v3321 = vld [vmem:[%s3318 + $0x8] sm:$0xf]
        %v3322 = vld [vmem:[%s3318 + $0xc] sm:$0xf]
        %v3323 = vld [vmem:[%s3318 + $0x10] sm:$0xf]
        %v3324 = vld [vmem:[%s3318 + $0x14] sm:$0xf]
        %v3325 = vld [vmem:[%s3318 + $0x18] sm:$0xf]
        %v3326 = vld [vmem:[%s3318 + $0x1c] sm:$0xf]
        %v3327 = vld [vmem:[%s3318 + $0x20] sm:$0xf]
        %v3328 = vld [vmem:[%s3318 + $0x24] sm:$0xf]
        %v3329 = vld [vmem:[%s3318 + $0x28] sm:$0xf]
        %v3330 = vld [vmem:[%s3318 + $0x2c] sm:$0xf]
        %v3331 = vld [vmem:[%s3318 + $0x30] sm:$0xf]
        %v3332 = vld [vmem:[%s3318 + $0x34] sm:$0xf]
        %v3333 = vld [vmem:[%s3318 + $0x38] sm:$0xf]
        %v3334 = vld [vmem:[%s3318 + $0x3c] sm:$0xf]
        %v3335 = vld [vmem:[%s3318 + $0x40] sm:$0xf]
        %v3336 = vld [vmem:[%s3318 + $0x44] sm:$0xf]
        %v3337 = vld [vmem:[%s3318 + $0x48] sm:$0xf]
        %v3338 = vld [vmem:[%s3318 + $0x4c] sm:$0xf]
        %v3339 = vld [vmem:[%s3318 + $0x50] sm:$0xf]
        %v3340 = vld [vmem:[%s3318 + $0x54] sm:$0xf]
        %v3341 = vld [vmem:[%s3318 + $0x58] sm:$0xf]
        %v3342 = vld [vmem:[%s3318 + $0x5c] sm:$0xf]
        %v3343 = vld [vmem:[%s3318 + $0x60] sm:$0xf]
        %v3344 = vld [vmem:[%s3318 + $0x64] sm:$0xf]
        %v3345 = vld [vmem:[%s3318 + $0x68] sm:$0xf]
        %v3346 = vld [vmem:[%s3318 + $0x6c] sm:$0xf]
        %v3347 = vld [vmem:[%s3318 + $0x70] sm:$0xf]
        %v3348 = vld [vmem:[%s3318 + $0x74] sm:$0xf]
        %v3349 = vld [vmem:[%s3318 + $0x78] sm:$0xf]
        %v3350 = vld [vmem:[%s3318 + $0x7c] sm:$0xf]
        %v3351 = vld [vmem:[%s3318 + $0x80] sm:$0xf]
        %v3352 = vld [vmem:[%s3318 + $0x84] sm:$0xf]
        %v3353 = vld [vmem:[%s3318 + $0x88] sm:$0xf]
        %v3354 = vld [vmem:[%s3318 + $0x8c] sm:$0xf]
        %v3355 = vld [vmem:[%s3318 + $0x90] sm:$0xf]
        %v3356 = vld [vmem:[%s3318 + $0x94] sm:$0xf]
        %v3357 = vld [vmem:[%s3318 + $0x98] sm:$0xf]
        %v3358 = vld [vmem:[%s3318 + $0x9c] sm:$0xf]
        %v3359 = vld [vmem:[%s3318 + $0xa0] sm:$0xf]
        %v3360 = vld [vmem:[%s3318 + $0xa4] sm:$0xf]
        %v3361 = vld [vmem:[%s3318 + $0xa8] sm:$0xf]
        %v3362 = vld [vmem:[%s3318 + $0xac] sm:$0xf]
        %v3363 = vld [vmem:[%s3318 + $0xb0] sm:$0xf]
        %v3364 = vld [vmem:[%s3318 + $0xb4] sm:$0xf]
        %v3365 = vld [vmem:[%s3318 + $0xb8] sm:$0xf]
        %v3366 = vld [vmem:[%s3318 + $0xbc] sm:$0xf]
        %v3367 = vld [vmem:[%s3318 + $0xc0] sm:$0xf]
        %v3368 = vld [vmem:[%s3318 + $0xc4] sm:$0xf]
        %v3369 = vld [vmem:[%s3318 + $0xc8] sm:$0xf]
        %v3370 = vld [vmem:[%s3318 + $0xcc] sm:$0xf]
        %v3371 = vld [vmem:[%s3318 + $0xd0] sm:$0xf]
        %v3372 = vld [vmem:[%s3318 + $0xd4] sm:$0xf]
        %v3373 = vld [vmem:[%s3318 + $0xd8] sm:$0xf]
        %v3374 = vld [vmem:[%s3318 + $0xdc] sm:$0xf]
        %v3375 = vld [vmem:[%s3318 + $0xe0] sm:$0xf]
        %v3376 = vld [vmem:[%s3318 + $0xe4] sm:$0xf]
        %v3377 = vld [vmem:[%s3318 + $0xe8] sm:$0xf]
        %v3378 = vld [vmem:[%s3318 + $0xec] sm:$0xf]
        %v3379 = vld [vmem:[%s3318 + $0xf0] sm:$0xf]
        %v3380 = vld [vmem:[%s3318 + $0xf4] sm:$0xf]
        %v3381 = vld [vmem:[%s3318 + $0xf8] sm:$0xf]
        %v3382 = vld [vmem:[%s3318 + $0xfc] sm:$0xf]
        %v3399 = vunpack.c.l.b16 %v3319
        %v3400 = vunpack.c.l.b16 %v3320
        %v3401 = vunpack.c.l.b16 %v3321
        %v3402 = vunpack.c.l.b16 %v3322
        %v3403 = vunpack.c.l.b16 %v3323
        %v3404 = vunpack.c.l.b16 %v3324
        %v3405 = vunpack.c.l.b16 %v3325
        %v3406 = vunpack.c.l.b16 %v3326
        %v3407 = vunpack.c.l.b16 %v3327
        %v3408 = vunpack.c.l.b16 %v3328
        %v3409 = vunpack.c.l.b16 %v3329
        %v3410 = vunpack.c.l.b16 %v3330
        %v3411 = vunpack.c.l.b16 %v3331
        %v3412 = vunpack.c.l.b16 %v3332
        %v3413 = vunpack.c.l.b16 %v3333
        %v3414 = vunpack.c.l.b16 %v3334
        %v3415 = vpack.c.b16 %v3400, %v3399
        %v3416 = vpack.c.b16 %v3402, %v3401
        %v3417 = vpack.c.b16 %v3404, %v3403
        %v3418 = vpack.c.b16 %v3406, %v3405
        %v3419 = vpack.c.b16 %v3408, %v3407
        %v3420 = vpack.c.b16 %v3410, %v3409
        %v3421 = vpack.c.b16 %v3412, %v3411
        %v3422 = vpack.c.b16 %v3414, %v3413
        %3431 = vmatpush.bf16.msra.mxu0 %v3422
        %3432 = vmatpush.bf16.msra.mxu0 %v3421
        %3433 = vmatpush.bf16.msra.mxu0 %v3420
        %3434 = vmatpush.bf16.msra.mxu0 %v3419
        %3435 = vmatpush.bf16.msra.mxu0 %v3418
        %3436 = vmatpush.bf16.msra.mxu0 %v3417
        %3437 = vmatpush.bf16.msra.mxu0 %v3416
        %3438 = vmatpush.bf16.msra.mxu0 %v3415
        %3439 = vmatmul.bf16.gmra.mxu0 %v3060
        %v3440 = vpop.f32.mrf.mxu0
        %v3441 = vadd.f32 0.0, %v3440
        %v3442 = vpop.f32.mrf.mxu0
        %v3443 = vadd.f32 0.0, %v3442
        %3444 = vdwg.mxu0
        %v3461 = vunpack.c.l.b16 %v3335
        %v3462 = vunpack.c.l.b16 %v3336
        %v3463 = vunpack.c.l.b16 %v3337
        %v3464 = vunpack.c.l.b16 %v3338
        %v3465 = vunpack.c.l.b16 %v3339
        %v3466 = vunpack.c.l.b16 %v3340
        %v3467 = vunpack.c.l.b16 %v3341
        %v3468 = vunpack.c.l.b16 %v3342
        %v3469 = vunpack.c.l.b16 %v3343
        %v3470 = vunpack.c.l.b16 %v3344
        %v3471 = vunpack.c.l.b16 %v3345
        %v3472 = vunpack.c.l.b16 %v3346
        %v3473 = vunpack.c.l.b16 %v3347
        %v3474 = vunpack.c.l.b16 %v3348
        %v3475 = vunpack.c.l.b16 %v3349
        %v3476 = vunpack.c.l.b16 %v3350
        %v3477 = vpack.c.b16 %v3462, %v3461
        %v3478 = vpack.c.b16 %v3464, %v3463
        %v3479 = vpack.c.b16 %v3466, %v3465
        %v3480 = vpack.c.b16 %v3468, %v3467
        %v3481 = vpack.c.b16 %v3470, %v3469
        %v3482 = vpack.c.b16 %v3472, %v3471
        %v3483 = vpack.c.b16 %v3474, %v3473
        %v3484 = vpack.c.b16 %v3476, %v3475
        %3493 = vmatpush.bf16.msra.mxu0 %v3484
        %3494 = vmatpush.bf16.msra.mxu0 %v3483
        %3495 = vmatpush.bf16.msra.mxu0 %v3482
        %3496 = vmatpush.bf16.msra.mxu0 %v3481
        %3497 = vmatpush.bf16.msra.mxu0 %v3480
        %3498 = vmatpush.bf16.msra.mxu0 %v3479
        %3499 = vmatpush.bf16.msra.mxu0 %v3478
        %3500 = vmatpush.bf16.msra.mxu0 %v3477
        %3501 = vmatmul.bf16.gmra.mxu0 %v3060
        %v3502 = vpop.f32.mrf.mxu0
        %v3503 = vadd.f32 0.0, %v3502
        %v3504 = vpop.f32.mrf.mxu0
        %v3505 = vadd.f32 0.0, %v3504
        %3506 = vdwg.mxu0
        %v3523 = vunpack.c.l.b16 %v3351
        %v3524 = vunpack.c.l.b16 %v3352
        %v3525 = vunpack.c.l.b16 %v3353
        %v3526 = vunpack.c.l.b16 %v3354
        %v3527 = vunpack.c.l.b16 %v3355
        %v3528 = vunpack.c.l.b16 %v3356
        %v3529 = vunpack.c.l.b16 %v3357
        %v3530 = vunpack.c.l.b16 %v3358
        %v3531 = vunpack.c.l.b16 %v3359
        %v3532 = vunpack.c.l.b16 %v3360
        %v3533 = vunpack.c.l.b16 %v3361
        %v3534 = vunpack.c.l.b16 %v3362
        %v3535 = vunpack.c.l.b16 %v3363
        %v3536 = vunpack.c.l.b16 %v3364
        %v3537 = vunpack.c.l.b16 %v3365
        %v3538 = vunpack.c.l.b16 %v3366
        %v3539 = vpack.c.b16 %v3524, %v3523
        %v3540 = vpack.c.b16 %v3526, %v3525
        %v3541 = vpack.c.b16 %v3528, %v3527
        %v3542 = vpack.c.b16 %v3530, %v3529
        %v3543 = vpack.c.b16 %v3532, %v3531
        %v3544 = vpack.c.b16 %v3534, %v3533
        %v3545 = vpack.c.b16 %v3536, %v3535
        %v3546 = vpack.c.b16 %v3538, %v3537
        %3555 = vmatpush.bf16.msra.mxu0 %v3546
        %3556 = vmatpush.bf16.msra.mxu0 %v3545
        %3557 = vmatpush.bf16.msra.mxu0 %v3544
        %3558 = vmatpush.bf16.msra.mxu0 %v3543
        %3559 = vmatpush.bf16.msra.mxu0 %v3542
        %3560 = vmatpush.bf16.msra.mxu0 %v3541
        %3561 = vmatpush.bf16.msra.mxu0 %v3540
        %3562 = vmatpush.bf16.msra.mxu0 %v3539
        %3563 = vmatmul.bf16.gmra.mxu0 %v3060
        %v3564 = vpop.f32.mrf.mxu0
        %v3565 = vadd.f32 0.0, %v3564
        %v3566 = vpop.f32.mrf.mxu0
        %v3567 = vadd.f32 0.0, %v3566
        %3568 = vdwg.mxu0
        %v3585 = vunpack.c.l.b16 %v3367
        %v3586 = vunpack.c.l.b16 %v3368
        %v3587 = vunpack.c.l.b16 %v3369
        %v3588 = vunpack.c.l.b16 %v3370
        %v3589 = vunpack.c.l.b16 %v3371
        %v3590 = vunpack.c.l.b16 %v3372
        %v3591 = vunpack.c.l.b16 %v3373
        %v3592 = vunpack.c.l.b16 %v3374
        %v3593 = vunpack.c.l.b16 %v3375
        %v3594 = vunpack.c.l.b16 %v3376
        %v3595 = vunpack.c.l.b16 %v3377
        %v3596 = vunpack.c.l.b16 %v3378
        %v3597 = vunpack.c.l.b16 %v3379
        %v3598 = vunpack.c.l.b16 %v3380
        %v3599 = vunpack.c.l.b16 %v3381
        %v3600 = vunpack.c.l.b16 %v3382
        %v3601 = vpack.c.b16 %v3586, %v3585
        %v3602 = vpack.c.b16 %v3588, %v3587
        %v3603 = vpack.c.b16 %v3590, %v3589
        %v3604 = vpack.c.b16 %v3592, %v3591
        %v3605 = vpack.c.b16 %v3594, %v3593
        %v3606 = vpack.c.b16 %v3596, %v3595
        %v3607 = vpack.c.b16 %v3598, %v3597
        %v3608 = vpack.c.b16 %v3600, %v3599
        %3617 = vmatpush.bf16.msra.mxu0 %v3608
        %3618 = vmatpush.bf16.msra.mxu0 %v3607
        %3619 = vmatpush.bf16.msra.mxu0 %v3606
        %3620 = vmatpush.bf16.msra.mxu0 %v3605
        %3621 = vmatpush.bf16.msra.mxu0 %v3604
        %3622 = vmatpush.bf16.msra.mxu0 %v3603
        %3623 = vmatpush.bf16.msra.mxu0 %v3602
        %3624 = vmatpush.bf16.msra.mxu0 %v3601
        %3625 = vmatmul.bf16.gmra.mxu0 %v3060
        %v3626 = vpop.f32.mrf.mxu0
        %v3627 = vadd.f32 0.0, %v3626
        %v3628 = vpop.f32.mrf.mxu0
        %v3629 = vadd.f32 0.0, %v3628
        %3630 = vdwg.mxu0
        %v3631 = vpack.c.bf16 %v3441, %v3441
        %v3632 = vpack.c.bf16 %v3443, %v3443
        %v3633 = vpack.c.bf16 %v3503, %v3503
        %v3634 = vpack.c.bf16 %v3505, %v3505
        %v3635 = vpack.c.bf16 %v3565, %v3565
        %v3636 = vpack.c.bf16 %v3567, %v3567
        %v3637 = vpack.c.bf16 %v3627, %v3627
        %v3638 = vpack.c.bf16 %v3629, %v3629
        %s3639 = scalar_lea.vmem %s5, 256
        %v3640 = vld [vmem:[%s3639] sm:$0xf]
        %v3641 = vld [vmem:[%s3639 + $0x4] sm:$0xf]
        %v3642 = vld [vmem:[%s3639 + $0x8] sm:$0xf]
        %v3643 = vld [vmem:[%s3639 + $0xc] sm:$0xf]
        %v3644 = vld [vmem:[%s3639 + $0x10] sm:$0xf]
        %v3645 = vld [vmem:[%s3639 + $0x14] sm:$0xf]
        %v3646 = vld [vmem:[%s3639 + $0x18] sm:$0xf]
        %v3647 = vld [vmem:[%s3639 + $0x1c] sm:$0xf]
        %v3648 = vld [vmem:[%s3639 + $0x20] sm:$0xf]
        %v3649 = vld [vmem:[%s3639 + $0x24] sm:$0xf]
        %v3650 = vld [vmem:[%s3639 + $0x28] sm:$0xf]
        %v3651 = vld [vmem:[%s3639 + $0x2c] sm:$0xf]
        %v3652 = vld [vmem:[%s3639 + $0x30] sm:$0xf]
        %v3653 = vld [vmem:[%s3639 + $0x34] sm:$0xf]
        %v3654 = vld [vmem:[%s3639 + $0x38] sm:$0xf]
        %v3655 = vld [vmem:[%s3639 + $0x3c] sm:$0xf]
        %v3656 = vld [vmem:[%s3639 + $0x40] sm:$0xf]
        %v3657 = vld [vmem:[%s3639 + $0x44] sm:$0xf]
        %v3658 = vld [vmem:[%s3639 + $0x48] sm:$0xf]
        %v3659 = vld [vmem:[%s3639 + $0x4c] sm:$0xf]
        %v3660 = vld [vmem:[%s3639 + $0x50] sm:$0xf]
        %v3661 = vld [vmem:[%s3639 + $0x54] sm:$0xf]
        %v3662 = vld [vmem:[%s3639 + $0x58] sm:$0xf]
        %v3663 = vld [vmem:[%s3639 + $0x5c] sm:$0xf]
        %v3664 = vld [vmem:[%s3639 + $0x60] sm:$0xf]
        %v3665 = vld [vmem:[%s3639 + $0x64] sm:$0xf]
        %v3666 = vld [vmem:[%s3639 + $0x68] sm:$0xf]
        %v3667 = vld [vmem:[%s3639 + $0x6c] sm:$0xf]
        %v3668 = vld [vmem:[%s3639 + $0x70] sm:$0xf]
        %v3669 = vld [vmem:[%s3639 + $0x74] sm:$0xf]
        %v3670 = vld [vmem:[%s3639 + $0x78] sm:$0xf]
        %v3671 = vld [vmem:[%s3639 + $0x7c] sm:$0xf]
        %v3672 = vld [vmem:[%s3639 + $0x80] sm:$0xf]
        %v3673 = vld [vmem:[%s3639 + $0x84] sm:$0xf]
        %v3674 = vld [vmem:[%s3639 + $0x88] sm:$0xf]
        %v3675 = vld [vmem:[%s3639 + $0x8c] sm:$0xf]
        %v3676 = vld [vmem:[%s3639 + $0x90] sm:$0xf]
        %v3677 = vld [vmem:[%s3639 + $0x94] sm:$0xf]
        %v3678 = vld [vmem:[%s3639 + $0x98] sm:$0xf]
        %v3679 = vld [vmem:[%s3639 + $0x9c] sm:$0xf]
        %v3680 = vld [vmem:[%s3639 + $0xa0] sm:$0xf]
        %v3681 = vld [vmem:[%s3639 + $0xa4] sm:$0xf]
        %v3682 = vld [vmem:[%s3639 + $0xa8] sm:$0xf]
        %v3683 = vld [vmem:[%s3639 + $0xac] sm:$0xf]
        %v3684 = vld [vmem:[%s3639 + $0xb0] sm:$0xf]
        %v3685 = vld [vmem:[%s3639 + $0xb4] sm:$0xf]
        %v3686 = vld [vmem:[%s3639 + $0xb8] sm:$0xf]
        %v3687 = vld [vmem:[%s3639 + $0xbc] sm:$0xf]
        %v3688 = vld [vmem:[%s3639 + $0xc0] sm:$0xf]
        %v3689 = vld [vmem:[%s3639 + $0xc4] sm:$0xf]
        %v3690 = vld [vmem:[%s3639 + $0xc8] sm:$0xf]
        %v3691 = vld [vmem:[%s3639 + $0xcc] sm:$0xf]
        %v3692 = vld [vmem:[%s3639 + $0xd0] sm:$0xf]
        %v3693 = vld [vmem:[%s3639 + $0xd4] sm:$0xf]
        %v3694 = vld [vmem:[%s3639 + $0xd8] sm:$0xf]
        %v3695 = vld [vmem:[%s3639 + $0xdc] sm:$0xf]
        %v3696 = vld [vmem:[%s3639 + $0xe0] sm:$0xf]
        %v3697 = vld [vmem:[%s3639 + $0xe4] sm:$0xf]
        %v3698 = vld [vmem:[%s3639 + $0xe8] sm:$0xf]
        %v3699 = vld [vmem:[%s3639 + $0xec] sm:$0xf]
        %v3700 = vld [vmem:[%s3639 + $0xf0] sm:$0xf]
        %v3701 = vld [vmem:[%s3639 + $0xf4] sm:$0xf]
        %v3702 = vld [vmem:[%s3639 + $0xf8] sm:$0xf]
        %v3703 = vld [vmem:[%s3639 + $0xfc] sm:$0xf]
        %v3720 = vunpack.c.l.b16 %v3640
        %v3721 = vunpack.c.l.b16 %v3641
        %v3722 = vunpack.c.l.b16 %v3642
        %v3723 = vunpack.c.l.b16 %v3643
        %v3724 = vunpack.c.l.b16 %v3644
        %v3725 = vunpack.c.l.b16 %v3645
        %v3726 = vunpack.c.l.b16 %v3646
        %v3727 = vunpack.c.l.b16 %v3647
        %v3728 = vunpack.c.l.b16 %v3648
        %v3729 = vunpack.c.l.b16 %v3649
        %v3730 = vunpack.c.l.b16 %v3650
        %v3731 = vunpack.c.l.b16 %v3651
        %v3732 = vunpack.c.l.b16 %v3652
        %v3733 = vunpack.c.l.b16 %v3653
        %v3734 = vunpack.c.l.b16 %v3654
        %v3735 = vunpack.c.l.b16 %v3655
        %v3736 = vpack.c.b16 %v3721, %v3720
        %v3737 = vpack.c.b16 %v3723, %v3722
        %v3738 = vpack.c.b16 %v3725, %v3724
        %v3739 = vpack.c.b16 %v3727, %v3726
        %v3740 = vpack.c.b16 %v3729, %v3728
        %v3741 = vpack.c.b16 %v3731, %v3730
        %v3742 = vpack.c.b16 %v3733, %v3732
        %v3743 = vpack.c.b16 %v3735, %v3734
        %3752 = vmatpush.bf16.msra.mxu0 %v3743
        %3753 = vmatpush.bf16.msra.mxu0 %v3742
        %3754 = vmatpush.bf16.msra.mxu0 %v3741
        %3755 = vmatpush.bf16.msra.mxu0 %v3740
        %3756 = vmatpush.bf16.msra.mxu0 %v3739
        %3757 = vmatpush.bf16.msra.mxu0 %v3738
        %3758 = vmatpush.bf16.msra.mxu0 %v3737
        %3759 = vmatpush.bf16.msra.mxu0 %v3736
        %3760 = vmatmul.bf16.gmra.mxu0 %v3060
        %v3761 = vpop.f32.mrf.mxu0
        %v3762 = vadd.f32 0.0, %v3761
        %v3763 = vpop.f32.mrf.mxu0
        %v3764 = vadd.f32 0.0, %v3763
        %3765 = vdwg.mxu0
        %v3782 = vunpack.c.l.b16 %v3656
        %v3783 = vunpack.c.l.b16 %v3657
        %v3784 = vunpack.c.l.b16 %v3658
        %v3785 = vunpack.c.l.b16 %v3659
        %v3786 = vunpack.c.l.b16 %v3660
        %v3787 = vunpack.c.l.b16 %v3661
        %v3788 = vunpack.c.l.b16 %v3662
        %v3789 = vunpack.c.l.b16 %v3663
        %v3790 = vunpack.c.l.b16 %v3664
        %v3791 = vunpack.c.l.b16 %v3665
        %v3792 = vunpack.c.l.b16 %v3666
        %v3793 = vunpack.c.l.b16 %v3667
        %v3794 = vunpack.c.l.b16 %v3668
        %v3795 = vunpack.c.l.b16 %v3669
        %v3796 = vunpack.c.l.b16 %v3670
        %v3797 = vunpack.c.l.b16 %v3671
        %v3798 = vpack.c.b16 %v3783, %v3782
        %v3799 = vpack.c.b16 %v3785, %v3784
        %v3800 = vpack.c.b16 %v3787, %v3786
        %v3801 = vpack.c.b16 %v3789, %v3788
        %v3802 = vpack.c.b16 %v3791, %v3790
        %v3803 = vpack.c.b16 %v3793, %v3792
        %v3804 = vpack.c.b16 %v3795, %v3794
        %v3805 = vpack.c.b16 %v3797, %v3796
        %3814 = vmatpush.bf16.msra.mxu0 %v3805
        %3815 = vmatpush.bf16.msra.mxu0 %v3804
        %3816 = vmatpush.bf16.msra.mxu0 %v3803
        %3817 = vmatpush.bf16.msra.mxu0 %v3802
        %3818 = vmatpush.bf16.msra.mxu0 %v3801
        %3819 = vmatpush.bf16.msra.mxu0 %v3800
        %3820 = vmatpush.bf16.msra.mxu0 %v3799
        %3821 = vmatpush.bf16.msra.mxu0 %v3798
        %3822 = vmatmul.bf16.gmra.mxu0 %v3060
        %v3823 = vpop.f32.mrf.mxu0
        %v3824 = vadd.f32 0.0, %v3823
        %v3825 = vpop.f32.mrf.mxu0
        %v3826 = vadd.f32 0.0, %v3825
        %3827 = vdwg.mxu0
        %v3844 = vunpack.c.l.b16 %v3672
        %v3845 = vunpack.c.l.b16 %v3673
        %v3846 = vunpack.c.l.b16 %v3674
        %v3847 = vunpack.c.l.b16 %v3675
        %v3848 = vunpack.c.l.b16 %v3676
        %v3849 = vunpack.c.l.b16 %v3677
        %v3850 = vunpack.c.l.b16 %v3678
        %v3851 = vunpack.c.l.b16 %v3679
        %v3852 = vunpack.c.l.b16 %v3680
        %v3853 = vunpack.c.l.b16 %v3681
        %v3854 = vunpack.c.l.b16 %v3682
        %v3855 = vunpack.c.l.b16 %v3683
        %v3856 = vunpack.c.l.b16 %v3684
        %v3857 = vunpack.c.l.b16 %v3685
        %v3858 = vunpack.c.l.b16 %v3686
        %v3859 = vunpack.c.l.b16 %v3687
        %v3860 = vpack.c.b16 %v3845, %v3844
        %v3861 = vpack.c.b16 %v3847, %v3846
        %v3862 = vpack.c.b16 %v3849, %v3848
        %v3863 = vpack.c.b16 %v3851, %v3850
        %v3864 = vpack.c.b16 %v3853, %v3852
        %v3865 = vpack.c.b16 %v3855, %v3854
        %v3866 = vpack.c.b16 %v3857, %v3856
        %v3867 = vpack.c.b16 %v3859, %v3858
        %3876 = vmatpush.bf16.msra.mxu0 %v3867
        %3877 = vmatpush.bf16.msra.mxu0 %v3866
        %3878 = vmatpush.bf16.msra.mxu0 %v3865
        %3879 = vmatpush.bf16.msra.mxu0 %v3864
        %3880 = vmatpush.bf16.msra.mxu0 %v3863
        %3881 = vmatpush.bf16.msra.mxu0 %v3862
        %3882 = vmatpush.bf16.msra.mxu0 %v3861
        %3883 = vmatpush.bf16.msra.mxu0 %v3860
        %3884 = vmatmul.bf16.gmra.mxu0 %v3060
        %v3885 = vpop.f32.mrf.mxu0
        %v3886 = vadd.f32 0.0, %v3885
        %v3887 = vpop.f32.mrf.mxu0
        %v3888 = vadd.f32 0.0, %v3887
        %3889 = vdwg.mxu0
        %v3906 = vunpack.c.l.b16 %v3688
        %v3907 = vunpack.c.l.b16 %v3689
        %v3908 = vunpack.c.l.b16 %v3690
        %v3909 = vunpack.c.l.b16 %v3691
        %v3910 = vunpack.c.l.b16 %v3692
        %v3911 = vunpack.c.l.b16 %v3693
        %v3912 = vunpack.c.l.b16 %v3694
        %v3913 = vunpack.c.l.b16 %v3695
        %v3914 = vunpack.c.l.b16 %v3696
        %v3915 = vunpack.c.l.b16 %v3697
        %v3916 = vunpack.c.l.b16 %v3698
        %v3917 = vunpack.c.l.b16 %v3699
        %v3918 = vunpack.c.l.b16 %v3700
        %v3919 = vunpack.c.l.b16 %v3701
        %v3920 = vunpack.c.l.b16 %v3702
        %v3921 = vunpack.c.l.b16 %v3703
        %v3922 = vpack.c.b16 %v3907, %v3906
        %v3923 = vpack.c.b16 %v3909, %v3908
        %v3924 = vpack.c.b16 %v3911, %v3910
        %v3925 = vpack.c.b16 %v3913, %v3912
        %v3926 = vpack.c.b16 %v3915, %v3914
        %v3927 = vpack.c.b16 %v3917, %v3916
        %v3928 = vpack.c.b16 %v3919, %v3918
        %v3929 = vpack.c.b16 %v3921, %v3920
        %3938 = vmatpush.bf16.msra.mxu0 %v3929
        %3939 = vmatpush.bf16.msra.mxu0 %v3928
        %3940 = vmatpush.bf16.msra.mxu0 %v3927
        %3941 = vmatpush.bf16.msra.mxu0 %v3926
        %3942 = vmatpush.bf16.msra.mxu0 %v3925
        %3943 = vmatpush.bf16.msra.mxu0 %v3924
        %3944 = vmatpush.bf16.msra.mxu0 %v3923
        %3945 = vmatpush.bf16.msra.mxu0 %v3922
        %3946 = vmatmul.bf16.gmra.mxu0 %v3060
        %v3947 = vpop.f32.mrf.mxu0
        %v3948 = vadd.f32 0.0, %v3947
        %v3949 = vpop.f32.mrf.mxu0
        %v3950 = vadd.f32 0.0, %v3949
        %3951 = vdwg.mxu0
        %v3952 = vpack.c.bf16 %v3762, %v3762
        %v3953 = vpack.c.bf16 %v3764, %v3764
        %v3954 = vpack.c.bf16 %v3824, %v3824
        %v3955 = vpack.c.bf16 %v3826, %v3826
        %v3956 = vpack.c.bf16 %v3886, %v3886
        %v3957 = vpack.c.bf16 %v3888, %v3888
        %v3958 = vpack.c.bf16 %v3948, %v3948
        %v3959 = vpack.c.bf16 %v3950, %v3950
        %v3962 = vunpack.c.l.b16 %v3310
        %v3963 = vunpack.c.l.b16 %v3311
        %v3964 = vpack.c.b16 %v3963, %v3962
        %v3967 = vunpack.c.l.b16 %v3631
        %v3968 = vunpack.c.l.b16 %v3632
        %v3969 = vpack.c.b16 %v3968, %v3967
        %v3971 = vsel %vm1502, %v3964, 0
        %v3974 = vsel %vm1502, %v3969, 0
        %3976 = vmatpush.bf16.xpose.msra.mxu0 0
        %3977 = vmatpush.bf16.xpose.msra.mxu0 0
        %3978 = vmatpush.bf16.xpose.msra.mxu0 0
        %3979 = vmatpush.bf16.xpose.msra.mxu0 0
        %3980 = vmatpush.bf16.xpose.msra.mxu0 0
        %3981 = vmatpush.bf16.xpose.msra.mxu0 0
        %3982 = vmatpush.bf16.xpose.msra.mxu0 0
        %3983 = vmatpush.bf16.xpose.msra.mxu0 %v3974
        %3984 = vmatmul.bf16.gmra.mxu0 %v3971
        %v3985 = vpop.f32.mrf.mxu0
        %v3986 = vadd.f32 0.0, %v3985
        %v3987 = vpop.f32.mrf.mxu0
        %v3988 = vadd.f32 0.0, %v3987
        %3989 = vdwg.mxu0
        %v3992 = vunpack.c.l.b16 %v3312
        %v3993 = vunpack.c.l.b16 %v3313
        %v3994 = vpack.c.b16 %v3993, %v3992
        %v3997 = vunpack.c.l.b16 %v3633
        %v3998 = vunpack.c.l.b16 %v3634
        %v3999 = vpack.c.b16 %v3998, %v3997
        %v4001 = vsel %vm1502, %v3994, 0
        %v4004 = vsel %vm1502, %v3999, 0
        %4006 = vmatpush.bf16.xpose.msra.mxu0 0
        %4007 = vmatpush.bf16.xpose.msra.mxu0 0
        %4008 = vmatpush.bf16.xpose.msra.mxu0 0
        %4009 = vmatpush.bf16.xpose.msra.mxu0 0
        %4010 = vmatpush.bf16.xpose.msra.mxu0 0
        %4011 = vmatpush.bf16.xpose.msra.mxu0 0
        %4012 = vmatpush.bf16.xpose.msra.mxu0 0
        %4013 = vmatpush.bf16.xpose.msra.mxu0 %v4004
        %4014 = vmatmul.bf16.gmra.mxu0 %v4001
        %v4015 = vpop.f32.mrf.mxu0
        %v4016 = vadd.f32 0.0, %v4015
        %v4017 = vpop.f32.mrf.mxu0
        %v4018 = vadd.f32 0.0, %v4017
        %4019 = vdwg.mxu0
        %v4022 = vunpack.c.l.b16 %v3314
        %v4023 = vunpack.c.l.b16 %v3315
        %v4024 = vpack.c.b16 %v4023, %v4022
        %v4027 = vunpack.c.l.b16 %v3635
        %v4028 = vunpack.c.l.b16 %v3636
        %v4029 = vpack.c.b16 %v4028, %v4027
        %v4031 = vsel %vm1502, %v4024, 0
        %v4034 = vsel %vm1502, %v4029, 0
        %4036 = vmatpush.bf16.xpose.msra.mxu0 0
        %4037 = vmatpush.bf16.xpose.msra.mxu0 0
        %4038 = vmatpush.bf16.xpose.msra.mxu0 0
        %4039 = vmatpush.bf16.xpose.msra.mxu0 0
        %4040 = vmatpush.bf16.xpose.msra.mxu0 0
        %4041 = vmatpush.bf16.xpose.msra.mxu0 0
        %4042 = vmatpush.bf16.xpose.msra.mxu0 0
        %4043 = vmatpush.bf16.xpose.msra.mxu0 %v4034
        %4044 = vmatmul.bf16.gmra.mxu0 %v4031
        %v4045 = vpop.f32.mrf.mxu0
        %v4046 = vadd.f32 0.0, %v4045
        %v4047 = vpop.f32.mrf.mxu0
        %v4048 = vadd.f32 0.0, %v4047
        %4049 = vdwg.mxu0
        %v4052 = vunpack.c.l.b16 %v3316
        %v4053 = vunpack.c.l.b16 %v3317
        %v4054 = vpack.c.b16 %v4053, %v4052
        %v4057 = vunpack.c.l.b16 %v3637
        %v4058 = vunpack.c.l.b16 %v3638
        %v4059 = vpack.c.b16 %v4058, %v4057
        %v4061 = vsel %vm1502, %v4054, 0
        %v4064 = vsel %vm1502, %v4059, 0
        %4066 = vmatpush.bf16.xpose.msra.mxu0 0
        %4067 = vmatpush.bf16.xpose.msra.mxu0 0
        %4068 = vmatpush.bf16.xpose.msra.mxu0 0
        %4069 = vmatpush.bf16.xpose.msra.mxu0 0
        %4070 = vmatpush.bf16.xpose.msra.mxu0 0
        %4071 = vmatpush.bf16.xpose.msra.mxu0 0
        %4072 = vmatpush.bf16.xpose.msra.mxu0 0
        %4073 = vmatpush.bf16.xpose.msra.mxu0 %v4064
        %4074 = vmatmul.bf16.gmra.mxu0 %v4061
        %v4075 = vpop.f32.mrf.mxu0
        %v4076 = vadd.f32 0.0, %v4075
        %v4077 = vpop.f32.mrf.mxu0
        %v4078 = vadd.f32 0.0, %v4077
        %4079 = vdwg.mxu0
        %v4080 = vsel %vm1613, %v3986, -inf
        %4081 = vmax.xlane.f32.xlu0 %v4080
        %v4082 = vpop.xlane.xlu0 %4081
        %v4083 = vsel %vm1613, %v3988, -inf
        %4084 = vmax.xlane.f32.xlu0 %v4083
        %v4085 = vpop.xlane.xlu0 %4084
        %v4086 = vsel %vm1613, %v4016, -inf
        %4087 = vmax.xlane.f32.xlu0 %v4086
        %v4088 = vpop.xlane.xlu0 %4087
        %v4089 = vsel %vm1613, %v4018, -inf
        %4090 = vmax.xlane.f32.xlu0 %v4089
        %v4091 = vpop.xlane.xlu0 %4090
        %v4092 = vsel %vm1613, %v4046, -inf
        %4093 = vmax.xlane.f32.xlu0 %v4092
        %v4094 = vpop.xlane.xlu0 %4093
        %v4095 = vsel %vm1613, %v4048, -inf
        %4096 = vmax.xlane.f32.xlu0 %v4095
        %v4097 = vpop.xlane.xlu0 %4096
        %v4098 = vsel %vm1613, %v4076, -inf
        %4099 = vmax.xlane.f32.xlu0 %v4098
        %v4100 = vpop.xlane.xlu0 %4099
        %v4101 = vsel %vm1613, %v4078, -inf
        %4102 = vmax.xlane.f32.xlu0 %v4101
        %v4103 = vpop.xlane.xlu0 %4102
        %v4104 = vsub.f32 %v3986, %v4082
        %v4105 = vsub.f32 %v3988, %v4085
        %v4106 = vsub.f32 %v4016, %v4088
        %v4107 = vsub.f32 %v4018, %v4091
        %v4108 = vsub.f32 %v4046, %v4094
        %v4109 = vsub.f32 %v4048, %v4097
        %v4110 = vsub.f32 %v4076, %v4100
        %v4111 = vsub.f32 %v4078, %v4103
        %v4112 = vmul.f32 %v4104, 1.442695
        %v4113 = vpow.pop %v4112
        %v4114 = vmul.f32 %v4105, 1.442695
        %v4115 = vpow.pop %v4114
        %v4116 = vmul.f32 %v4106, 1.442695
        %v4117 = vpow.pop %v4116
        %v4118 = vmul.f32 %v4107, 1.442695
        %v4119 = vpow.pop %v4118
        %v4120 = vmul.f32 %v4108, 1.442695
        %v4121 = vpow.pop %v4120
        %v4122 = vmul.f32 %v4109, 1.442695
        %v4123 = vpow.pop %v4122
        %v4124 = vmul.f32 %v4110, 1.442695
        %v4125 = vpow.pop %v4124
        %v4126 = vmul.f32 %v4111, 1.442695
        %v4127 = vpow.pop %v4126
        %v4128 = vsel %vm1613, %v4113, 0.0
        %4129 = vadd.xlane.f32.xlu0 %v4128
        %v4130 = vpop.xlane.xlu0 %4129
        %v4131 = vsel %vm1613, %v4115, 0.0
        %4132 = vadd.xlane.f32.xlu0 %v4131
        %v4133 = vpop.xlane.xlu0 %4132
        %v4134 = vsel %vm1613, %v4117, 0.0
        %4135 = vadd.xlane.f32.xlu0 %v4134
        %v4136 = vpop.xlane.xlu0 %4135
        %v4137 = vsel %vm1613, %v4119, 0.0
        %4138 = vadd.xlane.f32.xlu0 %v4137
        %v4139 = vpop.xlane.xlu0 %4138
        %v4140 = vsel %vm1613, %v4121, 0.0
        %4141 = vadd.xlane.f32.xlu0 %v4140
        %v4142 = vpop.xlane.xlu0 %4141
        %v4143 = vsel %vm1613, %v4123, 0.0
        %4144 = vadd.xlane.f32.xlu0 %v4143
        %v4145 = vpop.xlane.xlu0 %4144
        %v4146 = vsel %vm1613, %v4125, 0.0
        %4147 = vadd.xlane.f32.xlu0 %v4146
        %v4148 = vpop.xlane.xlu0 %4147
        %v4149 = vsel %vm1613, %v4127, 0.0
        %4150 = vadd.xlane.f32.xlu0 %v4149
        %v4151 = vpop.xlane.xlu0 %4150
        %v4152 = vrcp.pop %v4130
        %v4153 = vrcp.pop %v4133
        %v4154 = vrcp.pop %v4136
        %v4155 = vrcp.pop %v4139
        %v4156 = vrcp.pop %v4142
        %v4157 = vrcp.pop %v4145
        %v4158 = vrcp.pop %v4148
        %v4159 = vrcp.pop %v4151
        %v4160 = vmul.f32 %v4113, %v4152
        %v4161 = vmul.f32 %v4115, %v4153
        %v4162 = vmul.f32 %v4117, %v4154
        %v4163 = vmul.f32 %v4119, %v4155
        %v4164 = vmul.f32 %v4121, %v4156
        %v4165 = vmul.f32 %v4123, %v4157
        %v4166 = vmul.f32 %v4125, %v4158
        %v4167 = vmul.f32 %v4127, %v4159
        %v4168 = vpack.c.bf16 %v4160, %v4160
        %v4169 = vpack.c.bf16 %v4161, %v4161
        %v4170 = vpack.c.bf16 %v4162, %v4162
        %v4171 = vpack.c.bf16 %v4163, %v4163
        %v4172 = vpack.c.bf16 %v4164, %v4164
        %v4173 = vpack.c.bf16 %v4165, %v4165
        %v4174 = vpack.c.bf16 %v4166, %v4166
        %v4175 = vpack.c.bf16 %v4167, %v4167
        %v4178 = vunpack.c.l.b16 %v4168
        %v4179 = vunpack.c.l.b16 %v4169
        %v4180 = vpack.c.b16 %v4179, %v4178
        %v4183 = vunpack.c.l.b16 %v3952
        %v4184 = vunpack.c.l.b16 %v3953
        %v4185 = vpack.c.b16 %v4184, %v4183
        %v4188 = vsel %vm1613, %v4180, 0
        %4190 = vmatpush.bf16.msra.mxu0 0
        %4191 = vmatpush.bf16.msra.mxu0 0
        %4192 = vmatpush.bf16.msra.mxu0 0
        %4193 = vmatpush.bf16.msra.mxu0 0
        %4194 = vmatpush.bf16.msra.mxu0 0
        %4195 = vmatpush.bf16.msra.mxu0 0
        %4196 = vmatpush.bf16.msra.mxu0 0
        %4197 = vmatpush.bf16.msra.mxu0 %v4185
        %4198 = vmatmul.bf16.gmra.mxu0 %v4188
        %v4199 = vpop.f32.mrf.mxu0
        %v4200 = vadd.f32 0.0, %v4199
        %v4201 = vpop.f32.mrf.mxu0
        %v4202 = vadd.f32 0.0, %v4201
        %4203 = vdwg.mxu0
        %v4206 = vunpack.c.l.b16 %v4170
        %v4207 = vunpack.c.l.b16 %v4171
        %v4208 = vpack.c.b16 %v4207, %v4206
        %v4211 = vunpack.c.l.b16 %v3954
        %v4212 = vunpack.c.l.b16 %v3955
        %v4213 = vpack.c.b16 %v4212, %v4211
        %v4216 = vsel %vm1613, %v4208, 0
        %4218 = vmatpush.bf16.msra.mxu0 0
        %4219 = vmatpush.bf16.msra.mxu0 0
        %4220 = vmatpush.bf16.msra.mxu0 0
        %4221 = vmatpush.bf16.msra.mxu0 0
        %4222 = vmatpush.bf16.msra.mxu0 0
        %4223 = vmatpush.bf16.msra.mxu0 0
        %4224 = vmatpush.bf16.msra.mxu0 0
        %4225 = vmatpush.bf16.msra.mxu0 %v4213
        %4226 = vmatmul.bf16.gmra.mxu0 %v4216
        %v4227 = vpop.f32.mrf.mxu0
        %v4228 = vadd.f32 0.0, %v4227
        %v4229 = vpop.f32.mrf.mxu0
        %v4230 = vadd.f32 0.0, %v4229
        %4231 = vdwg.mxu0
        %v4234 = vunpack.c.l.b16 %v4172
        %v4235 = vunpack.c.l.b16 %v4173
        %v4236 = vpack.c.b16 %v4235, %v4234
        %v4239 = vunpack.c.l.b16 %v3956
        %v4240 = vunpack.c.l.b16 %v3957
        %v4241 = vpack.c.b16 %v4240, %v4239
        %v4244 = vsel %vm1613, %v4236, 0
        %4246 = vmatpush.bf16.msra.mxu0 0
        %4247 = vmatpush.bf16.msra.mxu0 0
        %4248 = vmatpush.bf16.msra.mxu0 0
        %4249 = vmatpush.bf16.msra.mxu0 0
        %4250 = vmatpush.bf16.msra.mxu0 0
        %4251 = vmatpush.bf16.msra.mxu0 0
        %4252 = vmatpush.bf16.msra.mxu0 0
        %4253 = vmatpush.bf16.msra.mxu0 %v4241
        %4254 = vmatmul.bf16.gmra.mxu0 %v4244
        %v4255 = vpop.f32.mrf.mxu0
        %v4256 = vadd.f32 0.0, %v4255
        %v4257 = vpop.f32.mrf.mxu0
        %v4258 = vadd.f32 0.0, %v4257
        %4259 = vdwg.mxu0
        %v4262 = vunpack.c.l.b16 %v4174
        %v4263 = vunpack.c.l.b16 %v4175
        %v4264 = vpack.c.b16 %v4263, %v4262
        %v4267 = vunpack.c.l.b16 %v3958
        %v4268 = vunpack.c.l.b16 %v3959
        %v4269 = vpack.c.b16 %v4268, %v4267
        %v4272 = vsel %vm1613, %v4264, 0
        %4274 = vmatpush.bf16.msra.mxu0 0
        %4275 = vmatpush.bf16.msra.mxu0 0
        %4276 = vmatpush.bf16.msra.mxu0 0
        %4277 = vmatpush.bf16.msra.mxu0 0
        %4278 = vmatpush.bf16.msra.mxu0 0
        %4279 = vmatpush.bf16.msra.mxu0 0
        %4280 = vmatpush.bf16.msra.mxu0 0
        %4281 = vmatpush.bf16.msra.mxu0 %v4269
        %4282 = vmatmul.bf16.gmra.mxu0 %v4272
        %v4283 = vpop.f32.mrf.mxu0
        %v4284 = vadd.f32 0.0, %v4283
        %v4285 = vpop.f32.mrf.mxu0
        %v4286 = vadd.f32 0.0, %v4285
        %4287 = vdwg.mxu0
        %v4288 = vpack.c.bf16 %v4200, %v4200
        %v4289 = vpack.c.bf16 %v4202, %v4202
        %v4290 = vpack.c.bf16 %v4228, %v4228
        %v4291 = vpack.c.bf16 %v4230, %v4230
        %v4292 = vpack.c.bf16 %v4256, %v4256
        %v4293 = vpack.c.bf16 %v4258, %v4258
        %v4294 = vpack.c.bf16 %v4284, %v4284
        %v4295 = vpack.c.bf16 %v4286, %v4286
        %s4296 = scalar_lea.vmem %s6, 64
        %v4297 = vld [vmem:[%s4296] sm:$0xf]
        %v4298 = vld [vmem:[%s4296 + $0x4] sm:$0xf]
        %v4299 = vld [vmem:[%s4296 + $0x8] sm:$0xf]
        %v4300 = vld [vmem:[%s4296 + $0xc] sm:$0xf]
        %v4301 = vld [vmem:[%s4296 + $0x10] sm:$0xf]
        %v4302 = vld [vmem:[%s4296 + $0x14] sm:$0xf]
        %v4303 = vld [vmem:[%s4296 + $0x18] sm:$0xf]
        %v4304 = vld [vmem:[%s4296 + $0x1c] sm:$0xf]
        %v4305 = vld [vmem:[%s4296 + $0x20] sm:$0xf]
        %v4306 = vld [vmem:[%s4296 + $0x24] sm:$0xf]
        %v4307 = vld [vmem:[%s4296 + $0x28] sm:$0xf]
        %v4308 = vld [vmem:[%s4296 + $0x2c] sm:$0xf]
        %v4309 = vld [vmem:[%s4296 + $0x30] sm:$0xf]
        %v4310 = vld [vmem:[%s4296 + $0x34] sm:$0xf]
        %v4311 = vld [vmem:[%s4296 + $0x38] sm:$0xf]
        %v4312 = vld [vmem:[%s4296 + $0x3c] sm:$0xf]
        %v4315 = vunpack.c.l.b16 %v4288
        %v4316 = vunpack.c.l.b16 %v4289
        %v4317 = vpack.c.b16 %v4316, %v4315
        %v4322 = vunpack.c.l.b16 %v4297
        %v4323 = vunpack.c.l.b16 %v4298
        %v4324 = vunpack.c.l.b16 %v4299
        %v4325 = vunpack.c.l.b16 %v4300
        %v4326 = vpack.c.b16 %v4323, %v4322
        %v4327 = vpack.c.b16 %v4325, %v4324
        %v4331 = vsel %vm1502, %v4317, 0
        %4333 = vmatpush.bf16.msra.mxu0 0
        %4334 = vmatpush.bf16.msra.mxu0 0
        %4335 = vmatpush.bf16.msra.mxu0 0
        %4336 = vmatpush.bf16.msra.mxu0 0
        %4337 = vmatpush.bf16.msra.mxu0 0
        %4338 = vmatpush.bf16.msra.mxu0 0
        %4339 = vmatpush.bf16.msra.mxu0 %v4327
        %4340 = vmatpush.bf16.msra.mxu0 %v4326
        %4341 = vmatmul.bf16.gmra.mxu0 %v4331
        %v4342 = vpop.f32.mrf.mxu0
        %v4343 = vadd.f32 0.0, %v4342
        %v4344 = vpop.f32.mrf.mxu0
        %v4345 = vadd.f32 0.0, %v4344
        %4346 = vdwg.mxu0
        %v4349 = vunpack.c.l.b16 %v4290
        %v4350 = vunpack.c.l.b16 %v4291
        %v4351 = vpack.c.b16 %v4350, %v4349
        %v4356 = vunpack.c.l.b16 %v4301
        %v4357 = vunpack.c.l.b16 %v4302
        %v4358 = vunpack.c.l.b16 %v4303
        %v4359 = vunpack.c.l.b16 %v4304
        %v4360 = vpack.c.b16 %v4357, %v4356
        %v4361 = vpack.c.b16 %v4359, %v4358
        %v4365 = vsel %vm1502, %v4351, 0
        %4367 = vmatpush.bf16.msra.mxu0 0
        %4368 = vmatpush.bf16.msra.mxu0 0
        %4369 = vmatpush.bf16.msra.mxu0 0
        %4370 = vmatpush.bf16.msra.mxu0 0
        %4371 = vmatpush.bf16.msra.mxu0 0
        %4372 = vmatpush.bf16.msra.mxu0 0
        %4373 = vmatpush.bf16.msra.mxu0 %v4361
        %4374 = vmatpush.bf16.msra.mxu0 %v4360
        %4375 = vmatmul.bf16.gmra.mxu0 %v4365
        %v4376 = vpop.f32.mrf.mxu0
        %v4377 = vadd.f32 0.0, %v4376
        %v4378 = vpop.f32.mrf.mxu0
        %v4379 = vadd.f32 0.0, %v4378
        %4380 = vdwg.mxu0
        %v4383 = vunpack.c.l.b16 %v4292
        %v4384 = vunpack.c.l.b16 %v4293
        %v4385 = vpack.c.b16 %v4384, %v4383
        %v4390 = vunpack.c.l.b16 %v4305
        %v4391 = vunpack.c.l.b16 %v4306
        %v4392 = vunpack.c.l.b16 %v4307
        %v4393 = vunpack.c.l.b16 %v4308
        %v4394 = vpack.c.b16 %v4391, %v4390
        %v4395 = vpack.c.b16 %v4393, %v4392
        %v4399 = vsel %vm1502, %v4385, 0
        %4401 = vmatpush.bf16.msra.mxu0 0
        %4402 = vmatpush.bf16.msra.mxu0 0
        %4403 = vmatpush.bf16.msra.mxu0 0
        %4404 = vmatpush.bf16.msra.mxu0 0
        %4405 = vmatpush.bf16.msra.mxu0 0
        %4406 = vmatpush.bf16.msra.mxu0 0
        %4407 = vmatpush.bf16.msra.mxu0 %v4395
        %4408 = vmatpush.bf16.msra.mxu0 %v4394
        %4409 = vmatmul.bf16.gmra.mxu0 %v4399
        %v4410 = vpop.f32.mrf.mxu0
        %v4411 = vadd.f32 0.0, %v4410
        %v4412 = vpop.f32.mrf.mxu0
        %v4413 = vadd.f32 0.0, %v4412
        %4414 = vdwg.mxu0
        %v4417 = vunpack.c.l.b16 %v4294
        %v4418 = vunpack.c.l.b16 %v4295
        %v4419 = vpack.c.b16 %v4418, %v4417
        %v4424 = vunpack.c.l.b16 %v4309
        %v4425 = vunpack.c.l.b16 %v4310
        %v4426 = vunpack.c.l.b16 %v4311
        %v4427 = vunpack.c.l.b16 %v4312
        %v4428 = vpack.c.b16 %v4425, %v4424
        %v4429 = vpack.c.b16 %v4427, %v4426
        %v4433 = vsel %vm1502, %v4419, 0
        %4435 = vmatpush.bf16.msra.mxu0 0
        %4436 = vmatpush.bf16.msra.mxu0 0
        %4437 = vmatpush.bf16.msra.mxu0 0
        %4438 = vmatpush.bf16.msra.mxu0 0
        %4439 = vmatpush.bf16.msra.mxu0 0
        %4440 = vmatpush.bf16.msra.mxu0 0
        %4441 = vmatpush.bf16.msra.mxu0 %v4429
        %4442 = vmatpush.bf16.msra.mxu0 %v4428
        %4443 = vmatmul.bf16.gmra.mxu0 %v4433
        %v4444 = vpop.f32.mrf.mxu0
        %v4445 = vadd.f32 0.0, %v4444
        %v4446 = vpop.f32.mrf.mxu0
        %v4447 = vadd.f32 0.0, %v4446
        %4448 = vdwg.mxu0
        %v4449 = vadd.f32 %v4343, %v4377
        %v4450 = vadd.f32 %v4449, %v4411
        %v4451 = vadd.f32 %v4450, %v4445
        %v4452 = vadd.f32 %v4345, %v4379
        %v4453 = vadd.f32 %v4452, %v4413
        %v4454 = vadd.f32 %v4453, %v4447
        %v4455 = vld [vmem:[%s7 + $0x1] sm:$0x1]
        %v4456 = vperm.slane %v4455, 0
        %v4457 = vadd.f32 %v4451, %v4456
        %v4458 = vadd.f32 %v4454, %v4456
        %v4459 = vadd.f32 %v2939, %v4457
        %v4460 = vadd.f32 %v2940, %v4458
        %v4461 = vld [vmem:[%s8 + $0x1] sm:$0x1]
        %v4462 = vld [vmem:[%s9 + $0x1] sm:$0x1]
        %4463 = vadd.xlane.f32.xlu0 %v4459
        %v4464 = vpop.xlane.xlu0 %4463
        %4465 = vadd.xlane.f32.xlu0 %v4460
        %v4466 = vpop.xlane.xlu0 %4465
        %v4467 = vmul.f32 %v4464, %v481
        %v4468 = vmul.f32 %v4466, %v481
        %v4469 = vsub.f32 %v4459, %v4467
        %v4470 = vsub.f32 %v4460, %v4468
        %v4471 = vmul.f32 %v4469, %v4469
        %v4472 = vmul.f32 %v4470, %v4470
        %4473 = vadd.xlane.f32.xlu0 %v4471
        %v4474 = vpop.xlane.xlu0 %4473
        %4475 = vadd.xlane.f32.xlu0 %v4472
        %v4476 = vpop.xlane.xlu0 %4475
        %v4477 = vmul.f32 %v4474, %v481
        %v4478 = vmul.f32 %v4476, %v481
        %v4479 = vadd.f32 %v4477, 1e-05
        %v4480 = vadd.f32 %v4478, 1e-05
        %v4481 = vrsqrt.pop %v4479
        %v4482 = vmul.f32 %v4481, %v4479
        %v4483 = vmul.f32 %v4482, %v4481
        %v4484 = vmul.f32 0.5, %v4483
        %v4485 = vsub.f32 1.5, %v4484
        %v4486 = vmul.f32 %v4481, %v4485
        %vm4487 = vweird.f32 %v4479
        %vm4488 = vweird.f32 %v4481
        %vm4489 = vmor %vm4487, %vm4488
        %v4490 = vsel %vm4489, %v4481, %v4486
        %v4491 = vrsqrt.pop %v4480
        %v4492 = vmul.f32 %v4491, %v4480
        %v4493 = vmul.f32 %v4492, %v4491
        %v4494 = vmul.f32 0.5, %v4493
        %v4495 = vsub.f32 1.5, %v4494
        %v4496 = vmul.f32 %v4491, %v4495
        %vm4497 = vweird.f32 %v4480
        %vm4498 = vweird.f32 %v4491
        %vm4499 = vmor %vm4497, %vm4498
        %v4500 = vsel %vm4499, %v4491, %v4496
        %v4501 = vmul.f32 %v4469, %v4490
        %v4502 = vmul.f32 %v4470, %v4500
        %v4503 = vperm.slane %v4461, 0
        %v4504 = vmul.f32 %v4501, %v4503
        %v4505 = vmul.f32 %v4502, %v4503
        %v4506 = vperm.slane %v4462, 0
        %v4507 = vadd.f32 %v4504, %v4506
        %v4508 = vadd.f32 %v4505, %v4506
        %v4509 = vpack.c.bf16 %v4508, %v4507
        %s4510 = scalar_lea.vmem %s10, 256
        %v4511 = vld [vmem:[%s4510] sm:$0xff]
        %v4512 = vld [vmem:[%s4510 + $0x8] sm:$0xff]
        %v4513 = vld [vmem:[%s4510 + $0x10] sm:$0xff]
        %v4514 = vld [vmem:[%s4510 + $0x18] sm:$0xff]
        %v4515 = vld [vmem:[%s4510 + $0x20] sm:$0xff]
        %v4516 = vld [vmem:[%s4510 + $0x28] sm:$0xff]
        %v4517 = vld [vmem:[%s4510 + $0x30] sm:$0xff]
        %v4518 = vld [vmem:[%s4510 + $0x38] sm:$0xff]
        %v4519 = vld [vmem:[%s4510 + $0x40] sm:$0xff]
        %v4520 = vld [vmem:[%s4510 + $0x48] sm:$0xff]
        %v4521 = vld [vmem:[%s4510 + $0x50] sm:$0xff]
        %v4522 = vld [vmem:[%s4510 + $0x58] sm:$0xff]
        %v4523 = vld [vmem:[%s4510 + $0x60] sm:$0xff]
        %v4524 = vld [vmem:[%s4510 + $0x68] sm:$0xff]
        %v4525 = vld [vmem:[%s4510 + $0x70] sm:$0xff]
        %v4526 = vld [vmem:[%s4510 + $0x78] sm:$0xff]
        %v4527 = vld [vmem:[%s4510 + $0x80] sm:$0xff]
        %v4528 = vld [vmem:[%s4510 + $0x88] sm:$0xff]
        %v4529 = vld [vmem:[%s4510 + $0x90] sm:$0xff]
        %v4530 = vld [vmem:[%s4510 + $0x98] sm:$0xff]
        %v4531 = vld [vmem:[%s4510 + $0xa0] sm:$0xff]
        %v4532 = vld [vmem:[%s4510 + $0xa8] sm:$0xff]
        %v4533 = vld [vmem:[%s4510 + $0xb0] sm:$0xff]
        %v4534 = vld [vmem:[%s4510 + $0xb8] sm:$0xff]
        %v4535 = vld [vmem:[%s4510 + $0xc0] sm:$0xff]
        %v4536 = vld [vmem:[%s4510 + $0xc8] sm:$0xff]
        %v4537 = vld [vmem:[%s4510 + $0xd0] sm:$0xff]
        %v4538 = vld [vmem:[%s4510 + $0xd8] sm:$0xff]
        %v4539 = vld [vmem:[%s4510 + $0xe0] sm:$0xff]
        %v4540 = vld [vmem:[%s4510 + $0xe8] sm:$0xff]
        %v4541 = vld [vmem:[%s4510 + $0xf0] sm:$0xff]
        %v4542 = vld [vmem:[%s4510 + $0xf8] sm:$0xff]
        %s4543 = scalar_lea.vmem %s11, 1
        %v4544 = vld [vmem:[%s4543] ss:$2 sm:$0xf]
        %v4546 = vperm.slane %v4544, 0
        %v4547 = vperm.slane %v4544, 1
        %v4548 = vperm.slane %v4544, 2
        %v4549 = vperm.slane %v4544, 3
        %v4586 = vunpack.c.l.b16 %v4511
        %v4587 = vunpack.c.h.b16 %v4511
        %v4588 = vunpack.c.l.b16 %v4512
        %v4589 = vunpack.c.h.b16 %v4512
        %v4590 = vunpack.c.l.b16 %v4513
        %v4591 = vunpack.c.h.b16 %v4513
        %v4592 = vunpack.c.l.b16 %v4514
        %v4593 = vunpack.c.h.b16 %v4514
        %v4594 = vunpack.c.l.b16 %v4515
        %v4595 = vunpack.c.h.b16 %v4515
        %v4596 = vunpack.c.l.b16 %v4516
        %v4597 = vunpack.c.h.b16 %v4516
        %v4598 = vunpack.c.l.b16 %v4517
        %v4599 = vunpack.c.h.b16 %v4517
        %v4600 = vunpack.c.l.b16 %v4518
        %v4601 = vunpack.c.h.b16 %v4518
        %v4602 = vunpack.c.l.b16 %v4519
        %v4603 = vunpack.c.h.b16 %v4519
        %v4604 = vunpack.c.l.b16 %v4520
        %v4605 = vunpack.c.h.b16 %v4520
        %v4606 = vunpack.c.l.b16 %v4521
        %v4607 = vunpack.c.h.b16 %v4521
        %v4608 = vunpack.c.l.b16 %v4522
        %v4609 = vunpack.c.h.b16 %v4522
        %v4610 = vunpack.c.l.b16 %v4523
        %v4611 = vunpack.c.h.b16 %v4523
        %v4612 = vunpack.c.l.b16 %v4524
        %v4613 = vunpack.c.h.b16 %v4524
        %v4614 = vunpack.c.l.b16 %v4525
        %v4615 = vunpack.c.h.b16 %v4525
        %v4616 = vunpack.c.l.b16 %v4526
        %v4617 = vunpack.c.h.b16 %v4526
        %v4618 = vunpack.c.l.b16 %v4527
        %v4619 = vunpack.c.h.b16 %v4527
        %v4620 = vunpack.c.l.b16 %v4528
        %v4621 = vunpack.c.h.b16 %v4528
        %v4622 = vunpack.c.l.b16 %v4529
        %v4623 = vunpack.c.h.b16 %v4529
        %v4624 = vunpack.c.l.b16 %v4530
        %v4625 = vunpack.c.h.b16 %v4530
        %v4626 = vunpack.c.l.b16 %v4531
        %v4627 = vunpack.c.h.b16 %v4531
        %v4628 = vunpack.c.l.b16 %v4532
        %v4629 = vunpack.c.h.b16 %v4532
        %v4630 = vunpack.c.l.b16 %v4533
        %v4631 = vunpack.c.h.b16 %v4533
        %v4632 = vunpack.c.l.b16 %v4534
        %v4633 = vunpack.c.h.b16 %v4534
        %v4634 = vunpack.c.l.b16 %v4535
        %v4635 = vunpack.c.h.b16 %v4535
        %v4636 = vunpack.c.l.b16 %v4536
        %v4637 = vunpack.c.h.b16 %v4536
        %v4638 = vunpack.c.l.b16 %v4537
        %v4639 = vunpack.c.h.b16 %v4537
        %v4640 = vunpack.c.l.b16 %v4538
        %v4641 = vunpack.c.h.b16 %v4538
        %v4642 = vunpack.c.l.b16 %v4539
        %v4643 = vunpack.c.h.b16 %v4539
        %v4644 = vunpack.c.l.b16 %v4540
        %v4645 = vunpack.c.h.b16 %v4540
        %v4646 = vunpack.c.l.b16 %v4541
        %v4647 = vunpack.c.h.b16 %v4541
        %v4648 = vunpack.c.l.b16 %v4542
        %v4649 = vunpack.c.h.b16 %v4542
        %v4650 = vpack.c.b16 %v4590, %v4586
        %v4651 = vpack.c.b16 %v4591, %v4587
        %v4652 = vpack.c.b16 %v4592, %v4588
        %v4653 = vpack.c.b16 %v4593, %v4589
        %v4654 = vpack.c.b16 %v4598, %v4594
        %v4655 = vpack.c.b16 %v4599, %v4595
        %v4656 = vpack.c.b16 %v4600, %v4596
        %v4657 = vpack.c.b16 %v4601, %v4597
        %v4658 = vpack.c.b16 %v4606, %v4602
        %v4659 = vpack.c.b16 %v4607, %v4603
        %v4660 = vpack.c.b16 %v4608, %v4604
        %v4661 = vpack.c.b16 %v4609, %v4605
        %v4662 = vpack.c.b16 %v4614, %v4610
        %v4663 = vpack.c.b16 %v4615, %v4611
        %v4664 = vpack.c.b16 %v4616, %v4612
        %v4665 = vpack.c.b16 %v4617, %v4613
        %v4666 = vpack.c.b16 %v4622, %v4618
        %v4667 = vpack.c.b16 %v4623, %v4619
        %v4668 = vpack.c.b16 %v4624, %v4620
        %v4669 = vpack.c.b16 %v4625, %v4621
        %v4670 = vpack.c.b16 %v4630, %v4626
        %v4671 = vpack.c.b16 %v4631, %v4627
        %v4672 = vpack.c.b16 %v4632, %v4628
        %v4673 = vpack.c.b16 %v4633, %v4629
        %v4674 = vpack.c.b16 %v4638, %v4634
        %v4675 = vpack.c.b16 %v4639, %v4635
        %v4676 = vpack.c.b16 %v4640, %v4636
        %v4677 = vpack.c.b16 %v4641, %v4637
        %v4678 = vpack.c.b16 %v4646, %v4642
        %v4679 = vpack.c.b16 %v4647, %v4643
        %v4680 = vpack.c.b16 %v4648, %v4644
        %v4681 = vpack.c.b16 %v4649, %v4645
        %4714 = vmatpush.bf16.msra.mxu0 %v4678
        %4715 = vmatpush.bf16.msra.mxu0 %v4674
        %4716 = vmatpush.bf16.msra.mxu0 %v4670
        %4717 = vmatpush.bf16.msra.mxu0 %v4666
        %4718 = vmatpush.bf16.msra.mxu0 %v4662
        %4719 = vmatpush.bf16.msra.mxu0 %v4658
        %4720 = vmatpush.bf16.msra.mxu0 %v4654
        %4721 = vmatpush.bf16.msra.mxu0 %v4650
        %4722 = vmatmul.bf16.gmra.mxu0 %v4509
        %v4723 = vpop.f32.mrf.mxu0
        %v4724 = vadd.f32 %v4546, %v4723
        %v4725 = vpop.f32.mrf.mxu0
        %v4726 = vadd.f32 %v4546, %v4725
        %4727 = vdwg.mxu0
        %4728 = vmatpush.bf16.msra.mxu0 %v4679
        %4729 = vmatpush.bf16.msra.mxu0 %v4675
        %4730 = vmatpush.bf16.msra.mxu0 %v4671
        %4731 = vmatpush.bf16.msra.mxu0 %v4667
        %4732 = vmatpush.bf16.msra.mxu0 %v4663
        %4733 = vmatpush.bf16.msra.mxu0 %v4659
        %4734 = vmatpush.bf16.msra.mxu0 %v4655
        %4735 = vmatpush.bf16.msra.mxu0 %v4651
        %4736 = vmatmul.bf16.gmra.mxu0 %v4509
        %v4737 = vpop.f32.mrf.mxu0
        %v4738 = vadd.f32 %v4547, %v4737
        %v4739 = vpop.f32.mrf.mxu0
        %v4740 = vadd.f32 %v4547, %v4739
        %4741 = vdwg.mxu0
        %4742 = vmatpush.bf16.msra.mxu0 %v4680
        %4743 = vmatpush.bf16.msra.mxu0 %v4676
        %4744 = vmatpush.bf16.msra.mxu0 %v4672
        %4745 = vmatpush.bf16.msra.mxu0 %v4668
        %4746 = vmatpush.bf16.msra.mxu0 %v4664
        %4747 = vmatpush.bf16.msra.mxu0 %v4660
        %4748 = vmatpush.bf16.msra.mxu0 %v4656
        %4749 = vmatpush.bf16.msra.mxu0 %v4652
        %4750 = vmatmul.bf16.gmra.mxu0 %v4509
        %v4751 = vpop.f32.mrf.mxu0
        %v4752 = vadd.f32 %v4548, %v4751
        %v4753 = vpop.f32.mrf.mxu0
        %v4754 = vadd.f32 %v4548, %v4753
        %4755 = vdwg.mxu0
        %4756 = vmatpush.bf16.msra.mxu0 %v4681
        %4757 = vmatpush.bf16.msra.mxu0 %v4677
        %4758 = vmatpush.bf16.msra.mxu0 %v4673
        %4759 = vmatpush.bf16.msra.mxu0 %v4669
        %4760 = vmatpush.bf16.msra.mxu0 %v4665
        %4761 = vmatpush.bf16.msra.mxu0 %v4661
        %4762 = vmatpush.bf16.msra.mxu0 %v4657
        %4763 = vmatpush.bf16.msra.mxu0 %v4653
        %4764 = vmatmul.bf16.gmra.mxu0 %v4509
        %v4765 = vpop.f32.mrf.mxu0
        %v4766 = vadd.f32 %v4549, %v4765
        %v4767 = vpop.f32.mrf.mxu0
        %v4768 = vadd.f32 %v4549, %v4767
        %4769 = vdwg.mxu0
        %v4770 = vmul.f32 %v4724, 0.5
        %v4771 = vmul.f32 %v4738, 0.5
        %v4772 = vmul.f32 %v4752, 0.5
        %v4773 = vmul.f32 %v4766, 0.5
        %v4774 = vmul.f32 %v4726, 0.5
        %v4775 = vmul.f32 %v4740, 0.5
        %v4776 = vmul.f32 %v4754, 0.5
        %v4777 = vmul.f32 %v4768, 0.5
        %v4778 = vmul.f32 %v4724, 0.70710677
        %v4779 = vmul.f32 %v4738, 0.70710677
        %v4780 = vmul.f32 %v4752, 0.70710677
        %v4781 = vmul.f32 %v4766, 0.70710677
        %v4782 = vmul.f32 %v4726, 0.70710677
        %v4783 = vmul.f32 %v4740, 0.70710677
        %v4784 = vmul.f32 %v4754, 0.70710677
        %v4785 = vmul.f32 %v4768, 0.70710677
        %vm4786 = vcmp.ge.f32.partialorder %v4778, 0.0
        %vm4787 = vcmp.ge.f32.partialorder %v4779, 0.0
        %vm4788 = vcmp.ge.f32.partialorder %v4780, 0.0
        %vm4789 = vcmp.ge.f32.partialorder %v4781, 0.0
        %vm4790 = vcmp.ge.f32.partialorder %v4782, 0.0
        %vm4791 = vcmp.ge.f32.partialorder %v4783, 0.0
        %vm4792 = vcmp.ge.f32.partialorder %v4784, 0.0
        %vm4793 = vcmp.ge.f32.partialorder %v4785, 0.0
        %v4794 = vsel %vm4786, 1.0, -1.0
        %v4795 = vsel %vm4787, 1.0, -1.0
        %v4796 = vsel %vm4788, 1.0, -1.0
        %v4797 = vsel %vm4789, 1.0, -1.0
        %v4798 = vsel %vm4790, 1.0, -1.0
        %v4799 = vsel %vm4791, 1.0, -1.0
        %v4800 = vsel %vm4792, 1.0, -1.0
        %v4801 = vsel %vm4793, 1.0, -1.0
        %v4802 = vand.u32 2147483647, %v4778
        %v4803 = vand.u32 2147483647, %v4779
        %v4804 = vand.u32 2147483647, %v4780
        %v4805 = vand.u32 2147483647, %v4781
        %v4806 = vand.u32 2147483647, %v4782
        %v4807 = vand.u32 2147483647, %v4783
        %v4808 = vand.u32 2147483647, %v4784
        %v4809 = vand.u32 2147483647, %v4785
        %v4810 = vmul.f32 %v4802, 0.3275911
        %v4811 = vmul.f32 %v4803, 0.3275911
        %v4812 = vmul.f32 %v4804, 0.3275911
        %v4813 = vmul.f32 %v4805, 0.3275911
        %v4814 = vmul.f32 %v4806, 0.3275911
        %v4815 = vmul.f32 %v4807, 0.3275911
        %v4816 = vmul.f32 %v4808, 0.3275911
        %v4817 = vmul.f32 %v4809, 0.3275911
        %v4818 = vadd.f32 %v4810, 1.0
        %v4819 = vadd.f32 %v4811, 1.0
        %v4820 = vadd.f32 %v4812, 1.0
        %v4821 = vadd.f32 %v4813, 1.0
        %v4822 = vadd.f32 %v4814, 1.0
        %v4823 = vadd.f32 %v4815, 1.0
        %v4824 = vadd.f32 %v4816, 1.0
        %v4825 = vadd.f32 %v4817, 1.0
        %v4826 = vrcp.pop %v4818
        %v4827 = vmul.f32 %v4818, %v4826
        %v4828 = vsub.f32 1.0, %v4827
        %v4829 = vmul.f32 %v4826, %v4828
        %v4830 = vadd.f32 %v4826, %v4829
        %vm4831 = vweird.f32 %v4818
        %vm4832 = vweird.f32 %v4826
        %vm4833 = vmor %vm4831, %vm4832
        %v4834 = vsel %vm4833, %v4826, %v4830
        %v4835 = vand.u32 2147483647, %v4818
        %vm4836 = vcmp.eq.f32.partialorder %v4835, 8.507059e+37
        %v4837 = vand.u32 %v4818, 2147483648
        %v4838 = vor.u32 1.1754944e-38, %v4837
        %v4839 = vsel %vm4836, %v4838, %v4834
        %v4840 = vmul.f32 1.0, %v4839
        %v4841 = vrcp.pop %v4819
        %v4842 = vmul.f32 %v4819, %v4841
        %v4843 = vsub.f32 1.0, %v4842
        %v4844 = vmul.f32 %v4841, %v4843
        %v4845 = vadd.f32 %v4841, %v4844
        %vm4846 = vweird.f32 %v4819
        %vm4847 = vweird.f32 %v4841
        %vm4848 = vmor %vm4846, %vm4847
        %v4849 = vsel %vm4848, %v4841, %v4845
        %v4850 = vand.u32 2147483647, %v4819
        %vm4851 = vcmp.eq.f32.partialorder %v4850, 8.507059e+37
        %v4852 = vand.u32 %v4819, 2147483648
        %v4853 = vor.u32 1.1754944e-38, %v4852
        %v4854 = vsel %vm4851, %v4853, %v4849
        %v4855 = vmul.f32 1.0, %v4854
        %v4856 = vrcp.pop %v4820
        %v4857 = vmul.f32 %v4820, %v4856
        %v4858 = vsub.f32 1.0, %v4857
        %v4859 = vmul.f32 %v4856, %v4858
        %v4860 = vadd.f32 %v4856, %v4859
        %vm4861 = vweird.f32 %v4820
        %vm4862 = vweird.f32 %v4856
        %vm4863 = vmor %vm4861, %vm4862
        %v4864 = vsel %vm4863, %v4856, %v4860
        %v4865 = vand.u32 2147483647, %v4820
        %vm4866 = vcmp.eq.f32.partialorder %v4865, 8.507059e+37
        %v4867 = vand.u32 %v4820, 2147483648
        %v4868 = vor.u32 1.1754944e-38, %v4867
        %v4869 = vsel %vm4866, %v4868, %v4864
        %v4870 = vmul.f32 1.0, %v4869
        %v4871 = vrcp.pop %v4821
        %v4872 = vmul.f32 %v4821, %v4871
        %v4873 = vsub.f32 1.0, %v4872
        %v4874 = vmul.f32 %v4871, %v4873
        %v4875 = vadd.f32 %v4871, %v4874
        %vm4876 = vweird.f32 %v4821
        %vm4877 = vweird.f32 %v4871
        %vm4878 = vmor %vm4876, %vm4877
        %v4879 = vsel %vm4878, %v4871, %v4875
        %v4880 = vand.u32 2147483647, %v4821
        %vm4881 = vcmp.eq.f32.partialorder %v4880, 8.507059e+37
        %v4882 = vand.u32 %v4821, 2147483648
        %v4883 = vor.u32 1.1754944e-38, %v4882
        %v4884 = vsel %vm4881, %v4883, %v4879
        %v4885 = vmul.f32 1.0, %v4884
        %v4886 = vrcp.pop %v4822
        %v4887 = vmul.f32 %v4822, %v4886
        %v4888 = vsub.f32 1.0, %v4887
        %v4889 = vmul.f32 %v4886, %v4888
        %v4890 = vadd.f32 %v4886, %v4889
        %vm4891 = vweird.f32 %v4822
        %vm4892 = vweird.f32 %v4886
        %vm4893 = vmor %vm4891, %vm4892
        %v4894 = vsel %vm4893, %v4886, %v4890
        %v4895 = vand.u32 2147483647, %v4822
        %vm4896 = vcmp.eq.f32.partialorder %v4895, 8.507059e+37
        %v4897 = vand.u32 %v4822, 2147483648
        %v4898 = vor.u32 1.1754944e-38, %v4897
        %v4899 = vsel %vm4896, %v4898, %v4894
        %v4900 = vmul.f32 1.0, %v4899
        %v4901 = vrcp.pop %v4823
        %v4902 = vmul.f32 %v4823, %v4901
        %v4903 = vsub.f32 1.0, %v4902
        %v4904 = vmul.f32 %v4901, %v4903
        %v4905 = vadd.f32 %v4901, %v4904
        %vm4906 = vweird.f32 %v4823
        %vm4907 = vweird.f32 %v4901
        %vm4908 = vmor %vm4906, %vm4907
        %v4909 = vsel %vm4908, %v4901, %v4905
        %v4910 = vand.u32 2147483647, %v4823
        %vm4911 = vcmp.eq.f32.partialorder %v4910, 8.507059e+37
        %v4912 = vand.u32 %v4823, 2147483648
        %v4913 = vor.u32 1.1754944e-38, %v4912
        %v4914 = vsel %vm4911, %v4913, %v4909
        %v4915 = vmul.f32 1.0, %v4914
        %v4916 = vrcp.pop %v4824
        %v4917 = vmul.f32 %v4824, %v4916
        %v4918 = vsub.f32 1.0, %v4917
        %v4919 = vmul.f32 %v4916, %v4918
        %v4920 = vadd.f32 %v4916, %v4919
        %vm4921 = vweird.f32 %v4824
        %vm4922 = vweird.f32 %v4916
        %vm4923 = vmor %vm4921, %vm4922
        %v4924 = vsel %vm4923, %v4916, %v4920
        %v4925 = vand.u32 2147483647, %v4824
        %vm4926 = vcmp.eq.f32.partialorder %v4925, 8.507059e+37
        %v4927 = vand.u32 %v4824, 2147483648
        %v4928 = vor.u32 1.1754944e-38, %v4927
        %v4929 = vsel %vm4926, %v4928, %v4924
        %v4930 = vmul.f32 1.0, %v4929
        %v4931 = vrcp.pop %v4825
        %v4932 = vmul.f32 %v4825, %v4931
        %v4933 = vsub.f32 1.0, %v4932
        %v4934 = vmul.f32 %v4931, %v4933
        %v4935 = vadd.f32 %v4931, %v4934
        %vm4936 = vweird.f32 %v4825
        %vm4937 = vweird.f32 %v4931
        %vm4938 = vmor %vm4936, %vm4937
        %v4939 = vsel %vm4938, %v4931, %v4935
        %v4940 = vand.u32 2147483647, %v4825
        %vm4941 = vcmp.eq.f32.partialorder %v4940, 8.507059e+37
        %v4942 = vand.u32 %v4825, 2147483648
        %v4943 = vor.u32 1.1754944e-38, %v4942
        %v4944 = vsel %vm4941, %v4943, %v4939
        %v4945 = vmul.f32 1.0, %v4944
        %v4946 = vmul.f32 %v4840, 1.0614054
        %v4947 = vmul.f32 %v4855, 1.0614054
        %v4948 = vmul.f32 %v4870, 1.0614054
        %v4949 = vmul.f32 %v4885, 1.0614054
        %v4950 = vmul.f32 %v4900, 1.0614054
        %v4951 = vmul.f32 %v4915, 1.0614054
        %v4952 = vmul.f32 %v4930, 1.0614054
        %v4953 = vmul.f32 %v4945, 1.0614054
        %v4954 = vadd.f32 %v4946, -1.4531521
        %v4955 = vadd.f32 %v4947, -1.4531521
        %v4956 = vadd.f32 %v4948, -1.4531521
        %v4957 = vadd.f32 %v4949, -1.4531521
        %v4958 = vadd.f32 %v4950, -1.4531521
        %v4959 = vadd.f32 %v4951, -1.4531521
        %v4960 = vadd.f32 %v4952, -1.4531521
        %v4961 = vadd.f32 %v4953, -1.4531521
        %v4962 = vmul.f32 %v4954, %v4840
        %v4963 = vmul.f32 %v4955, %v4855
        %v4964 = vmul.f32 %v4956, %v4870
        %v4965 = vmul.f32 %v4957, %v4885
        %v4966 = vmul.f32 %v4958, %v4900
        %v4967 = vmul.f32 %v4959, %v4915
        %v4968 = vmul.f32 %v4960, %v4930
        %v4969 = vmul.f32 %v4961, %v4945
        %v4970 = vadd.f32 %v4962, 1.4214138
        %v4971 = vadd.f32 %v4963, 1.4214138
        %v4972 = vadd.f32 %v4964, 1.4214138
        %v4973 = vadd.f32 %v4965, 1.4214138
        %v4974 = vadd.f32 %v4966, 1.4214138
        %v4975 = vadd.f32 %v4967, 1.4214138
        %v4976 = vadd.f32 %v4968, 1.4214138
        %v4977 = vadd.f32 %v4969, 1.4214138
        %v4978 = vmul.f32 %v4970, %v4840
        %v4979 = vmul.f32 %v4971, %v4855
        %v4980 = vmul.f32 %v4972, %v4870
        %v4981 = vmul.f32 %v4973, %v4885
        %v4982 = vmul.f32 %v4974, %v4900
        %v4983 = vmul.f32 %v4975, %v4915
        %v4984 = vmul.f32 %v4976, %v4930
        %v4985 = vmul.f32 %v4977, %v4945
        %v4986 = vadd.f32 %v4978, -0.28449672
        %v4987 = vadd.f32 %v4979, -0.28449672
        %v4988 = vadd.f32 %v4980, -0.28449672
        %v4989 = vadd.f32 %v4981, -0.28449672
        %v4990 = vadd.f32 %v4982, -0.28449672
        %v4991 = vadd.f32 %v4983, -0.28449672
        %v4992 = vadd.f32 %v4984, -0.28449672
        %v4993 = vadd.f32 %v4985, -0.28449672
        %v4994 = vmul.f32 %v4986, %v4840
        %v4995 = vmul.f32 %v4987, %v4855
        %v4996 = vmul.f32 %v4988, %v4870
        %v4997 = vmul.f32 %v4989, %v4885
        %v4998 = vmul.f32 %v4990, %v4900
        %v4999 = vmul.f32 %v4991, %v4915
        %v5000 = vmul.f32 %v4992, %v4930
        %v5001 = vmul.f32 %v4993, %v4945
        %v5002 = vadd.f32 %v4994, 0.2548296
        %v5003 = vadd.f32 %v4995, 0.2548296
        %v5004 = vadd.f32 %v4996, 0.2548296
        %v5005 = vadd.f32 %v4997, 0.2548296
        %v5006 = vadd.f32 %v4998, 0.2548296
        %v5007 = vadd.f32 %v4999, 0.2548296
        %v5008 = vadd.f32 %v5000, 0.2548296
        %v5009 = vadd.f32 %v5001, 0.2548296
        %v5010 = vmul.f32 %v5002, %v4840
        %v5011 = vmul.f32 %v5003, %v4855
        %v5012 = vmul.f32 %v5004, %v4870
        %v5013 = vmul.f32 %v5005, %v4885
        %v5014 = vmul.f32 %v5006, %v4900
        %v5015 = vmul.f32 %v5007, %v4915
        %v5016 = vmul.f32 %v5008, %v4930
        %v5017 = vmul.f32 %v5009, %v4945
        %v5018 = vsub.f32 0.0, %v4802
        %v5019 = vsub.f32 0.0, %v4803
        %v5020 = vsub.f32 0.0, %v4804
        %v5021 = vsub.f32 0.0, %v4805
        %v5022 = vsub.f32 0.0, %v4806
        %v5023 = vsub.f32 0.0, %v4807
        %v5024 = vsub.f32 0.0, %v4808
        %v5025 = vsub.f32 0.0, %v4809
        %v5026 = vmul.f32 %v5018, %v4802
        %v5027 = vmul.f32 %v5019, %v4803
        %v5028 = vmul.f32 %v5020, %v4804
        %v5029 = vmul.f32 %v5021, %v4805
        %v5030 = vmul.f32 %v5022, %v4806
        %v5031 = vmul.f32 %v5023, %v4807
        %v5032 = vmul.f32 %v5024, %v4808
        %v5033 = vmul.f32 %v5025, %v4809
        %v5034 = vmul.f32 %v5026, 1.442695
        %v5035 = vpow.pop %v5034
        %v5036 = vmul.f32 %v5027, 1.442695
        %v5037 = vpow.pop %v5036
        %v5038 = vmul.f32 %v5028, 1.442695
        %v5039 = vpow.pop %v5038
        %v5040 = vmul.f32 %v5029, 1.442695
        %v5041 = vpow.pop %v5040
        %v5042 = vmul.f32 %v5030, 1.442695
        %v5043 = vpow.pop %v5042
        %v5044 = vmul.f32 %v5031, 1.442695
        %v5045 = vpow.pop %v5044
        %v5046 = vmul.f32 %v5032, 1.442695
        %v5047 = vpow.pop %v5046
        %v5048 = vmul.f32 %v5033, 1.442695
        %v5049 = vpow.pop %v5048
        %v5050 = vmul.f32 %v5010, %v5035
        %v5051 = vmul.f32 %v5011, %v5037
        %v5052 = vmul.f32 %v5012, %v5039
        %v5053 = vmul.f32 %v5013, %v5041
        %v5054 = vmul.f32 %v5014, %v5043
        %v5055 = vmul.f32 %v5015, %v5045
        %v5056 = vmul.f32 %v5016, %v5047
        %v5057 = vmul.f32 %v5017, %v5049
        %v5058 = vsub.f32 1.0, %v5050
        %v5059 = vsub.f32 1.0, %v5051
        %v5060 = vsub.f32 1.0, %v5052
        %v5061 = vsub.f32 1.0, %v5053
        %v5062 = vsub.f32 1.0, %v5054
        %v5063 = vsub.f32 1.0, %v5055
        %v5064 = vsub.f32 1.0, %v5056
        %v5065 = vsub.f32 1.0, %v5057
        %v5066 = vmul.f32 %v4794, %v5058
        %v5067 = vmul.f32 %v4795, %v5059
        %v5068 = vmul.f32 %v4796, %v5060
        %v5069 = vmul.f32 %v4797, %v5061
        %v5070 = vmul.f32 %v4798, %v5062
        %v5071 = vmul.f32 %v4799, %v5063
        %v5072 = vmul.f32 %v4800, %v5064
        %v5073 = vmul.f32 %v4801, %v5065
        %v5074 = vadd.f32 %v5066, 1.0
        %v5075 = vadd.f32 %v5067, 1.0
        %v5076 = vadd.f32 %v5068, 1.0
        %v5077 = vadd.f32 %v5069, 1.0
        %v5078 = vadd.f32 %v5070, 1.0
        %v5079 = vadd.f32 %v5071, 1.0
        %v5080 = vadd.f32 %v5072, 1.0
        %v5081 = vadd.f32 %v5073, 1.0
        %v5082 = vmul.f32 %v4770, %v5074
        %v5083 = vmul.f32 %v4771, %v5075
        %v5084 = vmul.f32 %v4772, %v5076
        %v5085 = vmul.f32 %v4773, %v5077
        %v5086 = vmul.f32 %v4774, %v5078
        %v5087 = vmul.f32 %v4775, %v5079
        %v5088 = vmul.f32 %v4776, %v5080
        %v5089 = vmul.f32 %v4777, %v5081
        %v5090 = vpack.c.bf16 %v5086, %v5082
        %v5091 = vpack.c.bf16 %v5087, %v5083
        %v5092 = vpack.c.bf16 %v5088, %v5084
        %v5093 = vpack.c.bf16 %v5089, %v5085
        %s5094 = scalar_lea.vmem %s12, 256
        %v5095 = vld [vmem:[%s5094] sm:$0xf]
        %v5096 = vld [vmem:[%s5094 + $0x4] sm:$0xf]
        %v5097 = vld [vmem:[%s5094 + $0x8] sm:$0xf]
        %v5098 = vld [vmem:[%s5094 + $0xc] sm:$0xf]
        %v5099 = vld [vmem:[%s5094 + $0x10] sm:$0xf]
        %v5100 = vld [vmem:[%s5094 + $0x14] sm:$0xf]
        %v5101 = vld [vmem:[%s5094 + $0x18] sm:$0xf]
        %v5102 = vld [vmem:[%s5094 + $0x1c] sm:$0xf]
        %v5103 = vld [vmem:[%s5094 + $0x20] sm:$0xf]
        %v5104 = vld [vmem:[%s5094 + $0x24] sm:$0xf]
        %v5105 = vld [vmem:[%s5094 + $0x28] sm:$0xf]
        %v5106 = vld [vmem:[%s5094 + $0x2c] sm:$0xf]
        %v5107 = vld [vmem:[%s5094 + $0x30] sm:$0xf]
        %v5108 = vld [vmem:[%s5094 + $0x34] sm:$0xf]
        %v5109 = vld [vmem:[%s5094 + $0x38] sm:$0xf]
        %v5110 = vld [vmem:[%s5094 + $0x3c] sm:$0xf]
        %v5111 = vld [vmem:[%s5094 + $0x40] sm:$0xf]
        %v5112 = vld [vmem:[%s5094 + $0x44] sm:$0xf]
        %v5113 = vld [vmem:[%s5094 + $0x48] sm:$0xf]
        %v5114 = vld [vmem:[%s5094 + $0x4c] sm:$0xf]
        %v5115 = vld [vmem:[%s5094 + $0x50] sm:$0xf]
        %v5116 = vld [vmem:[%s5094 + $0x54] sm:$0xf]
        %v5117 = vld [vmem:[%s5094 + $0x58] sm:$0xf]
        %v5118 = vld [vmem:[%s5094 + $0x5c] sm:$0xf]
        %v5119 = vld [vmem:[%s5094 + $0x60] sm:$0xf]
        %v5120 = vld [vmem:[%s5094 + $0x64] sm:$0xf]
        %v5121 = vld [vmem:[%s5094 + $0x68] sm:$0xf]
        %v5122 = vld [vmem:[%s5094 + $0x6c] sm:$0xf]
        %v5123 = vld [vmem:[%s5094 + $0x70] sm:$0xf]
        %v5124 = vld [vmem:[%s5094 + $0x74] sm:$0xf]
        %v5125 = vld [vmem:[%s5094 + $0x78] sm:$0xf]
        %v5126 = vld [vmem:[%s5094 + $0x7c] sm:$0xf]
        %v5127 = vld [vmem:[%s5094 + $0x80] sm:$0xf]
        %v5128 = vld [vmem:[%s5094 + $0x84] sm:$0xf]
        %v5129 = vld [vmem:[%s5094 + $0x88] sm:$0xf]
        %v5130 = vld [vmem:[%s5094 + $0x8c] sm:$0xf]
        %v5131 = vld [vmem:[%s5094 + $0x90] sm:$0xf]
        %v5132 = vld [vmem:[%s5094 + $0x94] sm:$0xf]
        %v5133 = vld [vmem:[%s5094 + $0x98] sm:$0xf]
        %v5134 = vld [vmem:[%s5094 + $0x9c] sm:$0xf]
        %v5135 = vld [vmem:[%s5094 + $0xa0] sm:$0xf]
        %v5136 = vld [vmem:[%s5094 + $0xa4] sm:$0xf]
        %v5137 = vld [vmem:[%s5094 + $0xa8] sm:$0xf]
        %v5138 = vld [vmem:[%s5094 + $0xac] sm:$0xf]
        %v5139 = vld [vmem:[%s5094 + $0xb0] sm:$0xf]
        %v5140 = vld [vmem:[%s5094 + $0xb4] sm:$0xf]
        %v5141 = vld [vmem:[%s5094 + $0xb8] sm:$0xf]
        %v5142 = vld [vmem:[%s5094 + $0xbc] sm:$0xf]
        %v5143 = vld [vmem:[%s5094 + $0xc0] sm:$0xf]
        %v5144 = vld [vmem:[%s5094 + $0xc4] sm:$0xf]
        %v5145 = vld [vmem:[%s5094 + $0xc8] sm:$0xf]
        %v5146 = vld [vmem:[%s5094 + $0xcc] sm:$0xf]
        %v5147 = vld [vmem:[%s5094 + $0xd0] sm:$0xf]
        %v5148 = vld [vmem:[%s5094 + $0xd4] sm:$0xf]
        %v5149 = vld [vmem:[%s5094 + $0xd8] sm:$0xf]
        %v5150 = vld [vmem:[%s5094 + $0xdc] sm:$0xf]
        %v5151 = vld [vmem:[%s5094 + $0xe0] sm:$0xf]
        %v5152 = vld [vmem:[%s5094 + $0xe4] sm:$0xf]
        %v5153 = vld [vmem:[%s5094 + $0xe8] sm:$0xf]
        %v5154 = vld [vmem:[%s5094 + $0xec] sm:$0xf]
        %v5155 = vld [vmem:[%s5094 + $0xf0] sm:$0xf]
        %v5156 = vld [vmem:[%s5094 + $0xf4] sm:$0xf]
        %v5157 = vld [vmem:[%s5094 + $0xf8] sm:$0xf]
        %v5158 = vld [vmem:[%s5094 + $0xfc] sm:$0xf]
        %v5159 = vld [vmem:[%s13 + $0x1] sm:$0x1]
        %v5160 = vperm.slane %v5159, 0
        %v5225 = vunpack.c.l.b16 %v5095
        %v5226 = vunpack.c.l.b16 %v5096
        %v5227 = vunpack.c.l.b16 %v5097
        %v5228 = vunpack.c.l.b16 %v5098
        %v5229 = vunpack.c.l.b16 %v5099
        %v5230 = vunpack.c.l.b16 %v5100
        %v5231 = vunpack.c.l.b16 %v5101
        %v5232 = vunpack.c.l.b16 %v5102
        %v5233 = vunpack.c.l.b16 %v5103
        %v5234 = vunpack.c.l.b16 %v5104
        %v5235 = vunpack.c.l.b16 %v5105
        %v5236 = vunpack.c.l.b16 %v5106
        %v5237 = vunpack.c.l.b16 %v5107
        %v5238 = vunpack.c.l.b16 %v5108
        %v5239 = vunpack.c.l.b16 %v5109
        %v5240 = vunpack.c.l.b16 %v5110
        %v5241 = vunpack.c.l.b16 %v5111
        %v5242 = vunpack.c.l.b16 %v5112
        %v5243 = vunpack.c.l.b16 %v5113
        %v5244 = vunpack.c.l.b16 %v5114
        %v5245 = vunpack.c.l.b16 %v5115
        %v5246 = vunpack.c.l.b16 %v5116
        %v5247 = vunpack.c.l.b16 %v5117
        %v5248 = vunpack.c.l.b16 %v5118
        %v5249 = vunpack.c.l.b16 %v5119
        %v5250 = vunpack.c.l.b16 %v5120
        %v5251 = vunpack.c.l.b16 %v5121
        %v5252 = vunpack.c.l.b16 %v5122
        %v5253 = vunpack.c.l.b16 %v5123
        %v5254 = vunpack.c.l.b16 %v5124
        %v5255 = vunpack.c.l.b16 %v5125
        %v5256 = vunpack.c.l.b16 %v5126
        %v5257 = vunpack.c.l.b16 %v5127
        %v5258 = vunpack.c.l.b16 %v5128
        %v5259 = vunpack.c.l.b16 %v5129
        %v5260 = vunpack.c.l.b16 %v5130
        %v5261 = vunpack.c.l.b16 %v5131
        %v5262 = vunpack.c.l.b16 %v5132
        %v5263 = vunpack.c.l.b16 %v5133
        %v5264 = vunpack.c.l.b16 %v5134
        %v5265 = vunpack.c.l.b16 %v5135
        %v5266 = vunpack.c.l.b16 %v5136
        %v5267 = vunpack.c.l.b16 %v5137
        %v5268 = vunpack.c.l.b16 %v5138
        %v5269 = vunpack.c.l.b16 %v5139
        %v5270 = vunpack.c.l.b16 %v5140
        %v5271 = vunpack.c.l.b16 %v5141
        %v5272 = vunpack.c.l.b16 %v5142
        %v5273 = vunpack.c.l.b16 %v5143
        %v5274 = vunpack.c.l.b16 %v5144
        %v5275 = vunpack.c.l.b16 %v5145
        %v5276 = vunpack.c.l.b16 %v5146
        %v5277 = vunpack.c.l.b16 %v5147
        %v5278 = vunpack.c.l.b16 %v5148
        %v5279 = vunpack.c.l.b16 %v5149
        %v5280 = vunpack.c.l.b16 %v5150
        %v5281 = vunpack.c.l.b16 %v5151
        %v5282 = vunpack.c.l.b16 %v5152
        %v5283 = vunpack.c.l.b16 %v5153
        %v5284 = vunpack.c.l.b16 %v5154
        %v5285 = vunpack.c.l.b16 %v5155
        %v5286 = vunpack.c.l.b16 %v5156
        %v5287 = vunpack.c.l.b16 %v5157
        %v5288 = vunpack.c.l.b16 %v5158
        %v5289 = vpack.c.b16 %v5226, %v5225
        %v5290 = vpack.c.b16 %v5228, %v5227
        %v5291 = vpack.c.b16 %v5230, %v5229
        %v5292 = vpack.c.b16 %v5232, %v5231
        %v5293 = vpack.c.b16 %v5234, %v5233
        %v5294 = vpack.c.b16 %v5236, %v5235
        %v5295 = vpack.c.b16 %v5238, %v5237
        %v5296 = vpack.c.b16 %v5240, %v5239
        %v5297 = vpack.c.b16 %v5242, %v5241
        %v5298 = vpack.c.b16 %v5244, %v5243
        %v5299 = vpack.c.b16 %v5246, %v5245
        %v5300 = vpack.c.b16 %v5248, %v5247
        %v5301 = vpack.c.b16 %v5250, %v5249
        %v5302 = vpack.c.b16 %v5252, %v5251
        %v5303 = vpack.c.b16 %v5254, %v5253
        %v5304 = vpack.c.b16 %v5256, %v5255
        %v5305 = vpack.c.b16 %v5258, %v5257
        %v5306 = vpack.c.b16 %v5260, %v5259
        %v5307 = vpack.c.b16 %v5262, %v5261
        %v5308 = vpack.c.b16 %v5264, %v5263
        %v5309 = vpack.c.b16 %v5266, %v5265
        %v5310 = vpack.c.b16 %v5268, %v5267
        %v5311 = vpack.c.b16 %v5270, %v5269
        %v5312 = vpack.c.b16 %v5272, %v5271
        %v5313 = vpack.c.b16 %v5274, %v5273
        %v5314 = vpack.c.b16 %v5276, %v5275
        %v5315 = vpack.c.b16 %v5278, %v5277
        %v5316 = vpack.c.b16 %v5280, %v5279
        %v5317 = vpack.c.b16 %v5282, %v5281
        %v5318 = vpack.c.b16 %v5284, %v5283
        %v5319 = vpack.c.b16 %v5286, %v5285
        %v5320 = vpack.c.b16 %v5288, %v5287
        %5353 = vmatpush.bf16.msra.mxu0 %v5296
        %5354 = vmatpush.bf16.msra.mxu0 %v5295
        %5355 = vmatpush.bf16.msra.mxu0 %v5294
        %5356 = vmatpush.bf16.msra.mxu0 %v5293
        %5357 = vmatpush.bf16.msra.mxu0 %v5292
        %5358 = vmatpush.bf16.msra.mxu0 %v5291
        %5359 = vmatpush.bf16.msra.mxu0 %v5290
        %5360 = vmatpush.bf16.msra.mxu0 %v5289
        %5361 = vmatmul.bf16.gmra.mxu0 %v5090
        %v5362 = vpop.f32.mrf.mxu0
        %v5363 = vadd.f32 %v5160, %v5362
        %v5364 = vpop.f32.mrf.mxu0
        %v5365 = vadd.f32 %v5160, %v5364
        %5366 = vdwg.mxu0
        %5367 = vmatpush.bf16.msra.mxu0 %v5304
        %5368 = vmatpush.bf16.msra.mxu0 %v5303
        %5369 = vmatpush.bf16.msra.mxu0 %v5302
        %5370 = vmatpush.bf16.msra.mxu0 %v5301
        %5371 = vmatpush.bf16.msra.mxu0 %v5300
        %5372 = vmatpush.bf16.msra.mxu0 %v5299
        %5373 = vmatpush.bf16.msra.mxu0 %v5298
        %5374 = vmatpush.bf16.msra.mxu0 %v5297
        %5375 = vmatmul.bf16.gmra.mxu0 %v5091
        %v5376 = vpop.f32.mrf.mxu0
        %v5377 = vadd.f32 %v5363, %v5376
        %v5378 = vpop.f32.mrf.mxu0
        %v5379 = vadd.f32 %v5365, %v5378
        %5380 = vdwg.mxu0
        %5381 = vmatpush.bf16.msra.mxu0 %v5312
        %5382 = vmatpush.bf16.msra.mxu0 %v5311
        %5383 = vmatpush.bf16.msra.mxu0 %v5310
        %5384 = vmatpush.bf16.msra.mxu0 %v5309
        %5385 = vmatpush.bf16.msra.mxu0 %v5308
        %5386 = vmatpush.bf16.msra.mxu0 %v5307
        %5387 = vmatpush.bf16.msra.mxu0 %v5306
        %5388 = vmatpush.bf16.msra.mxu0 %v5305
        %5389 = vmatmul.bf16.gmra.mxu0 %v5092
        %v5390 = vpop.f32.mrf.mxu0
        %v5391 = vadd.f32 %v5377, %v5390
        %v5392 = vpop.f32.mrf.mxu0
        %v5393 = vadd.f32 %v5379, %v5392
        %5394 = vdwg.mxu0
        %5395 = vmatpush.bf16.msra.mxu0 %v5320
        %5396 = vmatpush.bf16.msra.mxu0 %v5319
        %5397 = vmatpush.bf16.msra.mxu0 %v5318
        %5398 = vmatpush.bf16.msra.mxu0 %v5317
        %5399 = vmatpush.bf16.msra.mxu0 %v5316
        %5400 = vmatpush.bf16.msra.mxu0 %v5315
        %5401 = vmatpush.bf16.msra.mxu0 %v5314
        %5402 = vmatpush.bf16.msra.mxu0 %v5313
        %5403 = vmatmul.bf16.gmra.mxu0 %v5093
        %v5404 = vpop.f32.mrf.mxu0
        %v5405 = vadd.f32 %v5391, %v5404
        %v5406 = vpop.f32.mrf.mxu0
        %v5407 = vadd.f32 %v5393, %v5406
        %5408 = vdwg.mxu0
        %v5409 = vadd.f32 %v4459, %v5405
        %v5410 = vadd.f32 %v4460, %v5407
        %5411 = vst [vmem:[%s460] sm:$0xff] %v5409
        %5412 = vst [vmem:[%s460 + $0x8] sm:$0xff] %v5410
        %s5413 = sand.u32 %s335, 1
        %s5414 = scalar_lea.sflag [#allocation3], %s5413
        %s5415 = sand.u32 %s335, 1
        %s5416 = smul.addr %s5415, 16
        %s5417 = scalar_lea.vmem [#allocation2], %s5416
        // Predicated region
        $region77: #{tpu_custom_call.1} parent=75 // pred_check
          %p5418 = pneg %p345
        $region78: #{tpu_custom_call.1} parent=75 // pred_check_branch
          %5420 = sbr.rel (%p5418) target = $region80
        $region79: #{tpu_custom_call.1} parent=75 // pred_region
          %5422 = vsyncadd %s5414, 0
          %s5423 = smul.addr %s28, 2
          %s5424 = smul.addr %s5423, 8
          %s5425 = scalar_lea.hbm %s14, %s5424
          %s5426 = sshll.u32 %s5417, 4
          %s5427 = int_to_ptr.vmem [resolvable:$true] %s5426
          %s5428 = sshll.u32 %s5425, 4
          %s5429 = int_to_ptr.hbm [resolvable:$true] %s5428
          %5434 = dma.vmem_to_hbm [thread:$0]  %s5427, 256, %s5429, %s5414, 128, 128, 8
        $region80: #{tpu_custom_call.1} parent=75 // pred_fallthru
          _
      $region76: #{tpu_custom_call.1} parent=5 // pred_fallthru
        _
      %p5435 = scmp.le.s32.totalorder 2, %s23
      // Predicated region
      $region81: #{tpu_custom_call.1} parent=5 // pred_check
        %p5436 = pneg %p5435
      $region82: #{tpu_custom_call.1} parent=5 // pred_check_branch
        %5438 = sbr.rel (%p5436) target = $region84
      $region83: #{tpu_custom_call.1} parent=5 // pred_region
        %s5439 = ssub.s32 %s23, 2
        // Predicated region
        $region85: #{tpu_custom_call.1} parent=83 // pred_check
          %p5440 = pneg %p351
        $region86: #{tpu_custom_call.1} parent=83 // pred_check_branch
          %5442 = sbr.rel (%p5440) target = $region88
        $region87: #{tpu_custom_call.1} parent=83 // pred_region
          %s5443 = sand.u32 %s336, 1
          %s5444 = scalar_lea.sflag [#allocation3], %s5443
          %s5445 = sand.u32 %s336, 1
          %s5446 = smul.addr %s5445, 16
          %s5447 = scalar_lea.vmem [#allocation2], %s5446
          %5449 = dma.done %s5444, 256
        $region88: #{tpu_custom_call.1} parent=83 // pred_fallthru
          _
      $region84: #{tpu_custom_call.1} parent=5 // pred_fallthru
        _
    $region6: #{tpu_custom_call.1} parent=1 // loop_footer
      %s27 = sadd.s32 1, %s23
    $region7: #{tpu_custom_call.1} parent=1 // loop_footer_branch
      %22 = sbr.rel target = $region3
    $region8: #{tpu_custom_call.1} parent=1 // loop_exit
      _
    %5450 = vsyncpa [#allocation3], 1
    %s5451 = scalar_lea.sflag [#allocation3], 1
    %5452 = vsyncpa %s5451, 1

</llo_original>
